<compile_context>
chip_gen: v6e
topology: v6e:2x2x1
jax: 0.10.0
libtpu: 0.0.40
codegen_flags: <defaults>
</compile_context>

<pallas_src>
import functools

import jax
import jax.numpy as jnp
from jax.experimental import pallas as pl
from jax.experimental.pallas import tpu as pltpu


LEAK = 0.2
BN_EPS = 0.8   # nn.BatchNorm1d(out_feat, 0.8): second positional arg is eps
_SUBLANE = 16  # bf16-friendly sublane alignment for the batch dimension


def _leaky_relu(x):
    # LEAK < 1  =>  max(x, LEAK*x) == LeakyReLU_{LEAK}(x); mul+max (2 VALU ops).
    return jnp.maximum(x, LEAK * x)


def _round_up(x, m):
    return (x + m - 1) // m * m


def _choose_tiling(B, max_batch_tile=512, dual_core_split=False):
    """Pick (batch_tile, padded_batch).

    * B is padded up to a sublane multiple, so awkward batch sizes never fall
      back to tiny tiles (old behaviour: B=264 -> TB=8, grid=33).
    * If the padded batch fits in one tile we keep grid=(1,) so BatchNorm sees
      the whole batch (exact PyTorch training-mode semantics).
    * Otherwise (or with dual_core_split=True for B >= 256) the tile count is
      rounded up to an even number so both v7x TensorCores get work.
    """
    max_tile = max(_SUBLANE, max_batch_tile - max_batch_tile % _SUBLANE)
    b = _round_up(B, _SUBLANE)
    if b <= max_tile and not (dual_core_split and b >= 256):
        return b, b  # single tile: exact whole-batch BN
    n_tiles = max(1, -(-b // max_tile))
    n_tiles = max(2, n_tiles)
    n_tiles += n_tiles % 2          # even grid -> both v7x TCs busy
    tb = _round_up(-(-b // n_tiles), _SUBLANE)
    return tb, tb * n_tiles


def generator_kernel(
    nrows_ref,                      # scalar-prefetch: true batch row count
    z_ref,
    w1_ref, b1_ref,
    w2_ref, g2_ref, be2_ref,
    w3_ref, g3_ref, be3_ref,
    w4_ref, g4_ref, be4_ref,
    w5_ref, b5_ref,
    out_ref,
    *, batch_padded,
):
    f32 = jnp.float32
    bf16 = jnp.bfloat16
    TB = z_ref.shape[0]

    # block(z_dim, 128, normalize=False): Linear + LeakyReLU (z already bf16).
    h = jnp.dot(z_ref[...], w1_ref[...], preferred_element_type=f32)
    h = _leaky_relu(h + b1_ref[...])

    if batch_padded:
        # Mask padded batch rows out of the BN statistics; the true row count
        # arrives via scalar prefetch (SMEM).
        row0 = pl.program_id(0) * TB
        rows = row0 + jax.lax.broadcasted_iota(jnp.int32, (TB, 1), 0)
        mask = (rows < nrows_ref[0]).astype(f32)                     # (TB, 1)
        n_valid = jnp.minimum(jnp.maximum(nrows_ref[0] - row0, 1), TB)
        inv_n = 1.0 / n_valid.astype(f32)
    else:
        mask = None
        inv_n = 1.0 / TB

    # block(128,256), block(256,512), block(512,1024):
    # Linear -> BatchNorm1d(train, eps=0.8) -> LeakyReLU.
    # The Linear bias is a per-feature constant and cancels exactly inside the
    # BN mean subtraction, so it is omitted. BN is folded into a single
    # per-feature scale/shift; variance uses the stabler two-pass form.
    for w_ref, g_ref, be_ref in (
        (w2_ref, g2_ref, be2_ref),
        (w3_ref, g3_ref, be3_ref),
        (w4_ref, g4_ref, be4_ref),
    ):
        h = jnp.dot(h.astype(bf16), w_ref[...], preferred_element_type=f32)
        if mask is not None:
            mean = jnp.sum(h * mask, axis=0, keepdims=True) * inv_n
            hc = (h - mean) * mask
        else:
            mean = jnp.sum(h, axis=0, keepdims=True) * inv_n
            hc = h - mean
        var = jnp.sum(hc * hc, axis=0, keepdims=True) * inv_n        # biased
        scale = g_ref[...] * jax.lax.rsqrt(var + BN_EPS)             # EUP slot
        shift = be_ref[...] - mean * scale
        h = _leaky_relu(h * scale + shift)

    # Linear(1024, channels) + Tanh
    h = jnp.dot(h.astype(bf16), w5_ref[...], preferred_element_type=f32)
    out_ref[...] = jnp.tanh(h + b5_ref[...])


def generator_forward(z, params, *, max_batch_tile=512, dual_core_split=False):
    B, z_dim = z.shape
    channels = params["w5"].shape[1]

    K = _round_up(z_dim, 128)      # lane-pad z / w1 input dim (100 -> 128)
    C = _round_up(channels, 128)   # lane-pad output dim (1 -> 128)
    TB, B_pad = _choose_tiling(B, max_batch_tile, dual_core_split)
    grid = (B_pad // TB,)
    batch_padded = B_pad != B

    bf16, f32 = jnp.bfloat16, jnp.float32

    # Zero padding is numerically inert: padded z columns are 0, padded batch
    # rows are masked out of the BN moments and sliced off below, padded w5
    # output columns are sliced off below.
    zp = jnp.pad(z, ((0, B_pad - B), (0, K - z_dim))).astype(bf16)
    w1 = jnp.pad(params["w1"], ((0, K - z_dim), (0, 0))).astype(bf16)
    w5 = jnp.pad(params["w5"], ((0, 0), (0, C - channels))).astype(bf16)
    b5 = jnp.pad(params["b5"], ((0, 0), (0, C - channels))).astype(f32)
    nrows = jnp.array([B], jnp.int32)   # scalar prefetch: true row count

    args = (
        zp,
        w1, params["b1"].astype(f32),
        params["w2"].astype(bf16), params["g2"].astype(f32), params["be2"].astype(f32),
        params["w3"].astype(bf16), params["g3"].astype(f32), params["be3"].astype(f32),
        params["w4"].astype(bf16), params["g4"].astype(f32), params["be4"].astype(f32),
        w5, b5,
    )

    # Weights/biases: full-array blocks with a constant index_map -> fetched
    # once and kept resident in VMEM while z / out tiles pipeline over the
    # batch grid.
    def const_spec(a):
        return pl.BlockSpec(a.shape, lambda i, n: (0, 0))

    in_specs = [pl.BlockSpec((TB, K), lambda i, n: (i, 0))]
    in_specs += [const_spec(a) for a in args[1:]]
    out_specs = pl.BlockSpec((TB, C), lambda i, n: (i, 0))

    out = pl.pallas_call(
        functools.partial(generator_kernel, batch_padded=batch_padded),
        out_shape=jax.ShapeDtypeStruct((B_pad, C), f32),
        grid_spec=pltpu.PrefetchScalarGridSpec(
            num_scalar_prefetch=1,
            grid=grid,
            in_specs=in_specs,
            out_specs=out_specs,
        ),
        compiler_params=pltpu.CompilerParams(
            dimension_semantics=("parallel",),  # batch tiles split across TCs on v7x
        ),
    )(nrows, *args)
    return out[:B, :channels]


def init_params(key, z_dim=100, channels=1):
    dims = [(z_dim, 128), (128, 256), (256, 512), (512, 1024), (1024, channels)]
    params = {}
    keys = jax.random.split(key, 2 * len(dims))
    for i, (fin, fout) in enumerate(dims, start=1):
        kw, kb = keys[2 * (i - 1)], keys[2 * (i - 1) + 1]
        bound = 1.0 / jnp.sqrt(fin)
        params[f"w{i}"] = jax.random.uniform(
            kw, (fin, fout), jnp.float32, -bound, bound
        )
        params[f"b{i}"] = jax.random.uniform(
            kb, (1, fout), jnp.float32, -bound, bound
        )
    # BatchNorm affine params (PyTorch default: gamma=1, beta=0) on layers 2-4
    for i, (_, fout) in zip((2, 3, 4), dims[1:4]):
        params[f"g{i}"] = jnp.ones((1, fout), jnp.float32)
        params[f"be{i}"] = jnp.zeros((1, fout), jnp.float32)
    return params


def generator_reference(z, params):
    """Pure-JAX reference using the straightforward PyTorch formulation
    (bias then BN, two-pass variance) at the same bf16 matmul precision."""

    def dot_bf16(x, w):
        return jnp.dot(x.astype(jnp.bfloat16), w.astype(jnp.bfloat16),
                       preferred_element_type=jnp.float32)

    h = _leaky_relu(dot_bf16(z, params["w1"]) + params["b1"])
    for i in (2, 3, 4):
        h = dot_bf16(h, params[f"w{i}"]) + params[f"b{i}"]
        mean = jnp.mean(h, axis=0, keepdims=True)
        var = jnp.mean((h - mean) ** 2, axis=0, keepdims=True)
        h = (h - mean) * jax.lax.rsqrt(var + BN_EPS) * params[f"g{i}"] + params[f"be{i}"]
        h = _leaky_relu(h)
    return jnp.tanh(dot_bf16(h, params["w5"]) + params["b5"])


if __name__ == "__main__":
    key = jax.random.PRNGKey(0)
    kz, kp = jax.random.split(key)

    B, Z_DIM, CHANNELS = 8, 100, 1
    z = jax.random.normal(kz, (B, Z_DIM), jnp.float32)
    params = init_params(kp, z_dim=Z_DIM, channels=CHANNELS)

    out = generator_forward(z, params)
    out = jax.block_until_ready(out)

    ref = generator_reference(z, params)
    assert out.shape == (B, CHANNELS)
    assert bool(jnp.all(jnp.isfinite(out)))
    max_err = float(jnp.max(jnp.abs(out - ref)))
    assert jnp.allclose(out, ref, atol=3e-3, rtol=3e-3), max_err

    print("KERNEL_OK")
</pallas_src>

<mosaic_0001>
module attributes {stable_mosaic.version = 11 : i64} {
  func.func @generator_kernel(%arg0: i32, %arg1: memref<1xi32, #tpu.memory_space<smem>>, %arg2: memref<16x128xbf16, #tpu.memory_space<vmem>>, %arg3: memref<128x128xbf16, #tpu.memory_space<vmem>>, %arg4: memref<1x128xf32, #tpu.memory_space<vmem>>, %arg5: memref<128x256xbf16, #tpu.memory_space<vmem>>, %arg6: memref<1x256xf32, #tpu.memory_space<vmem>>, %arg7: memref<1x256xf32, #tpu.memory_space<vmem>>, %arg8: memref<256x512xbf16, #tpu.memory_space<vmem>>, %arg9: memref<1x512xf32, #tpu.memory_space<vmem>>, %arg10: memref<1x512xf32, #tpu.memory_space<vmem>>, %arg11: memref<512x1024xbf16, #tpu.memory_space<vmem>>, %arg12: memref<1x1024xf32, #tpu.memory_space<vmem>>, %arg13: memref<1x1024xf32, #tpu.memory_space<vmem>>, %arg14: memref<1024x128xbf16, #tpu.memory_space<vmem>>, %arg15: memref<1x128xf32, #tpu.memory_space<vmem>>, %arg16: memref<16x128xf32, #tpu.memory_space<vmem>>) attributes {dimension_semantics = [#tpu.dimension_semantics<parallel>], iteration_bounds = array<i64: 1>, scalar_prefetch = 1 : i64, scratch_operands = 0 : i64, tpu.core_type = #tpu.core_type<tc>, window_params = [{transform_indices = @transform_0, window_bounds = array<i64: 16, 128>}, {pipeline_mode = #tpu.pipeline_mode<synchronous>, transform_indices = @transform_1, window_bounds = array<i64: 128, 128>}, {pipeline_mode = #tpu.pipeline_mode<synchronous>, transform_indices = @transform_2, window_bounds = array<i64: 1, 128>}, {pipeline_mode = #tpu.pipeline_mode<synchronous>, transform_indices = @transform_3, window_bounds = array<i64: 128, 256>}, {pipeline_mode = #tpu.pipeline_mode<synchronous>, transform_indices = @transform_4, window_bounds = array<i64: 1, 256>}, {pipeline_mode = #tpu.pipeline_mode<synchronous>, transform_indices = @transform_5, window_bounds = array<i64: 1, 256>}, {pipeline_mode = #tpu.pipeline_mode<synchronous>, transform_indices = @transform_6, window_bounds = array<i64: 256, 512>}, {pipeline_mode = #tpu.pipeline_mode<synchronous>, transform_indices = @transform_7, window_bounds = array<i64: 1, 512>}, {pipeline_mode = #tpu.pipeline_mode<synchronous>, transform_indices = @transform_8, window_bounds = array<i64: 1, 512>}, {pipeline_mode = #tpu.pipeline_mode<synchronous>, transform_indices = @transform_9, window_bounds = array<i64: 512, 1024>}, {pipeline_mode = #tpu.pipeline_mode<synchronous>, transform_indices = @transform_10, window_bounds = array<i64: 1, 1024>}, {pipeline_mode = #tpu.pipeline_mode<synchronous>, transform_indices = @transform_11, window_bounds = array<i64: 1, 1024>}, {pipeline_mode = #tpu.pipeline_mode<synchronous>, transform_indices = @transform_12, window_bounds = array<i64: 1024, 128>}, {pipeline_mode = #tpu.pipeline_mode<synchronous>, transform_indices = @transform_13, window_bounds = array<i64: 1, 128>}, {transform_indices = @transform_14, window_bounds = array<i64: 16, 128>}]} {
    %c0 = arith.constant 0 : index
    %c0_0 = arith.constant 0 : index
    %0 = vector.load %arg2[%c0, %c0_0] : memref<16x128xbf16, #tpu.memory_space<vmem>>, vector<16x128xbf16>
    %c0_1 = arith.constant 0 : index
    %c0_2 = arith.constant 0 : index
    %1 = vector.load %arg3[%c0_1, %c0_2] : memref<128x128xbf16, #tpu.memory_space<vmem>>, vector<128x128xbf16>
    %cst = arith.constant dense<0.000000e+00> : vector<16x128xf32>
    %2 = tpu.matmul %0, %1, %cst {dimension_numbers = #tpu.dot_dimension_numbers<[1], [0], [0], [1], [0, 0, 1, 1], [], []>} : vector<16x128xbf16>, vector<128x128xbf16>, vector<16x128xf32> -> vector<16x128xf32>
    %c0_3 = arith.constant 0 : index
    %c0_4 = arith.constant 0 : index
    %3 = vector.load %arg4[%c0_3, %c0_4] : memref<1x128xf32, #tpu.memory_space<vmem>>, vector<1x128xf32>
    %4 = vector.broadcast %3 : vector<1x128xf32> to vector<16x128xf32>
    %5 = arith.addf %2, %4 : vector<16x128xf32>
    %cst_5 = arith.constant 2.000000e-01 : f32
    %6 = vector.broadcast %cst_5 : f32 to vector<16x128xf32>
    %7 = arith.mulf %6, %5 : vector<16x128xf32>
    %8 = arith.maximumf %5, %7 : vector<16x128xf32>
    %c16_i32 = arith.constant 16 : i32
    %9 = arith.muli %arg0, %c16_i32 : i32
    %10 = tpu.iota {dimensions = array<i32: 0>} : vector<16x1xi32>
    %11 = vector.broadcast %9 : i32 to vector<16x1xi32>
    %12 = arith.addi %11, %10 : vector<16x1xi32>
    %c0_6 = arith.constant 0 : index
    %13 = memref.load %arg1[%c0_6] : memref<1xi32, #tpu.memory_space<smem>>
    %14 = vector.broadcast %13 : i32 to vector<16x1xi32>
    %15 = arith.cmpi slt, %12, %14 : vector<16x1xi32>
    %16 = arith.extui %15 : vector<16x1xi1> to vector<16x1xi32>
    %17 = arith.sitofp %16 : vector<16x1xi32> to vector<16x1xf32>
    %c0_7 = arith.constant 0 : index
    %18 = memref.load %arg1[%c0_7] : memref<1xi32, #tpu.memory_space<smem>>
    %19 = arith.subi %18, %9 : i32
    %c1_i32 = arith.constant 1 : i32
    %20 = arith.maxsi %19, %c1_i32 : i32
    %c16_i32_8 = arith.constant 16 : i32
    %21 = arith.minsi %20, %c16_i32_8 : i32
    %22 = arith.sitofp %21 : i32 to f32
    %cst_9 = arith.constant 1.000000e+00 : f32
    %23 = arith.divf %cst_9, %22 : f32
    %24 = arith.truncf %8 : vector<16x128xf32> to vector<16x128xbf16>
    %c0_10 = arith.constant 0 : index
    %c0_11 = arith.constant 0 : index
    %25 = vector.load %arg5[%c0_10, %c0_11] : memref<128x256xbf16, #tpu.memory_space<vmem>>, vector<128x256xbf16>
    %cst_12 = arith.constant dense<0.000000e+00> : vector<16x256xf32>
    %26 = tpu.matmul %24, %25, %cst_12 {dimension_numbers = #tpu.dot_dimension_numbers<[1], [0], [0], [1], [0, 0, 1, 1], [], []>} : vector<16x128xbf16>, vector<128x256xbf16>, vector<16x256xf32> -> vector<16x256xf32>
    %27 = vector.broadcast %17 : vector<16x1xf32> to vector<16x256xf32>
    %28 = arith.mulf %26, %27 : vector<16x256xf32>
    %cst_13 = arith.constant dense<0.000000e+00> : vector<256xf32>
    %29 = vector.multi_reduction <add>, %28, %cst_13 [0] : vector<16x256xf32> to vector<256xf32>
    %30 = vector.shape_cast %29 : vector<256xf32> to vector<1x256xf32>
    %31 = vector.broadcast %23 : f32 to vector<1x256xf32>
    %32 = arith.mulf %30, %31 : vector<1x256xf32>
    %33 = vector.broadcast %32 : vector<1x256xf32> to vector<16x256xf32>
    %34 = arith.subf %26, %33 : vector<16x256xf32>
    %35 = vector.broadcast %17 : vector<16x1xf32> to vector<16x256xf32>
    %36 = arith.mulf %34, %35 : vector<16x256xf32>
    %37 = arith.mulf %36, %36 : vector<16x256xf32>
    %cst_14 = arith.constant dense<0.000000e+00> : vector<256xf32>
    %38 = vector.multi_reduction <add>, %37, %cst_14 [0] : vector<16x256xf32> to vector<256xf32>
    %39 = vector.shape_cast %38 : vector<256xf32> to vector<1x256xf32>
    %40 = vector.broadcast %23 : f32 to vector<1x256xf32>
    %41 = arith.mulf %39, %40 : vector<1x256xf32>
    %c0_15 = arith.constant 0 : index
    %c0_16 = arith.constant 0 : index
    %42 = vector.load %arg6[%c0_15, %c0_16] : memref<1x256xf32, #tpu.memory_space<vmem>>, vector<1x256xf32>
    %cst_17 = arith.constant 8.000000e-01 : f32
    %43 = vector.broadcast %cst_17 : f32 to vector<1x256xf32>
    %44 = arith.addf %41, %43 : vector<1x256xf32>
    %45 = math.rsqrt %44 : vector<1x256xf32>
    %46 = arith.mulf %42, %45 : vector<1x256xf32>
    %c0_18 = arith.constant 0 : index
    %c0_19 = arith.constant 0 : index
    %47 = vector.load %arg7[%c0_18, %c0_19] : memref<1x256xf32, #tpu.memory_space<vmem>>, vector<1x256xf32>
    %48 = arith.mulf %32, %46 : vector<1x256xf32>
    %49 = arith.subf %47, %48 : vector<1x256xf32>
    %50 = vector.broadcast %46 : vector<1x256xf32> to vector<16x256xf32>
    %51 = arith.mulf %26, %50 : vector<16x256xf32>
    %52 = vector.broadcast %49 : vector<1x256xf32> to vector<16x256xf32>
    %53 = arith.addf %51, %52 : vector<16x256xf32>
    %cst_20 = arith.constant 2.000000e-01 : f32
    %54 = vector.broadcast %cst_20 : f32 to vector<16x256xf32>
    %55 = arith.mulf %54, %53 : vector<16x256xf32>
    %56 = arith.maximumf %53, %55 : vector<16x256xf32>
    %57 = arith.truncf %56 : vector<16x256xf32> to vector<16x256xbf16>
    %c0_21 = arith.constant 0 : index
    %c0_22 = arith.constant 0 : index
    %58 = vector.load %arg8[%c0_21, %c0_22] : memref<256x512xbf16, #tpu.memory_space<vmem>>, vector<256x512xbf16>
    %cst_23 = arith.constant dense<0.000000e+00> : vector<16x512xf32>
    %59 = tpu.matmul %57, %58, %cst_23 {dimension_numbers = #tpu.dot_dimension_numbers<[1], [0], [0], [1], [0, 0, 1, 1], [], []>} : vector<16x256xbf16>, vector<256x512xbf16>, vector<16x512xf32> -> vector<16x512xf32>
    %60 = vector.broadcast %17 : vector<16x1xf32> to vector<16x512xf32>
    %61 = arith.mulf %59, %60 : vector<16x512xf32>
    %cst_24 = arith.constant dense<0.000000e+00> : vector<512xf32>
    %62 = vector.multi_reduction <add>, %61, %cst_24 [0] : vector<16x512xf32> to vector<512xf32>
    %63 = vector.shape_cast %62 : vector<512xf32> to vector<1x512xf32>
    %64 = vector.broadcast %23 : f32 to vector<1x512xf32>
    %65 = arith.mulf %63, %64 : vector<1x512xf32>
    %66 = vector.broadcast %65 : vector<1x512xf32> to vector<16x512xf32>
    %67 = arith.subf %59, %66 : vector<16x512xf32>
    %68 = vector.broadcast %17 : vector<16x1xf32> to vector<16x512xf32>
    %69 = arith.mulf %67, %68 : vector<16x512xf32>
    %70 = arith.mulf %69, %69 : vector<16x512xf32>
    %cst_25 = arith.constant dense<0.000000e+00> : vector<512xf32>
    %71 = vector.multi_reduction <add>, %70, %cst_25 [0] : vector<16x512xf32> to vector<512xf32>
    %72 = vector.shape_cast %71 : vector<512xf32> to vector<1x512xf32>
    %73 = vector.broadcast %23 : f32 to vector<1x512xf32>
    %74 = arith.mulf %72, %73 : vector<1x512xf32>
    %c0_26 = arith.constant 0 : index
    %c0_27 = arith.constant 0 : index
    %75 = vector.load %arg9[%c0_26, %c0_27] : memref<1x512xf32, #tpu.memory_space<vmem>>, vector<1x512xf32>
    %cst_28 = arith.constant 8.000000e-01 : f32
    %76 = vector.broadcast %cst_28 : f32 to vector<1x512xf32>
    %77 = arith.addf %74, %76 : vector<1x512xf32>
    %78 = math.rsqrt %77 : vector<1x512xf32>
    %79 = arith.mulf %75, %78 : vector<1x512xf32>
    %c0_29 = arith.constant 0 : index
    %c0_30 = arith.constant 0 : index
    %80 = vector.load %arg10[%c0_29, %c0_30] : memref<1x512xf32, #tpu.memory_space<vmem>>, vector<1x512xf32>
    %81 = arith.mulf %65, %79 : vector<1x512xf32>
    %82 = arith.subf %80, %81 : vector<1x512xf32>
    %83 = vector.broadcast %79 : vector<1x512xf32> to vector<16x512xf32>
    %84 = arith.mulf %59, %83 : vector<16x512xf32>
    %85 = vector.broadcast %82 : vector<1x512xf32> to vector<16x512xf32>
    %86 = arith.addf %84, %85 : vector<16x512xf32>
    %cst_31 = arith.constant 2.000000e-01 : f32
    %87 = vector.broadcast %cst_31 : f32 to vector<16x512xf32>
    %88 = arith.mulf %87, %86 : vector<16x512xf32>
    %89 = arith.maximumf %86, %88 : vector<16x512xf32>
    %90 = arith.truncf %89 : vector<16x512xf32> to vector<16x512xbf16>
    %c0_32 = arith.constant 0 : index
    %c0_33 = arith.constant 0 : index
    %91 = vector.load %arg11[%c0_32, %c0_33] : memref<512x1024xbf16, #tpu.memory_space<vmem>>, vector<512x1024xbf16>
    %cst_34 = arith.constant dense<0.000000e+00> : vector<16x1024xf32>
    %92 = tpu.matmul %90, %91, %cst_34 {dimension_numbers = #tpu.dot_dimension_numbers<[1], [0], [0], [1], [0, 0, 1, 1], [], []>} : vector<16x512xbf16>, vector<512x1024xbf16>, vector<16x1024xf32> -> vector<16x1024xf32>
    %93 = vector.broadcast %17 : vector<16x1xf32> to vector<16x1024xf32>
    %94 = arith.mulf %92, %93 : vector<16x1024xf32>
    %cst_35 = arith.constant dense<0.000000e+00> : vector<1024xf32>
    %95 = vector.multi_reduction <add>, %94, %cst_35 [0] : vector<16x1024xf32> to vector<1024xf32>
    %96 = vector.shape_cast %95 : vector<1024xf32> to vector<1x1024xf32>
    %97 = vector.broadcast %23 : f32 to vector<1x1024xf32>
    %98 = arith.mulf %96, %97 : vector<1x1024xf32>
    %99 = vector.broadcast %98 : vector<1x1024xf32> to vector<16x1024xf32>
    %100 = arith.subf %92, %99 : vector<16x1024xf32>
    %101 = vector.broadcast %17 : vector<16x1xf32> to vector<16x1024xf32>
    %102 = arith.mulf %100, %101 : vector<16x1024xf32>
    %103 = arith.mulf %102, %102 : vector<16x1024xf32>
    %cst_36 = arith.constant dense<0.000000e+00> : vector<1024xf32>
    %104 = vector.multi_reduction <add>, %103, %cst_36 [0] : vector<16x1024xf32> to vector<1024xf32>
    %105 = vector.shape_cast %104 : vector<1024xf32> to vector<1x1024xf32>
    %106 = vector.broadcast %23 : f32 to vector<1x1024xf32>
    %107 = arith.mulf %105, %106 : vector<1x1024xf32>
    %c0_37 = arith.constant 0 : index
    %c0_38 = arith.constant 0 : index
    %108 = vector.load %arg12[%c0_37, %c0_38] : memref<1x1024xf32, #tpu.memory_space<vmem>>, vector<1x1024xf32>
    %cst_39 = arith.constant 8.000000e-01 : f32
    %109 = vector.broadcast %cst_39 : f32 to vector<1x1024xf32>
    %110 = arith.addf %107, %109 : vector<1x1024xf32>
    %111 = math.rsqrt %110 : vector<1x1024xf32>
    %112 = arith.mulf %108, %111 : vector<1x1024xf32>
    %c0_40 = arith.constant 0 : index
    %c0_41 = arith.constant 0 : index
    %113 = vector.load %arg13[%c0_40, %c0_41] : memref<1x1024xf32, #tpu.memory_space<vmem>>, vector<1x1024xf32>
    %114 = arith.mulf %98, %112 : vector<1x1024xf32>
    %115 = arith.subf %113, %114 : vector<1x1024xf32>
    %116 = vector.broadcast %112 : vector<1x1024xf32> to vector<16x1024xf32>
    %117 = arith.mulf %92, %116 : vector<16x1024xf32>
    %118 = vector.broadcast %115 : vector<1x1024xf32> to vector<16x1024xf32>
    %119 = arith.addf %117, %118 : vector<16x1024xf32>
    %cst_42 = arith.constant 2.000000e-01 : f32
    %120 = vector.broadcast %cst_42 : f32 to vector<16x1024xf32>
    %121 = arith.mulf %120, %119 : vector<16x1024xf32>
    %122 = arith.maximumf %119, %121 : vector<16x1024xf32>
    %123 = arith.truncf %122 : vector<16x1024xf32> to vector<16x1024xbf16>
    %c0_43 = arith.constant 0 : index
    %c0_44 = arith.constant 0 : index
    %124 = vector.load %arg14[%c0_43, %c0_44] : memref<1024x128xbf16, #tpu.memory_space<vmem>>, vector<1024x128xbf16>
    %cst_45 = arith.constant dense<0.000000e+00> : vector<16x128xf32>
    %125 = tpu.matmul %123, %124, %cst_45 {dimension_numbers = #tpu.dot_dimension_numbers<[1], [0], [0], [1], [0, 0, 1, 1], [], []>} : vector<16x1024xbf16>, vector<1024x128xbf16>, vector<16x128xf32> -> vector<16x128xf32>
    %c0_46 = arith.constant 0 : index
    %c0_47 = arith.constant 0 : index
    %126 = vector.load %arg15[%c0_46, %c0_47] : memref<1x128xf32, #tpu.memory_space<vmem>>, vector<1x128xf32>
    %127 = vector.broadcast %126 : vector<1x128xf32> to vector<16x128xf32>
    %128 = arith.addf %125, %127 : vector<16x128xf32>
    %129 = math.tanh %128 : vector<16x128xf32>
    %c0_48 = arith.constant 0 : index
    %c0_49 = arith.constant 0 : index
    %130 = vector.load %arg16[%c0_48, %c0_49] : memref<16x128xf32, #tpu.memory_space<vmem>>, vector<16x128xf32>
    tpu.vector_store %arg16[%c0_48, %c0_49], %129 {strides = array<i32>} : memref<16x128xf32, #tpu.memory_space<vmem>>, vector<16x128xf32>,
    return
  }
  func.func @transform_0(%arg0: i32, %arg1: memref<1xi32, #tpu.memory_space<smem>>) -> (i32, i32) {
    %c0_i32 = arith.constant 0 : i32
    %c0_i32_0 = arith.constant 0 : i32
    return %arg0, %c0_i32 : i32, i32
  }
  func.func @transform_1(%arg0: i32, %arg1: memref<1xi32, #tpu.memory_space<smem>>) -> (i32, i32) {
    %c0_i32 = arith.constant 0 : i32
    %c0_i32_0 = arith.constant 0 : i32
    %c0_i32_1 = arith.constant 0 : i32
    return %c0_i32, %c0_i32_0 : i32, i32
  }
  func.func @transform_2(%arg0: i32, %arg1: memref<1xi32, #tpu.memory_space<smem>>) -> (i32, i32) {
    %c0_i32 = arith.constant 0 : i32
    %c0_i32_0 = arith.constant 0 : i32
    %c0_i32_1 = arith.constant 0 : i32
    return %c0_i32, %c0_i32_0 : i32, i32
  }
  func.func @transform_3(%arg0: i32, %arg1: memref<1xi32, #tpu.memory_space<smem>>) -> (i32, i32) {
    %c0_i32 = arith.constant 0 : i32
    %c0_i32_0 = arith.constant 0 : i32
    %c0_i32_1 = arith.constant 0 : i32
    return %c0_i32, %c0_i32_0 : i32, i32
  }
  func.func @transform_4(%arg0: i32, %arg1: memref<1xi32, #tpu.memory_space<smem>>) -> (i32, i32) {
    %c0_i32 = arith.constant 0 : i32
    %c0_i32_0 = arith.constant 0 : i32
    %c0_i32_1 = arith.constant 0 : i32
    return %c0_i32, %c0_i32_0 : i32, i32
  }
  func.func @transform_5(%arg0: i32, %arg1: memref<1xi32, #tpu.memory_space<smem>>) -> (i32, i32) {
    %c0_i32 = arith.constant 0 : i32
    %c0_i32_0 = arith.constant 0 : i32
    %c0_i32_1 = arith.constant 0 : i32
    return %c0_i32, %c0_i32_0 : i32, i32
  }
  func.func @transform_6(%arg0: i32, %arg1: memref<1xi32, #tpu.memory_space<smem>>) -> (i32, i32) {
    %c0_i32 = arith.constant 0 : i32
    %c0_i32_0 = arith.constant 0 : i32
    %c0_i32_1 = arith.constant 0 : i32
    return %c0_i32, %c0_i32_0 : i32, i32
  }
  func.func @transform_7(%arg0: i32, %arg1: memref<1xi32, #tpu.memory_space<smem>>) -> (i32, i32) {
    %c0_i32 = arith.constant 0 : i32
    %c0_i32_0 = arith.constant 0 : i32
    %c0_i32_1 = arith.constant 0 : i32
    return %c0_i32, %c0_i32_0 : i32, i32
  }
  func.func @transform_8(%arg0: i32, %arg1: memref<1xi32, #tpu.memory_space<smem>>) -> (i32, i32) {
    %c0_i32 = arith.constant 0 : i32
    %c0_i32_0 = arith.constant 0 : i32
    %c0_i32_1 = arith.constant 0 : i32
    return %c0_i32, %c0_i32_0 : i32, i32
  }
  func.func @transform_9(%arg0: i32, %arg1: memref<1xi32, #tpu.memory_space<smem>>) -> (i32, i32) {
    %c0_i32 = arith.constant 0 : i32
    %c0_i32_0 = arith.constant 0 : i32
    %c0_i32_1 = arith.constant 0 : i32
    return %c0_i32, %c0_i32_0 : i32, i32
  }
  func.func @transform_10(%arg0: i32, %arg1: memref<1xi32, #tpu.memory_space<smem>>) -> (i32, i32) {
    %c0_i32 = arith.constant 0 : i32
    %c0_i32_0 = arith.constant 0 : i32
    %c0_i32_1 = arith.constant 0 : i32
    return %c0_i32, %c0_i32_0 : i32, i32
  }
  func.func @transform_11(%arg0: i32, %arg1: memref<1xi32, #tpu.memory_space<smem>>) -> (i32, i32) {
    %c0_i32 = arith.constant 0 : i32
    %c0_i32_0 = arith.constant 0 : i32
    %c0_i32_1 = arith.constant 0 : i32
    return %c0_i32, %c0_i32_0 : i32, i32
  }
  func.func @transform_12(%arg0: i32, %arg1: memref<1xi32, #tpu.memory_space<smem>>) -> (i32, i32) {
    %c0_i32 = arith.constant 0 : i32
    %c0_i32_0 = arith.constant 0 : i32
    %c0_i32_1 = arith.constant 0 : i32
    return %c0_i32, %c0_i32_0 : i32, i32
  }
  func.func @transform_13(%arg0: i32, %arg1: memref<1xi32, #tpu.memory_space<smem>>) -> (i32, i32) {
    %c0_i32 = arith.constant 0 : i32
    %c0_i32_0 = arith.constant 0 : i32
    %c0_i32_1 = arith.constant 0 : i32
    return %c0_i32, %c0_i32_0 : i32, i32
  }
  func.func @transform_14(%arg0: i32, %arg1: memref<1xi32, #tpu.memory_space<smem>>) -> (i32, i32) {
    %c0_i32 = arith.constant 0 : i32
    %c0_i32_0 = arith.constant 0 : i32
    return %arg0, %c0_i32 : i32, i32
  }
}

</mosaic_0001>

<llo_original>
// kernel: tpu_custom_call.1
$region0: #{tpu_custom_call.1}
  #allocation0 [shape = 'u32[]', space=smem, size = 0x4, offset = 0x4, fixed_abs, tag = 'smem constant byte address 0x4 - core index']
  #allocation1 [shape = 'u32[144,128]{1,0:T(1,128)}', space=vmem, size = 0x12000, scoped, tag = 'internal scratch']
  #allocation2 [shape = 's32[1]{0}', space=sflag, size = 0x4, scoped, tag = 'scoped memory for tpu_custom_call.1']
  #allocation3 [shape = 's32[1]{0:T(128)S(6)}', space=smem, size = 0x200, scoped, tag = 'prefetched SMEM operand 0']
  %s0 = inlined_call_operand.<no memory space> [shape: s32[1], index: 0, kind: input, shape index: {}]
  %s1 = inlined_call_operand.hbm [shape: bf16[16,128], index: 1, kind: input, shape index: {}]
  %s2 = inlined_call_operand.hbm [shape: bf16[128,128], index: 2, kind: input, shape index: {}]
  %s3 = inlined_call_operand.hbm [shape: f32[1,128], index: 3, kind: input, shape index: {}]
  %s4 = inlined_call_operand.hbm [shape: bf16[128,256], index: 4, kind: input, shape index: {}]
  %s5 = inlined_call_operand.hbm [shape: f32[1,256], index: 5, kind: input, shape index: {}]
  %s6 = inlined_call_operand.hbm [shape: f32[1,256], index: 6, kind: input, shape index: {}]
  %s7 = inlined_call_operand.hbm [shape: bf16[256,512], index: 7, kind: input, shape index: {}]
  %s8 = inlined_call_operand.hbm [shape: f32[1,512], index: 8, kind: input, shape index: {}]
  %s9 = inlined_call_operand.hbm [shape: f32[1,512], index: 9, kind: input, shape index: {}]
  %s10 = inlined_call_operand.hbm [shape: bf16[512,1024], index: 10, kind: input, shape index: {}]
  %s11 = inlined_call_operand.vmem [shape: f32[1,1024], index: 11, kind: input, shape index: {}]
  %s12 = inlined_call_operand.vmem [shape: f32[1,1024], index: 12, kind: input, shape index: {}]
  %s13 = inlined_call_operand.hbm [shape: bf16[1024,128], index: 13, kind: input, shape index: {}]
  %s14 = inlined_call_operand.vmem [shape: f32[1,128], index: 14, kind: input, shape index: {}]
  %s15 = inlined_call_operand.hbm [shape: f32[16,128], index: 15, kind: output, shape index: {}]
  %s16 = sld [smem:[#allocation0]]
  $region110: #{tpu_custom_call.1} parent=0
    _
  %s18 = ssub.s32 1, %s16
  %s19 = scalar_select 0, %s18, %s16
  %20 = sst [smem:[#allocation3]] %s0
  $region1: #{tpu_custom_call.1} parent=0
    #allocation4 [shape = 'u8[4096]{0}', space=vmem, size = 0x1000, scoped, tag = 'input window, operand 1, single buffered']
    #allocation5 [shape = 's32[1]{0}', space=sflag, size = 0x4, scoped, tag = 'scoped memory for tpu_custom_call.1']
    #allocation6 [shape = 's32[1]{0}', space=sflag, size = 0x4, scoped, tag = 'scoped memory for tpu_custom_call.1']
    #allocation7 [shape = 'u8[32768]{0}', space=vmem, size = 0x8000, scoped, tag = 'input window, operand 2, single buffered']
    #allocation8 [shape = 's32[1]{0}', space=sflag, size = 0x4, scoped, tag = 'scoped memory for tpu_custom_call.1']
    #allocation9 [shape = 'u8[512]{0}', space=vmem, size = 0x400, scoped, tag = 'input window, operand 3, single buffered']
    #allocation10 [shape = 'u8[65536]{0}', space=vmem, size = 0x10000, scoped, tag = 'input window, operand 4, single buffered']
    #allocation11 [shape = 's32[1]{0}', space=sflag, size = 0x4, scoped, tag = 'scoped memory for tpu_custom_call.1']
    #allocation12 [shape = 'u8[1024]{0}', space=vmem, size = 0x400, scoped, tag = 'input window, operand 5, single buffered']
    #allocation13 [shape = 'u8[1024]{0}', space=vmem, size = 0x400, scoped, tag = 'input window, operand 6, single buffered']
    #allocation14 [shape = 's32[1]{0}', space=sflag, size = 0x4, scoped, tag = 'scoped memory for tpu_custom_call.1']
    #allocation15 [shape = 'u8[262144]{0}', space=vmem, size = 0x40000, scoped, tag = 'input window, operand 7, single buffered']
    #allocation16 [shape = 'u8[2048]{0}', space=vmem, size = 0x800, scoped, tag = 'input window, operand 8, single buffered']
    #allocation17 [shape = 's32[1]{0}', space=sflag, size = 0x4, scoped, tag = 'scoped memory for tpu_custom_call.1']
    #allocation18 [shape = 'u8[2048]{0}', space=vmem, size = 0x800, scoped, tag = 'input window, operand 9, single buffered']
    #allocation19 [shape = 'u8[1048576]{0}', space=vmem, size = 0x100000, scoped, tag = 'input window, operand 10, single buffered']
    #allocation20 [shape = 's32[1]{0}', space=sflag, size = 0x4, scoped, tag = 'scoped memory for tpu_custom_call.1']
    #allocation21 [shape = 'u8[262144]{0}', space=vmem, size = 0x40000, scoped, tag = 'input window, operand 13, single buffered']
    #allocation22 [shape = 'u8[8192]{0}', space=vmem, size = 0x2000, scoped, tag = 'output window, operand 0, single buffered']
    %21 = vsyncpa [#allocation5], 0
    %22 = vsyncpa [#allocation8], 0
    %23 = vsyncpa [#allocation11], 0
    %24 = vsyncpa [#allocation14], 0
    %25 = vsyncpa [#allocation17], 0
    %26 = vsyncpa [#allocation20], 0
    %27 = vsyncpa [#allocation6], 0
    // Predicated region
    $region2: #{tpu_custom_call.1} parent=1 // pred_check
      _
    $region3: #{tpu_custom_call.1} parent=1 // pred_check_branch
      %29 = sbr.rel (0) target = $region5
    $region4: #{tpu_custom_call.1} parent=1 // pred_region
      %s31 = ssub.s32 128, 128
      %32 = vsyncadd [#allocation5], %s31
      %s33 = sshll.u32 [#allocation4], 4
      %s34 = int_to_ptr.vmem [resolvable:$true] %s33
      %39 = dma.hbm_to_vmem [thread:$0]  %s1, 128, %s34, [#allocation5], 64, 64, 4
    $region5: #{tpu_custom_call.1} parent=1 // pred_fallthru
      _
    // Predicated region
    $region6: #{tpu_custom_call.1} parent=1 // pred_check
      _
    $region7: #{tpu_custom_call.1} parent=1 // pred_check_branch
      %41 = sbr.rel (0) target = $region9
    $region8: #{tpu_custom_call.1} parent=1 // pred_region
      %s43 = ssub.s32 1024, 1024
      %44 = vsyncadd [#allocation8], %s43
      %s45 = sshll.u32 [#allocation7], 4
      %s46 = int_to_ptr.vmem [resolvable:$true] %s45
      %51 = dma.hbm_to_vmem [thread:$0]  %s2, 1024, %s46, [#allocation8], 64, 64, 4
    $region9: #{tpu_custom_call.1} parent=1 // pred_fallthru
      _
    // Predicated region
    $region10: #{tpu_custom_call.1} parent=1 // pred_check
      _
    $region11: #{tpu_custom_call.1} parent=1 // pred_check_branch
      %53 = sbr.rel (0) target = $region13
    $region12: #{tpu_custom_call.1} parent=1 // pred_region
      %s55 = ssub.s32 16, 16
      %56 = vsyncadd [#allocation8], %s55
      %s58 = sshll.u32 [#allocation9], 4
      %s59 = int_to_ptr.vmem [resolvable:$true] %s58
      %61 = dma.hbm_to_vmem [thread:$0]  %s3, 16, %s59, [#allocation8]
    $region13: #{tpu_custom_call.1} parent=1 // pred_fallthru
      _
    // Predicated region
    $region14: #{tpu_custom_call.1} parent=1 // pred_check
      _
    $region15: #{tpu_custom_call.1} parent=1 // pred_check_branch
      %63 = sbr.rel (0) target = $region17
    $region16: #{tpu_custom_call.1} parent=1 // pred_region
      %s65 = ssub.s32 2048, 2048
      %66 = vsyncadd [#allocation11], %s65
      %s67 = sshll.u32 [#allocation10], 4
      %s68 = int_to_ptr.vmem [resolvable:$true] %s67
      %73 = dma.hbm_to_vmem [thread:$0]  %s4, 2048, %s68, [#allocation11], 128, 128, 8
    $region17: #{tpu_custom_call.1} parent=1 // pred_fallthru
      _
    // Predicated region
    $region18: #{tpu_custom_call.1} parent=1 // pred_check
      _
    $region19: #{tpu_custom_call.1} parent=1 // pred_check_branch
      %75 = sbr.rel (0) target = $region21
    $region20: #{tpu_custom_call.1} parent=1 // pred_region
      %s77 = ssub.s32 32, 32
      %78 = vsyncadd [#allocation11], %s77
      %s80 = sshll.u32 [#allocation12], 4
      %s81 = int_to_ptr.vmem [resolvable:$true] %s80
      %83 = dma.hbm_to_vmem [thread:$0]  %s5, 32, %s81, [#allocation11]
    $region21: #{tpu_custom_call.1} parent=1 // pred_fallthru
      _
    // Predicated region
    $region22: #{tpu_custom_call.1} parent=1 // pred_check
      _
    $region23: #{tpu_custom_call.1} parent=1 // pred_check_branch
      %85 = sbr.rel (0) target = $region25
    $region24: #{tpu_custom_call.1} parent=1 // pred_region
      %s87 = ssub.s32 32, 32
      %88 = vsyncadd [#allocation14], %s87
      %s90 = sshll.u32 [#allocation13], 4
      %s91 = int_to_ptr.vmem [resolvable:$true] %s90
      %93 = dma.hbm_to_vmem [thread:$0]  %s6, 32, %s91, [#allocation14]
    $region25: #{tpu_custom_call.1} parent=1 // pred_fallthru
      _
    // Predicated region
    $region26: #{tpu_custom_call.1} parent=1 // pred_check
      _
    $region27: #{tpu_custom_call.1} parent=1 // pred_check_branch
      %95 = sbr.rel (0) target = $region29
    $region28: #{tpu_custom_call.1} parent=1 // pred_region
      %s97 = ssub.s32 8192, 8192
      %98 = vsyncadd [#allocation14], %s97
      %s99 = sshll.u32 [#allocation15], 4
      %s100 = int_to_ptr.vmem [resolvable:$true] %s99
      %105 = dma.hbm_to_vmem [thread:$0]  %s7, 8192, %s100, [#allocation14], 256, 256, 16
    $region29: #{tpu_custom_call.1} parent=1 // pred_fallthru
      _
    // Predicated region
    $region30: #{tpu_custom_call.1} parent=1 // pred_check
      _
    $region31: #{tpu_custom_call.1} parent=1 // pred_check_branch
      %107 = sbr.rel (0) target = $region33
    $region32: #{tpu_custom_call.1} parent=1 // pred_region
      %s109 = ssub.s32 64, 64
      %110 = vsyncadd [#allocation17], %s109
      %s112 = sshll.u32 [#allocation16], 4
      %s113 = int_to_ptr.vmem [resolvable:$true] %s112
      %115 = dma.hbm_to_vmem [thread:$0]  %s8, 64, %s113, [#allocation17]
    $region33: #{tpu_custom_call.1} parent=1 // pred_fallthru
      _
    // Predicated region
    $region34: #{tpu_custom_call.1} parent=1 // pred_check
      _
    $region35: #{tpu_custom_call.1} parent=1 // pred_check_branch
      %117 = sbr.rel (0) target = $region37
    $region36: #{tpu_custom_call.1} parent=1 // pred_region
      %s119 = ssub.s32 64, 64
      %120 = vsyncadd [#allocation17], %s119
      %s122 = sshll.u32 [#allocation18], 4
      %s123 = int_to_ptr.vmem [resolvable:$true] %s122
      %125 = dma.hbm_to_vmem [thread:$0]  %s9, 64, %s123, [#allocation17]
    $region37: #{tpu_custom_call.1} parent=1 // pred_fallthru
      _
    // Predicated region
    $region38: #{tpu_custom_call.1} parent=1 // pred_check
      _
    $region39: #{tpu_custom_call.1} parent=1 // pred_check_branch
      %127 = sbr.rel (0) target = $region41
    $region40: #{tpu_custom_call.1} parent=1 // pred_region
      %s129 = ssub.s32 32768, 32768
      %130 = vsyncadd [#allocation20], %s129
      %s131 = sshll.u32 [#allocation19], 4
      %s132 = int_to_ptr.vmem [resolvable:$true] %s131
      %137 = dma.hbm_to_vmem [thread:$0]  %s10, 32768, %s132, [#allocation20], 512, 512, 32
    $region41: #{tpu_custom_call.1} parent=1 // pred_fallthru
      _
    // Predicated region
    $region42: #{tpu_custom_call.1} parent=1 // pred_check
      _
    $region43: #{tpu_custom_call.1} parent=1 // pred_check_branch
      %139 = sbr.rel (0) target = $region45
    $region44: #{tpu_custom_call.1} parent=1 // pred_region
      _
    $region45: #{tpu_custom_call.1} parent=1 // pred_fallthru
      _
    // Predicated region
    $region46: #{tpu_custom_call.1} parent=1 // pred_check
      _
    $region47: #{tpu_custom_call.1} parent=1 // pred_check_branch
      %141 = sbr.rel (0) target = $region49
    $region48: #{tpu_custom_call.1} parent=1 // pred_region
      _
    $region49: #{tpu_custom_call.1} parent=1 // pred_fallthru
      _
    // Predicated region
    $region50: #{tpu_custom_call.1} parent=1 // pred_check
      _
    $region51: #{tpu_custom_call.1} parent=1 // pred_check_branch
      %143 = sbr.rel (0) target = $region53
    $region52: #{tpu_custom_call.1} parent=1 // pred_region
      %s145 = ssub.s32 8192, 8192
      %146 = vsyncadd [#allocation20], %s145
      %s147 = sshll.u32 [#allocation21], 4
      %s148 = int_to_ptr.vmem [resolvable:$true] %s147
      %153 = dma.hbm_to_vmem [thread:$0]  %s13, 8192, %s148, [#allocation20], 64, 64, 4
    $region53: #{tpu_custom_call.1} parent=1 // pred_fallthru
      _
    // Predicated region
    $region54: #{tpu_custom_call.1} parent=1 // pred_check
      _
    $region55: #{tpu_custom_call.1} parent=1 // pred_check_branch
      %155 = sbr.rel (0) target = $region57
    $region56: #{tpu_custom_call.1} parent=1 // pred_region
      _
    $region57: #{tpu_custom_call.1} parent=1 // pred_fallthru
      _
    // Predicated region
    $region58: #{tpu_custom_call.1} parent=1 // pred_check
      _
    $region59: #{tpu_custom_call.1} parent=1 // pred_check_branch
      %157 = sbr.rel (0) target = $region61
    $region60: #{tpu_custom_call.1} parent=1 // pred_region
      %158 = dma.done [#allocation5], 128
    $region61: #{tpu_custom_call.1} parent=1 // pred_fallthru
      _
    // Predicated region
    $region62: #{tpu_custom_call.1} parent=1 // pred_check
      _
    $region63: #{tpu_custom_call.1} parent=1 // pred_check_branch
      %160 = sbr.rel (0) target = $region65
    $region64: #{tpu_custom_call.1} parent=1 // pred_region
      %161 = dma.done [#allocation8], 1024
    $region65: #{tpu_custom_call.1} parent=1 // pred_fallthru
      _
    // Predicated region
    $region66: #{tpu_custom_call.1} parent=1 // pred_check
      _
    $region67: #{tpu_custom_call.1} parent=1 // pred_check_branch
      %163 = sbr.rel (0) target = $region69
    $region68: #{tpu_custom_call.1} parent=1 // pred_region
      %164 = dma.done [#allocation8], 16
    $region69: #{tpu_custom_call.1} parent=1 // pred_fallthru
      _
    // Predicated region
    $region70: #{tpu_custom_call.1} parent=1 // pred_check
      _
    $region71: #{tpu_custom_call.1} parent=1 // pred_check_branch
      %166 = sbr.rel (0) target = $region73
    $region72: #{tpu_custom_call.1} parent=1 // pred_region
      %167 = dma.done [#allocation11], 2048
    $region73: #{tpu_custom_call.1} parent=1 // pred_fallthru
      _
    // Predicated region
    $region74: #{tpu_custom_call.1} parent=1 // pred_check
      _
    $region75: #{tpu_custom_call.1} parent=1 // pred_check_branch
      %169 = sbr.rel (0) target = $region77
    $region76: #{tpu_custom_call.1} parent=1 // pred_region
      %170 = dma.done [#allocation11], 32
    $region77: #{tpu_custom_call.1} parent=1 // pred_fallthru
      _
    // Predicated region
    $region78: #{tpu_custom_call.1} parent=1 // pred_check
      _
    $region79: #{tpu_custom_call.1} parent=1 // pred_check_branch
      %172 = sbr.rel (0) target = $region81
    $region80: #{tpu_custom_call.1} parent=1 // pred_region
      %173 = dma.done [#allocation14], 32
    $region81: #{tpu_custom_call.1} parent=1 // pred_fallthru
      _
    // Predicated region
    $region82: #{tpu_custom_call.1} parent=1 // pred_check
      _
    $region83: #{tpu_custom_call.1} parent=1 // pred_check_branch
      %175 = sbr.rel (0) target = $region85
    $region84: #{tpu_custom_call.1} parent=1 // pred_region
      %176 = dma.done [#allocation14], 8192
    $region85: #{tpu_custom_call.1} parent=1 // pred_fallthru
      _
    // Predicated region
    $region86: #{tpu_custom_call.1} parent=1 // pred_check
      _
    $region87: #{tpu_custom_call.1} parent=1 // pred_check_branch
      %178 = sbr.rel (0) target = $region89
    $region88: #{tpu_custom_call.1} parent=1 // pred_region
      %179 = dma.done [#allocation17], 64
    $region89: #{tpu_custom_call.1} parent=1 // pred_fallthru
      _
    // Predicated region
    $region90: #{tpu_custom_call.1} parent=1 // pred_check
      _
    $region91: #{tpu_custom_call.1} parent=1 // pred_check_branch
      %181 = sbr.rel (0) target = $region93
    $region92: #{tpu_custom_call.1} parent=1 // pred_region
      %182 = dma.done [#allocation17], 64
    $region93: #{tpu_custom_call.1} parent=1 // pred_fallthru
      _
    // Predicated region
    $region94: #{tpu_custom_call.1} parent=1 // pred_check
      _
    $region95: #{tpu_custom_call.1} parent=1 // pred_check_branch
      %184 = sbr.rel (0) target = $region97
    $region96: #{tpu_custom_call.1} parent=1 // pred_region
      %185 = dma.done [#allocation20], 32768
    $region97: #{tpu_custom_call.1} parent=1 // pred_fallthru
      _
    // Predicated region
    $region98: #{tpu_custom_call.1} parent=1 // pred_check
      _
    $region99: #{tpu_custom_call.1} parent=1 // pred_check_branch
      %187 = sbr.rel (0) target = $region101
    $region100: #{tpu_custom_call.1} parent=1 // pred_region
      %188 = dma.done [#allocation20], 8192
    $region101: #{tpu_custom_call.1} parent=1 // pred_fallthru
      _
    %v190 = vld [vmem:[#allocation4] sm:$0xf]
    %v191 = vld [vmem:[#allocation4 + $0x4] sm:$0xf]
    %v192 = vld [vmem:[#allocation7] sm:$0xf]
    %v193 = vld [vmem:[#allocation7 + $0x4] sm:$0xf]
    %v194 = vld [vmem:[#allocation7 + $0x8] sm:$0xf]
    %v195 = vld [vmem:[#allocation7 + $0xc] sm:$0xf]
    %v196 = vld [vmem:[#allocation7 + $0x10] sm:$0xf]
    %v197 = vld [vmem:[#allocation7 + $0x14] sm:$0xf]
    %v198 = vld [vmem:[#allocation7 + $0x18] sm:$0xf]
    %v199 = vld [vmem:[#allocation7 + $0x1c] sm:$0xf]
    %v200 = vld [vmem:[#allocation7 + $0x20] sm:$0xf]
    %v201 = vld [vmem:[#allocation7 + $0x24] sm:$0xf]
    %v202 = vld [vmem:[#allocation7 + $0x28] sm:$0xf]
    %v203 = vld [vmem:[#allocation7 + $0x2c] sm:$0xf]
    %v204 = vld [vmem:[#allocation7 + $0x30] sm:$0xf]
    %v205 = vld [vmem:[#allocation7 + $0x34] sm:$0xf]
    %v206 = vld [vmem:[#allocation7 + $0x38] sm:$0xf]
    %v207 = vld [vmem:[#allocation7 + $0x3c] sm:$0xf]
    %v208 = vld [vmem:[#allocation9] sm:$0x1]
    %v210 = vlaneseq
    %v211 = vshrl.u32 %v210, 7
    %v212 = vsub.s32 0, %v211
    %v213 = vrot.slane %v208, %v212
    %v217 = vunpack.c.l.b16 %v190
    %v218 = vunpack.c.l.b16 %v191
    %v219 = vpack.c.b16 %v218, %v217
    %v237 = vunpack.c.l.b16 %v192
    %v238 = vunpack.c.l.b16 %v193
    %v239 = vunpack.c.l.b16 %v194
    %v240 = vunpack.c.l.b16 %v195
    %v241 = vunpack.c.l.b16 %v196
    %v242 = vunpack.c.l.b16 %v197
    %v243 = vunpack.c.l.b16 %v198
    %v244 = vunpack.c.l.b16 %v199
    %v245 = vunpack.c.l.b16 %v200
    %v246 = vunpack.c.l.b16 %v201
    %v247 = vunpack.c.l.b16 %v202
    %v248 = vunpack.c.l.b16 %v203
    %v249 = vunpack.c.l.b16 %v204
    %v250 = vunpack.c.l.b16 %v205
    %v251 = vunpack.c.l.b16 %v206
    %v252 = vunpack.c.l.b16 %v207
    %v253 = vpack.c.b16 %v238, %v237
    %v254 = vpack.c.b16 %v240, %v239
    %v255 = vpack.c.b16 %v242, %v241
    %v256 = vpack.c.b16 %v244, %v243
    %v257 = vpack.c.b16 %v246, %v245
    %v258 = vpack.c.b16 %v248, %v247
    %v259 = vpack.c.b16 %v250, %v249
    %v260 = vpack.c.b16 %v252, %v251
    %269 = vmatprep.subr.bf16.mxu0 0
    %270 = vmatpush1.bf16.msra.mxu0 %v260
    %271 = vmatprep.subr.bf16.mxu0 0
    %272 = vmatpush1.bf16.msra.mxu0 %v259
    %273 = vmatprep.subr.bf16.mxu0 0
    %274 = vmatpush1.bf16.msra.mxu0 %v258
    %275 = vmatprep.subr.bf16.mxu0 0
    %276 = vmatpush1.bf16.msra.mxu0 %v257
    %277 = vmatprep.subr.bf16.mxu0 0
    %278 = vmatpush1.bf16.msra.mxu0 %v256
    %279 = vmatprep.subr.bf16.mxu0 0
    %280 = vmatpush1.bf16.msra.mxu0 %v255
    %281 = vmatprep.subr.bf16.mxu0 0
    %282 = vmatpush1.bf16.msra.mxu0 %v254
    %283 = vmatprep.subr.bf16.mxu0 0
    %284 = vmatpush1.bf16.msra.mxu0 %v253
    %285 = vmatprep.subr.bf16.mxu0 0
    %286 = vmatpush2.bf16.msra.mxu0 0
    %287 = vmatprep.subr.bf16.mxu0 0
    %288 = vmatpush2.bf16.msra.mxu0 0
    %289 = vmatprep.subr.bf16.mxu0 0
    %290 = vmatpush2.bf16.msra.mxu0 0
    %291 = vmatprep.subr.bf16.mxu0 0
    %292 = vmatpush2.bf16.msra.mxu0 0
    %293 = vmatprep.subr.bf16.mxu0 0
    %294 = vmatpush2.bf16.msra.mxu0 0
    %295 = vmatprep.subr.bf16.mxu0 0
    %296 = vmatpush2.bf16.msra.mxu0 0
    %297 = vmatprep.subr.bf16.mxu0 0
    %298 = vmatpush2.bf16.msra.mxu0 0
    %299 = vmatprep.subr.bf16.mxu0 0
    %300 = vmatpush2.bf16.msra.mxu0 0
    %301 = vmatprep.mubr.bf16.mxu0 0
    %302 = vmatmul.mubr.bf16.gmra.mxu0 %v219
    %v303 = vpop.f32.mrf.mxu0
    %v304 = vadd.f32 %v213, %v303
    %v305 = vpop.f32.mrf.mxu0
    %v306 = vpop.f32.mrf.mxu0
    %v307 = vadd.f32 %v213, %v306
    %v308 = vpop.f32.mrf.mxu0
    %309 = vdwg.mxu0
    %v310 = vmul.f32 %v304, 0.2
    %v311 = vmul.f32 %v307, 0.2
    %v312 = vmax.f32 %v304, %v310
    %v313 = vmax.f32 %v307, %v311
    %s314 = smul.u32 0, 16
    %v315 = vlaneseq
    %v316 = vshrl.u32 %v315, 7
    %v317 = vadd.s32 %v316, 8
    %v318 = vstv %s314
    %v319 = vadd.s32 %v318, %v316
    %v320 = vadd.s32 %v318, %v317
    %s321 = sld [smem:[#allocation3]]
    %v322 = vstv %s321
    %vm323 = vcmp.lt.s32.totalorder %v319, %v322
    %vm324 = vcmp.lt.s32.totalorder %v320, %v322
    %v325 = vsel %vm323, 1, 0
    %v326 = vsel %vm324, 1, 0
    %v327 = vcvt.s32.f32 %v325
    %v328 = vcvt.s32.f32 %v326
    %s329 = ssub.s32 %s321, %s314
    %p330 = scmp.gt.s32.totalorder %s329, 1
    %s331 = scalar_select %p330, %s329, 1
    %p332 = scmp.lt.s32.totalorder %s331, 16
    %s333 = scalar_select %p332, %s331, 16
    %s334 = scvt.s32.f32 %s333
    %v335 = vstv %s334
    %v336 = vrcp.pop %v335
    %s337 = vtos %v336
    %v338 = vpack.c.bf16 %v313, %v312
    %v339 = vld [vmem:[#allocation10] sm:$0xff]
    %v340 = vld [vmem:[#allocation10 + $0x8] sm:$0xff]
    %v341 = vld [vmem:[#allocation10 + $0x10] sm:$0xff]
    %v342 = vld [vmem:[#allocation10 + $0x18] sm:$0xff]
    %v343 = vld [vmem:[#allocation10 + $0x20] sm:$0xff]
    %v344 = vld [vmem:[#allocation10 + $0x28] sm:$0xff]
    %v345 = vld [vmem:[#allocation10 + $0x30] sm:$0xff]
    %v346 = vld [vmem:[#allocation10 + $0x38] sm:$0xff]
    %v347 = vld [vmem:[#allocation10 + $0x40] sm:$0xff]
    %v348 = vld [vmem:[#allocation10 + $0x48] sm:$0xff]
    %v349 = vld [vmem:[#allocation10 + $0x50] sm:$0xff]
    %v350 = vld [vmem:[#allocation10 + $0x58] sm:$0xff]
    %v351 = vld [vmem:[#allocation10 + $0x60] sm:$0xff]
    %v352 = vld [vmem:[#allocation10 + $0x68] sm:$0xff]
    %v353 = vld [vmem:[#allocation10 + $0x70] sm:$0xff]
    %v354 = vld [vmem:[#allocation10 + $0x78] sm:$0xff]
    %v371 = vunpack.c.l.b16 %v339
    %v372 = vunpack.c.h.b16 %v339
    %v373 = vunpack.c.l.b16 %v340
    %v374 = vunpack.c.h.b16 %v340
    %v375 = vunpack.c.l.b16 %v341
    %v376 = vunpack.c.h.b16 %v341
    %v377 = vunpack.c.l.b16 %v342
    %v378 = vunpack.c.h.b16 %v342
    %v379 = vunpack.c.l.b16 %v343
    %v380 = vunpack.c.h.b16 %v343
    %v381 = vunpack.c.l.b16 %v344
    %v382 = vunpack.c.h.b16 %v344
    %v383 = vunpack.c.l.b16 %v345
    %v384 = vunpack.c.h.b16 %v345
    %v385 = vunpack.c.l.b16 %v346
    %v386 = vunpack.c.h.b16 %v346
    %v387 = vunpack.c.l.b16 %v347
    %v388 = vunpack.c.h.b16 %v347
    %v389 = vunpack.c.l.b16 %v348
    %v390 = vunpack.c.h.b16 %v348
    %v391 = vunpack.c.l.b16 %v349
    %v392 = vunpack.c.h.b16 %v349
    %v393 = vunpack.c.l.b16 %v350
    %v394 = vunpack.c.h.b16 %v350
    %v395 = vunpack.c.l.b16 %v351
    %v396 = vunpack.c.h.b16 %v351
    %v397 = vunpack.c.l.b16 %v352
    %v398 = vunpack.c.h.b16 %v352
    %v399 = vunpack.c.l.b16 %v353
    %v400 = vunpack.c.h.b16 %v353
    %v401 = vunpack.c.l.b16 %v354
    %v402 = vunpack.c.h.b16 %v354
    %v403 = vpack.c.b16 %v373, %v371
    %v404 = vpack.c.b16 %v374, %v372
    %v405 = vpack.c.b16 %v377, %v375
    %v406 = vpack.c.b16 %v378, %v376
    %v407 = vpack.c.b16 %v381, %v379
    %v408 = vpack.c.b16 %v382, %v380
    %v409 = vpack.c.b16 %v385, %v383
    %v410 = vpack.c.b16 %v386, %v384
    %v411 = vpack.c.b16 %v389, %v387
    %v412 = vpack.c.b16 %v390, %v388
    %v413 = vpack.c.b16 %v393, %v391
    %v414 = vpack.c.b16 %v394, %v392
    %v415 = vpack.c.b16 %v397, %v395
    %v416 = vpack.c.b16 %v398, %v396
    %v417 = vpack.c.b16 %v401, %v399
    %v418 = vpack.c.b16 %v402, %v400
    %435 = vmatprep.subr.bf16.mxu0 %v418
    %436 = vmatpush1.bf16.msra.mxu0 %v417
    %437 = vmatprep.subr.bf16.mxu0 %v416
    %438 = vmatpush1.bf16.msra.mxu0 %v415
    %439 = vmatprep.subr.bf16.mxu0 %v414
    %440 = vmatpush1.bf16.msra.mxu0 %v413
    %441 = vmatprep.subr.bf16.mxu0 %v412
    %442 = vmatpush1.bf16.msra.mxu0 %v411
    %443 = vmatprep.subr.bf16.mxu0 %v410
    %444 = vmatpush1.bf16.msra.mxu0 %v409
    %445 = vmatprep.subr.bf16.mxu0 %v408
    %446 = vmatpush1.bf16.msra.mxu0 %v407
    %447 = vmatprep.subr.bf16.mxu0 %v406
    %448 = vmatpush1.bf16.msra.mxu0 %v405
    %449 = vmatprep.subr.bf16.mxu0 %v404
    %450 = vmatpush1.bf16.msra.mxu0 %v403
    %451 = vmatprep.subr.bf16.mxu0 0
    %452 = vmatpush2.bf16.msra.mxu0 0
    %453 = vmatprep.subr.bf16.mxu0 0
    %454 = vmatpush2.bf16.msra.mxu0 0
    %455 = vmatprep.subr.bf16.mxu0 0
    %456 = vmatpush2.bf16.msra.mxu0 0
    %457 = vmatprep.subr.bf16.mxu0 0
    %458 = vmatpush2.bf16.msra.mxu0 0
    %459 = vmatprep.subr.bf16.mxu0 0
    %460 = vmatpush2.bf16.msra.mxu0 0
    %461 = vmatprep.subr.bf16.mxu0 0
    %462 = vmatpush2.bf16.msra.mxu0 0
    %463 = vmatprep.subr.bf16.mxu0 0
    %464 = vmatpush2.bf16.msra.mxu0 0
    %465 = vmatprep.subr.bf16.mxu0 0
    %466 = vmatpush2.bf16.msra.mxu0 0
    %467 = vmatprep.mubr.bf16.mxu0 0
    %468 = vmatmul.mubr.bf16.gmra.mxu0 %v338
    %v469 = vpop.f32.mrf.mxu0
    %v470 = vadd.f32 0.0, %v469
    %v471 = vpop.f32.mrf.mxu0
    %v472 = vadd.f32 0.0, %v471
    %v473 = vpop.f32.mrf.mxu0
    %v474 = vadd.f32 0.0, %v473
    %v475 = vpop.f32.mrf.mxu0
    %v476 = vadd.f32 0.0, %v475
    %477 = vdwg.mxu0
    %v478 = vmul.f32 %v470, %v327
    %v479 = vmul.f32 %v472, %v327
    %v480 = vmul.f32 %v474, %v328
    %v481 = vmul.f32 %v476, %v328
    %v482 = vadd.f32 %v478, %v480
    %v483 = vrot.slane %v482, 4
    %v484 = vadd.f32 %v482, %v483
    %v485 = vrot.slane %v484, 2
    %v486 = vadd.f32 %v484, %v485
    %v487 = vrot.slane %v486, 1
    %v488 = vadd.f32 %v486, %v487
    %v489 = vadd.f32 %v479, %v481
    %v490 = vrot.slane %v489, 4
    %v491 = vadd.f32 %v489, %v490
    %v492 = vrot.slane %v491, 2
    %v493 = vadd.f32 %v491, %v492
    %v494 = vrot.slane %v493, 1
    %v495 = vadd.f32 %v493, %v494
    %v496 = vstv %s337
    %v497 = vmul.f32 %v488, %v496
    %v498 = vmul.f32 %v495, %v496
    %v499 = vsub.f32 %v470, %v497
    %v500 = vsub.f32 %v472, %v498
    %v501 = vsub.f32 %v474, %v497
    %v502 = vsub.f32 %v476, %v498
    %v503 = vmul.f32 %v499, %v327
    %v504 = vmul.f32 %v500, %v327
    %v505 = vmul.f32 %v501, %v328
    %v506 = vmul.f32 %v502, %v328
    %v507 = vmul.f32 %v503, %v503
    %v508 = vmul.f32 %v504, %v504
    %v509 = vmul.f32 %v505, %v505
    %v510 = vmul.f32 %v506, %v506
    %v511 = vadd.f32 %v507, %v509
    %v512 = vrot.slane %v511, 4
    %v513 = vadd.f32 %v511, %v512
    %v514 = vrot.slane %v513, 2
    %v515 = vadd.f32 %v513, %v514
    %v516 = vrot.slane %v515, 1
    %v517 = vadd.f32 %v515, %v516
    %v518 = vadd.f32 %v508, %v510
    %v519 = vrot.slane %v518, 4
    %v520 = vadd.f32 %v518, %v519
    %v521 = vrot.slane %v520, 2
    %v522 = vadd.f32 %v520, %v521
    %v523 = vrot.slane %v522, 1
    %v524 = vadd.f32 %v522, %v523
    %v525 = vmul.f32 %v517, %v496
    %v526 = vmul.f32 %v524, %v496
    %v527 = vld [vmem:[#allocation12] sm:$0x3]
    %v528 = vadd.f32 %v525, 0.8
    %v529 = vadd.f32 %v526, 0.8
    %v530 = vrsqrt.pop %v528
    %v531 = vrsqrt.pop %v529
    %v534 = vcombine.low %v530, %v531
    %v536 = vunpack.c.l.s4 1966171168
    %v537 = vunpack.c.0.s8 %v536
    %v538 = vlaneseq
    %v539 = vshrl.u32 %v538, 7
    %v540 = vsub.s32 %v537, %v539
    %v541 = vrot.slane %v534, %v540
    %v543 = vunpack.c.l.s4 1966171168
    %v544 = vunpack.c.0.s8 %v543
    %v545 = vlaneseq
    %v546 = vshrl.u32 %v545, 7
    %v547 = vsub.s32 %v544, %v546
    %v548 = vrot.slane %v541, %v547
    %v550 = vmul.f32 %v527, %v548
    %v551 = vld [vmem:[#allocation13] sm:$0x3]
    %v553 = vlaneseq
    %v554 = vshrl.u32 %v553, 7
    %v555 = vsub.s32 0, %v554
    %v556 = vrot.slane %v550, %v555
    %v557 = vlaneseq
    %v558 = vshrl.u32 %v557, 7
    %v559 = vsub.s32 1, %v558
    %v560 = vrot.slane %v550, %v559
    %v563 = vmul.f32 %v497, %v556
    %v564 = vmul.f32 %v498, %v560
    %v567 = vcombine.low %v563, %v564
    %v569 = vunpack.c.l.s4 1966171168
    %v570 = vunpack.c.0.s8 %v569
    %v571 = vlaneseq
    %v572 = vshrl.u32 %v571, 7
    %v573 = vsub.s32 %v570, %v572
    %v574 = vrot.slane %v567, %v573
    %v576 = vunpack.c.l.s4 1966171168
    %v577 = vunpack.c.0.s8 %v576
    %v578 = vlaneseq
    %v579 = vshrl.u32 %v578, 7
    %v580 = vsub.s32 %v577, %v579
    %v581 = vrot.slane %v574, %v580
    %v583 = vsub.f32 %v551, %v581
    %v584 = vmul.f32 %v470, %v556
    %v585 = vmul.f32 %v472, %v560
    %v586 = vmul.f32 %v474, %v556
    %v587 = vmul.f32 %v476, %v560
    %v589 = vlaneseq
    %v590 = vshrl.u32 %v589, 7
    %v591 = vsub.s32 0, %v590
    %v592 = vrot.slane %v583, %v591
    %v593 = vlaneseq
    %v594 = vshrl.u32 %v593, 7
    %v595 = vsub.s32 1, %v594
    %v596 = vrot.slane %v583, %v595
    %v599 = vadd.f32 %v584, %v592
    %v600 = vadd.f32 %v585, %v596
    %v601 = vadd.f32 %v586, %v592
    %v602 = vadd.f32 %v587, %v596
    %v603 = vmul.f32 %v599, 0.2
    %v604 = vmul.f32 %v600, 0.2
    %v605 = vmul.f32 %v601, 0.2
    %v606 = vmul.f32 %v602, 0.2
    %v607 = vmax.f32 %v599, %v603
    %v608 = vmax.f32 %v600, %v604
    %v609 = vmax.f32 %v601, %v605
    %v610 = vmax.f32 %v602, %v606
    %v611 = vpack.c.bf16 %v609, %v607
    %v612 = vpack.c.bf16 %v610, %v608
    %v613 = vld [vmem:[#allocation15] sm:$0xff]
    %v614 = vld [vmem:[#allocation15 + $0x8] sm:$0xff]
    %v615 = vld [vmem:[#allocation15 + $0x10] sm:$0xff]
    %v616 = vld [vmem:[#allocation15 + $0x18] sm:$0xff]
    %v617 = vld [vmem:[#allocation15 + $0x20] sm:$0xff]
    %v618 = vld [vmem:[#allocation15 + $0x28] sm:$0xff]
    %v619 = vld [vmem:[#allocation15 + $0x30] sm:$0xff]
    %v620 = vld [vmem:[#allocation15 + $0x38] sm:$0xff]
    %v621 = vld [vmem:[#allocation15 + $0x40] sm:$0xff]
    %v622 = vld [vmem:[#allocation15 + $0x48] sm:$0xff]
    %v623 = vld [vmem:[#allocation15 + $0x50] sm:$0xff]
    %v624 = vld [vmem:[#allocation15 + $0x58] sm:$0xff]
    %v625 = vld [vmem:[#allocation15 + $0x60] sm:$0xff]
    %v626 = vld [vmem:[#allocation15 + $0x68] sm:$0xff]
    %v627 = vld [vmem:[#allocation15 + $0x70] sm:$0xff]
    %v628 = vld [vmem:[#allocation15 + $0x78] sm:$0xff]
    %v629 = vld [vmem:[#allocation15 + $0x80] sm:$0xff]
    %v630 = vld [vmem:[#allocation15 + $0x88] sm:$0xff]
    %v631 = vld [vmem:[#allocation15 + $0x90] sm:$0xff]
    %v632 = vld [vmem:[#allocation15 + $0x98] sm:$0xff]
    %v633 = vld [vmem:[#allocation15 + $0xa0] sm:$0xff]
    %v634 = vld [vmem:[#allocation15 + $0xa8] sm:$0xff]
    %v635 = vld [vmem:[#allocation15 + $0xb0] sm:$0xff]
    %v636 = vld [vmem:[#allocation15 + $0xb8] sm:$0xff]
    %v637 = vld [vmem:[#allocation15 + $0xc0] sm:$0xff]
    %v638 = vld [vmem:[#allocation15 + $0xc8] sm:$0xff]
    %v639 = vld [vmem:[#allocation15 + $0xd0] sm:$0xff]
    %v640 = vld [vmem:[#allocation15 + $0xd8] sm:$0xff]
    %v641 = vld [vmem:[#allocation15 + $0xe0] sm:$0xff]
    %v642 = vld [vmem:[#allocation15 + $0xe8] sm:$0xff]
    %v643 = vld [vmem:[#allocation15 + $0xf0] sm:$0xff]
    %v644 = vld [vmem:[#allocation15 + $0xf8] sm:$0xff]
    %v645 = vld [vmem:[#allocation15 + $0x100] sm:$0xff]
    %v646 = vld [vmem:[#allocation15 + $0x108] sm:$0xff]
    %v647 = vld [vmem:[#allocation15 + $0x110] sm:$0xff]
    %v648 = vld [vmem:[#allocation15 + $0x118] sm:$0xff]
    %v649 = vld [vmem:[#allocation15 + $0x120] sm:$0xff]
    %v650 = vld [vmem:[#allocation15 + $0x128] sm:$0xff]
    %v651 = vld [vmem:[#allocation15 + $0x130] sm:$0xff]
    %v652 = vld [vmem:[#allocation15 + $0x138] sm:$0xff]
    %v653 = vld [vmem:[#allocation15 + $0x140] sm:$0xff]
    %v654 = vld [vmem:[#allocation15 + $0x148] sm:$0xff]
    %v655 = vld [vmem:[#allocation15 + $0x150] sm:$0xff]
    %v656 = vld [vmem:[#allocation15 + $0x158] sm:$0xff]
    %v657 = vld [vmem:[#allocation15 + $0x160] sm:$0xff]
    %v658 = vld [vmem:[#allocation15 + $0x168] sm:$0xff]
    %v659 = vld [vmem:[#allocation15 + $0x170] sm:$0xff]
    %v660 = vld [vmem:[#allocation15 + $0x178] sm:$0xff]
    %v661 = vld [vmem:[#allocation15 + $0x180] sm:$0xff]
    %v662 = vld [vmem:[#allocation15 + $0x188] sm:$0xff]
    %v663 = vld [vmem:[#allocation15 + $0x190] sm:$0xff]
    %v664 = vld [vmem:[#allocation15 + $0x198] sm:$0xff]
    %v665 = vld [vmem:[#allocation15 + $0x1a0] sm:$0xff]
    %v666 = vld [vmem:[#allocation15 + $0x1a8] sm:$0xff]
    %v667 = vld [vmem:[#allocation15 + $0x1b0] sm:$0xff]
    %v668 = vld [vmem:[#allocation15 + $0x1b8] sm:$0xff]
    %v669 = vld [vmem:[#allocation15 + $0x1c0] sm:$0xff]
    %v670 = vld [vmem:[#allocation15 + $0x1c8] sm:$0xff]
    %v671 = vld [vmem:[#allocation15 + $0x1d0] sm:$0xff]
    %v672 = vld [vmem:[#allocation15 + $0x1d8] sm:$0xff]
    %v673 = vld [vmem:[#allocation15 + $0x1e0] sm:$0xff]
    %v674 = vld [vmem:[#allocation15 + $0x1e8] sm:$0xff]
    %v675 = vld [vmem:[#allocation15 + $0x1f0] sm:$0xff]
    %v676 = vld [vmem:[#allocation15 + $0x1f8] sm:$0xff]
    %v741 = vunpack.c.l.b16 %v613
    %v742 = vunpack.c.h.b16 %v613
    %v743 = vunpack.c.l.b16 %v614
    %v744 = vunpack.c.h.b16 %v614
    %v745 = vunpack.c.l.b16 %v615
    %v746 = vunpack.c.h.b16 %v615
    %v747 = vunpack.c.l.b16 %v616
    %v748 = vunpack.c.h.b16 %v616
    %v749 = vunpack.c.l.b16 %v617
    %v750 = vunpack.c.h.b16 %v617
    %v751 = vunpack.c.l.b16 %v618
    %v752 = vunpack.c.h.b16 %v618
    %v753 = vunpack.c.l.b16 %v619
    %v754 = vunpack.c.h.b16 %v619
    %v755 = vunpack.c.l.b16 %v620
    %v756 = vunpack.c.h.b16 %v620
    %v757 = vunpack.c.l.b16 %v621
    %v758 = vunpack.c.h.b16 %v621
    %v759 = vunpack.c.l.b16 %v622
    %v760 = vunpack.c.h.b16 %v622
    %v761 = vunpack.c.l.b16 %v623
    %v762 = vunpack.c.h.b16 %v623
    %v763 = vunpack.c.l.b16 %v624
    %v764 = vunpack.c.h.b16 %v624
    %v765 = vunpack.c.l.b16 %v625
    %v766 = vunpack.c.h.b16 %v625
    %v767 = vunpack.c.l.b16 %v626
    %v768 = vunpack.c.h.b16 %v626
    %v769 = vunpack.c.l.b16 %v627
    %v770 = vunpack.c.h.b16 %v627
    %v771 = vunpack.c.l.b16 %v628
    %v772 = vunpack.c.h.b16 %v628
    %v773 = vunpack.c.l.b16 %v629
    %v774 = vunpack.c.h.b16 %v629
    %v775 = vunpack.c.l.b16 %v630
    %v776 = vunpack.c.h.b16 %v630
    %v777 = vunpack.c.l.b16 %v631
    %v778 = vunpack.c.h.b16 %v631
    %v779 = vunpack.c.l.b16 %v632
    %v780 = vunpack.c.h.b16 %v632
    %v781 = vunpack.c.l.b16 %v633
    %v782 = vunpack.c.h.b16 %v633
    %v783 = vunpack.c.l.b16 %v634
    %v784 = vunpack.c.h.b16 %v634
    %v785 = vunpack.c.l.b16 %v635
    %v786 = vunpack.c.h.b16 %v635
    %v787 = vunpack.c.l.b16 %v636
    %v788 = vunpack.c.h.b16 %v636
    %v789 = vunpack.c.l.b16 %v637
    %v790 = vunpack.c.h.b16 %v637
    %v791 = vunpack.c.l.b16 %v638
    %v792 = vunpack.c.h.b16 %v638
    %v793 = vunpack.c.l.b16 %v639
    %v794 = vunpack.c.h.b16 %v639
    %v795 = vunpack.c.l.b16 %v640
    %v796 = vunpack.c.h.b16 %v640
    %v797 = vunpack.c.l.b16 %v641
    %v798 = vunpack.c.h.b16 %v641
    %v799 = vunpack.c.l.b16 %v642
    %v800 = vunpack.c.h.b16 %v642
    %v801 = vunpack.c.l.b16 %v643
    %v802 = vunpack.c.h.b16 %v643
    %v803 = vunpack.c.l.b16 %v644
    %v804 = vunpack.c.h.b16 %v644
    %v805 = vunpack.c.l.b16 %v645
    %v806 = vunpack.c.h.b16 %v645
    %v807 = vunpack.c.l.b16 %v646
    %v808 = vunpack.c.h.b16 %v646
    %v809 = vunpack.c.l.b16 %v647
    %v810 = vunpack.c.h.b16 %v647
    %v811 = vunpack.c.l.b16 %v648
    %v812 = vunpack.c.h.b16 %v648
    %v813 = vunpack.c.l.b16 %v649
    %v814 = vunpack.c.h.b16 %v649
    %v815 = vunpack.c.l.b16 %v650
    %v816 = vunpack.c.h.b16 %v650
    %v817 = vunpack.c.l.b16 %v651
    %v818 = vunpack.c.h.b16 %v651
    %v819 = vunpack.c.l.b16 %v652
    %v820 = vunpack.c.h.b16 %v652
    %v821 = vunpack.c.l.b16 %v653
    %v822 = vunpack.c.h.b16 %v653
    %v823 = vunpack.c.l.b16 %v654
    %v824 = vunpack.c.h.b16 %v654
    %v825 = vunpack.c.l.b16 %v655
    %v826 = vunpack.c.h.b16 %v655
    %v827 = vunpack.c.l.b16 %v656
    %v828 = vunpack.c.h.b16 %v656
    %v829 = vunpack.c.l.b16 %v657
    %v830 = vunpack.c.h.b16 %v657
    %v831 = vunpack.c.l.b16 %v658
    %v832 = vunpack.c.h.b16 %v658
    %v833 = vunpack.c.l.b16 %v659
    %v834 = vunpack.c.h.b16 %v659
    %v835 = vunpack.c.l.b16 %v660
    %v836 = vunpack.c.h.b16 %v660
    %v837 = vunpack.c.l.b16 %v661
    %v838 = vunpack.c.h.b16 %v661
    %v839 = vunpack.c.l.b16 %v662
    %v840 = vunpack.c.h.b16 %v662
    %v841 = vunpack.c.l.b16 %v663
    %v842 = vunpack.c.h.b16 %v663
    %v843 = vunpack.c.l.b16 %v664
    %v844 = vunpack.c.h.b16 %v664
    %v845 = vunpack.c.l.b16 %v665
    %v846 = vunpack.c.h.b16 %v665
    %v847 = vunpack.c.l.b16 %v666
    %v848 = vunpack.c.h.b16 %v666
    %v849 = vunpack.c.l.b16 %v667
    %v850 = vunpack.c.h.b16 %v667
    %v851 = vunpack.c.l.b16 %v668
    %v852 = vunpack.c.h.b16 %v668
    %v853 = vunpack.c.l.b16 %v669
    %v854 = vunpack.c.h.b16 %v669
    %v855 = vunpack.c.l.b16 %v670
    %v856 = vunpack.c.h.b16 %v670
    %v857 = vunpack.c.l.b16 %v671
    %v858 = vunpack.c.h.b16 %v671
    %v859 = vunpack.c.l.b16 %v672
    %v860 = vunpack.c.h.b16 %v672
    %v861 = vunpack.c.l.b16 %v673
    %v862 = vunpack.c.h.b16 %v673
    %v863 = vunpack.c.l.b16 %v674
    %v864 = vunpack.c.h.b16 %v674
    %v865 = vunpack.c.l.b16 %v675
    %v866 = vunpack.c.h.b16 %v675
    %v867 = vunpack.c.l.b16 %v676
    %v868 = vunpack.c.h.b16 %v676
    %v869 = vpack.c.b16 %v745, %v741
    %v870 = vpack.c.b16 %v746, %v742
    %v871 = vpack.c.b16 %v747, %v743
    %v872 = vpack.c.b16 %v748, %v744
    %v873 = vpack.c.b16 %v753, %v749
    %v874 = vpack.c.b16 %v754, %v750
    %v875 = vpack.c.b16 %v755, %v751
    %v876 = vpack.c.b16 %v756, %v752
    %v877 = vpack.c.b16 %v761, %v757
    %v878 = vpack.c.b16 %v762, %v758
    %v879 = vpack.c.b16 %v763, %v759
    %v880 = vpack.c.b16 %v764, %v760
    %v881 = vpack.c.b16 %v769, %v765
    %v882 = vpack.c.b16 %v770, %v766
    %v883 = vpack.c.b16 %v771, %v767
    %v884 = vpack.c.b16 %v772, %v768
    %v885 = vpack.c.b16 %v777, %v773
    %v886 = vpack.c.b16 %v778, %v774
    %v887 = vpack.c.b16 %v779, %v775
    %v888 = vpack.c.b16 %v780, %v776
    %v889 = vpack.c.b16 %v785, %v781
    %v890 = vpack.c.b16 %v786, %v782
    %v891 = vpack.c.b16 %v787, %v783
    %v892 = vpack.c.b16 %v788, %v784
    %v893 = vpack.c.b16 %v793, %v789
    %v894 = vpack.c.b16 %v794, %v790
    %v895 = vpack.c.b16 %v795, %v791
    %v896 = vpack.c.b16 %v796, %v792
    %v897 = vpack.c.b16 %v801, %v797
    %v898 = vpack.c.b16 %v802, %v798
    %v899 = vpack.c.b16 %v803, %v799
    %v900 = vpack.c.b16 %v804, %v800
    %v901 = vpack.c.b16 %v809, %v805
    %v902 = vpack.c.b16 %v810, %v806
    %v903 = vpack.c.b16 %v811, %v807
    %v904 = vpack.c.b16 %v812, %v808
    %v905 = vpack.c.b16 %v817, %v813
    %v906 = vpack.c.b16 %v818, %v814
    %v907 = vpack.c.b16 %v819, %v815
    %v908 = vpack.c.b16 %v820, %v816
    %v909 = vpack.c.b16 %v825, %v821
    %v910 = vpack.c.b16 %v826, %v822
    %v911 = vpack.c.b16 %v827, %v823
    %v912 = vpack.c.b16 %v828, %v824
    %v913 = vpack.c.b16 %v833, %v829
    %v914 = vpack.c.b16 %v834, %v830
    %v915 = vpack.c.b16 %v835, %v831
    %v916 = vpack.c.b16 %v836, %v832
    %v917 = vpack.c.b16 %v841, %v837
    %v918 = vpack.c.b16 %v842, %v838
    %v919 = vpack.c.b16 %v843, %v839
    %v920 = vpack.c.b16 %v844, %v840
    %v921 = vpack.c.b16 %v849, %v845
    %v922 = vpack.c.b16 %v850, %v846
    %v923 = vpack.c.b16 %v851, %v847
    %v924 = vpack.c.b16 %v852, %v848
    %v925 = vpack.c.b16 %v857, %v853
    %v926 = vpack.c.b16 %v858, %v854
    %v927 = vpack.c.b16 %v859, %v855
    %v928 = vpack.c.b16 %v860, %v856
    %v929 = vpack.c.b16 %v865, %v861
    %v930 = vpack.c.b16 %v866, %v862
    %v931 = vpack.c.b16 %v867, %v863
    %v932 = vpack.c.b16 %v868, %v864
    %997 = vmatprep.subr.bf16.mxu0 %v898
    %998 = vmatpush1.bf16.msra.mxu0 %v897
    %999 = vmatprep.subr.bf16.mxu0 %v894
    %1000 = vmatpush1.bf16.msra.mxu0 %v893
    %1001 = vmatprep.subr.bf16.mxu0 %v890
    %1002 = vmatpush1.bf16.msra.mxu0 %v889
    %1003 = vmatprep.subr.bf16.mxu0 %v886
    %1004 = vmatpush1.bf16.msra.mxu0 %v885
    %1005 = vmatprep.subr.bf16.mxu0 %v882
    %1006 = vmatpush1.bf16.msra.mxu0 %v881
    %1007 = vmatprep.subr.bf16.mxu0 %v878
    %1008 = vmatpush1.bf16.msra.mxu0 %v877
    %1009 = vmatprep.subr.bf16.mxu0 %v874
    %1010 = vmatpush1.bf16.msra.mxu0 %v873
    %1011 = vmatprep.subr.bf16.mxu0 %v870
    %1012 = vmatpush1.bf16.msra.mxu0 %v869
    %1013 = vmatprep.subr.bf16.mxu0 %v930
    %1014 = vmatpush2.bf16.msra.mxu0 %v929
    %1015 = vmatprep.subr.bf16.mxu0 %v926
    %1016 = vmatpush2.bf16.msra.mxu0 %v925
    %1017 = vmatprep.subr.bf16.mxu0 %v922
    %1018 = vmatpush2.bf16.msra.mxu0 %v921
    %1019 = vmatprep.subr.bf16.mxu0 %v918
    %1020 = vmatpush2.bf16.msra.mxu0 %v917
    %1021 = vmatprep.subr.bf16.mxu0 %v914
    %1022 = vmatpush2.bf16.msra.mxu0 %v913
    %1023 = vmatprep.subr.bf16.mxu0 %v910
    %1024 = vmatpush2.bf16.msra.mxu0 %v909
    %1025 = vmatprep.subr.bf16.mxu0 %v906
    %1026 = vmatpush2.bf16.msra.mxu0 %v905
    %1027 = vmatprep.subr.bf16.mxu0 %v902
    %1028 = vmatpush2.bf16.msra.mxu0 %v901
    %1029 = vmatprep.mubr.bf16.mxu0 %v612
    %1030 = vmatmul.mubr.bf16.gmra.mxu0 %v611
    %v1031 = vpop.f32.mrf.mxu0
    %v1032 = vadd.f32 0.0, %v1031
    %v1033 = vpop.f32.mrf.mxu0
    %v1034 = vadd.f32 0.0, %v1033
    %v1035 = vpop.f32.mrf.mxu0
    %v1036 = vadd.f32 0.0, %v1035
    %v1037 = vpop.f32.mrf.mxu0
    %v1038 = vadd.f32 0.0, %v1037
    %1039 = vdwg.mxu0
    %1040 = vmatprep.subr.bf16.mxu0 %v900
    %1041 = vmatpush1.bf16.msra.mxu0 %v899
    %1042 = vmatprep.subr.bf16.mxu0 %v896
    %1043 = vmatpush1.bf16.msra.mxu0 %v895
    %1044 = vmatprep.subr.bf16.mxu0 %v892
    %1045 = vmatpush1.bf16.msra.mxu0 %v891
    %1046 = vmatprep.subr.bf16.mxu0 %v888
    %1047 = vmatpush1.bf16.msra.mxu0 %v887
    %1048 = vmatprep.subr.bf16.mxu0 %v884
    %1049 = vmatpush1.bf16.msra.mxu0 %v883
    %1050 = vmatprep.subr.bf16.mxu0 %v880
    %1051 = vmatpush1.bf16.msra.mxu0 %v879
    %1052 = vmatprep.subr.bf16.mxu0 %v876
    %1053 = vmatpush1.bf16.msra.mxu0 %v875
    %1054 = vmatprep.subr.bf16.mxu0 %v872
    %1055 = vmatpush1.bf16.msra.mxu0 %v871
    %1056 = vmatprep.subr.bf16.mxu0 %v932
    %1057 = vmatpush2.bf16.msra.mxu0 %v931
    %1058 = vmatprep.subr.bf16.mxu0 %v928
    %1059 = vmatpush2.bf16.msra.mxu0 %v927
    %1060 = vmatprep.subr.bf16.mxu0 %v924
    %1061 = vmatpush2.bf16.msra.mxu0 %v923
    %1062 = vmatprep.subr.bf16.mxu0 %v920
    %1063 = vmatpush2.bf16.msra.mxu0 %v919
    %1064 = vmatprep.subr.bf16.mxu0 %v916
    %1065 = vmatpush2.bf16.msra.mxu0 %v915
    %1066 = vmatprep.subr.bf16.mxu0 %v912
    %1067 = vmatpush2.bf16.msra.mxu0 %v911
    %1068 = vmatprep.subr.bf16.mxu0 %v908
    %1069 = vmatpush2.bf16.msra.mxu0 %v907
    %1070 = vmatprep.subr.bf16.mxu0 %v904
    %1071 = vmatpush2.bf16.msra.mxu0 %v903
    %1072 = vmatprep.mubr.bf16.mxu0 %v612
    %1073 = vmatmul.mubr.bf16.gmra.mxu0 %v611
    %v1074 = vpop.f32.mrf.mxu0
    %v1075 = vadd.f32 0.0, %v1074
    %v1076 = vpop.f32.mrf.mxu0
    %v1077 = vadd.f32 0.0, %v1076
    %v1078 = vpop.f32.mrf.mxu0
    %v1079 = vadd.f32 0.0, %v1078
    %v1080 = vpop.f32.mrf.mxu0
    %v1081 = vadd.f32 0.0, %v1080
    %1082 = vdwg.mxu0
    %v1083 = vmul.f32 %v1032, %v327
    %v1084 = vmul.f32 %v1034, %v327
    %v1085 = vmul.f32 %v1075, %v327
    %v1086 = vmul.f32 %v1077, %v327
    %v1087 = vmul.f32 %v1036, %v328
    %v1088 = vmul.f32 %v1038, %v328
    %v1089 = vmul.f32 %v1079, %v328
    %v1090 = vmul.f32 %v1081, %v328
    %v1091 = vadd.f32 %v1083, %v1087
    %v1092 = vrot.slane %v1091, 4
    %v1093 = vadd.f32 %v1091, %v1092
    %v1094 = vrot.slane %v1093, 2
    %v1095 = vadd.f32 %v1093, %v1094
    %v1096 = vrot.slane %v1095, 1
    %v1097 = vadd.f32 %v1095, %v1096
    %v1098 = vadd.f32 %v1084, %v1088
    %v1099 = vrot.slane %v1098, 4
    %v1100 = vadd.f32 %v1098, %v1099
    %v1101 = vrot.slane %v1100, 2
    %v1102 = vadd.f32 %v1100, %v1101
    %v1103 = vrot.slane %v1102, 1
    %v1104 = vadd.f32 %v1102, %v1103
    %v1105 = vadd.f32 %v1085, %v1089
    %v1106 = vrot.slane %v1105, 4
    %v1107 = vadd.f32 %v1105, %v1106
    %v1108 = vrot.slane %v1107, 2
    %v1109 = vadd.f32 %v1107, %v1108
    %v1110 = vrot.slane %v1109, 1
    %v1111 = vadd.f32 %v1109, %v1110
    %v1112 = vadd.f32 %v1086, %v1090
    %v1113 = vrot.slane %v1112, 4
    %v1114 = vadd.f32 %v1112, %v1113
    %v1115 = vrot.slane %v1114, 2
    %v1116 = vadd.f32 %v1114, %v1115
    %v1117 = vrot.slane %v1116, 1
    %v1118 = vadd.f32 %v1116, %v1117
    %v1119 = vmul.f32 %v1097, %v496
    %v1120 = vmul.f32 %v1104, %v496
    %v1121 = vmul.f32 %v1111, %v496
    %v1122 = vmul.f32 %v1118, %v496
    %v1123 = vsub.f32 %v1032, %v1119
    %v1124 = vsub.f32 %v1034, %v1120
    %v1125 = vsub.f32 %v1075, %v1121
    %v1126 = vsub.f32 %v1077, %v1122
    %v1127 = vsub.f32 %v1036, %v1119
    %v1128 = vsub.f32 %v1038, %v1120
    %v1129 = vsub.f32 %v1079, %v1121
    %v1130 = vsub.f32 %v1081, %v1122
    %v1131 = vmul.f32 %v1123, %v327
    %v1132 = vmul.f32 %v1124, %v327
    %v1133 = vmul.f32 %v1125, %v327
    %v1134 = vmul.f32 %v1126, %v327
    %v1135 = vmul.f32 %v1127, %v328
    %v1136 = vmul.f32 %v1128, %v328
    %v1137 = vmul.f32 %v1129, %v328
    %v1138 = vmul.f32 %v1130, %v328
    %v1139 = vmul.f32 %v1131, %v1131
    %v1140 = vmul.f32 %v1132, %v1132
    %v1141 = vmul.f32 %v1133, %v1133
    %v1142 = vmul.f32 %v1134, %v1134
    %v1143 = vmul.f32 %v1135, %v1135
    %v1144 = vmul.f32 %v1136, %v1136
    %v1145 = vmul.f32 %v1137, %v1137
    %v1146 = vmul.f32 %v1138, %v1138
    %v1147 = vadd.f32 %v1139, %v1143
    %v1148 = vrot.slane %v1147, 4
    %v1149 = vadd.f32 %v1147, %v1148
    %v1150 = vrot.slane %v1149, 2
    %v1151 = vadd.f32 %v1149, %v1150
    %v1152 = vrot.slane %v1151, 1
    %v1153 = vadd.f32 %v1151, %v1152
    %v1154 = vadd.f32 %v1140, %v1144
    %v1155 = vrot.slane %v1154, 4
    %v1156 = vadd.f32 %v1154, %v1155
    %v1157 = vrot.slane %v1156, 2
    %v1158 = vadd.f32 %v1156, %v1157
    %v1159 = vrot.slane %v1158, 1
    %v1160 = vadd.f32 %v1158, %v1159
    %v1161 = vadd.f32 %v1141, %v1145
    %v1162 = vrot.slane %v1161, 4
    %v1163 = vadd.f32 %v1161, %v1162
    %v1164 = vrot.slane %v1163, 2
    %v1165 = vadd.f32 %v1163, %v1164
    %v1166 = vrot.slane %v1165, 1
    %v1167 = vadd.f32 %v1165, %v1166
    %v1168 = vadd.f32 %v1142, %v1146
    %v1169 = vrot.slane %v1168, 4
    %v1170 = vadd.f32 %v1168, %v1169
    %v1171 = vrot.slane %v1170, 2
    %v1172 = vadd.f32 %v1170, %v1171
    %v1173 = vrot.slane %v1172, 1
    %v1174 = vadd.f32 %v1172, %v1173
    %v1175 = vmul.f32 %v1153, %v496
    %v1176 = vmul.f32 %v1160, %v496
    %v1177 = vmul.f32 %v1167, %v496
    %v1178 = vmul.f32 %v1174, %v496
    %v1179 = vld [vmem:[#allocation16] sm:$0xf]
    %v1180 = vadd.f32 %v1175, 0.8
    %v1181 = vadd.f32 %v1176, 0.8
    %v1182 = vadd.f32 %v1177, 0.8
    %v1183 = vadd.f32 %v1178, 0.8
    %v1184 = vrsqrt.pop %v1180
    %v1185 = vrsqrt.pop %v1181
    %v1186 = vrsqrt.pop %v1182
    %v1187 = vrsqrt.pop %v1183
    %v1192 = vcombine.low %v1184, %v1185
    %v1193 = vcombine.low %v1186, %v1187
    %v1195 = vunpack.c.l.s4 1966171168
    %v1196 = vunpack.c.0.s8 %v1195
    %v1197 = vlaneseq
    %v1198 = vshrl.u32 %v1197, 7
    %v1199 = vsub.s32 %v1196, %v1198
    %v1200 = vrot.slane %v1192, %v1199
    %v1202 = vunpack.c.l.s4 1966171168
    %v1203 = vunpack.c.0.s8 %v1202
    %v1204 = vlaneseq
    %v1205 = vshrl.u32 %v1204, 7
    %v1206 = vsub.s32 %v1203, %v1205
    %v1207 = vrot.slane %v1193, %v1206
    %v1208 = vcombine.low %v1200, %v1207
    %v1210 = vunpack.c.l.s4 1966171168
    %v1211 = vunpack.c.0.s8 %v1210
    %v1212 = vlaneseq
    %v1213 = vshrl.u32 %v1212, 7
    %v1214 = vsub.s32 %v1211, %v1213
    %v1215 = vrot.slane %v1208, %v1214
    %v1217 = vmul.f32 %v1179, %v1215
    %v1218 = vld [vmem:[#allocation18] sm:$0xf]
    %v1220 = vlaneseq
    %v1221 = vshrl.u32 %v1220, 7
    %v1222 = vsub.s32 0, %v1221
    %v1223 = vrot.slane %v1217, %v1222
    %v1224 = vlaneseq
    %v1225 = vshrl.u32 %v1224, 7
    %v1226 = vsub.s32 1, %v1225
    %v1227 = vrot.slane %v1217, %v1226
    %v1228 = vlaneseq
    %v1229 = vshrl.u32 %v1228, 7
    %v1230 = vsub.s32 2, %v1229
    %v1231 = vrot.slane %v1217, %v1230
    %v1232 = vlaneseq
    %v1233 = vshrl.u32 %v1232, 7
    %v1234 = vsub.s32 3, %v1233
    %v1235 = vrot.slane %v1217, %v1234
    %v1240 = vmul.f32 %v1119, %v1223
    %v1241 = vmul.f32 %v1120, %v1227
    %v1242 = vmul.f32 %v1121, %v1231
    %v1243 = vmul.f32 %v1122, %v1235
    %v1248 = vcombine.low %v1240, %v1241
    %v1249 = vcombine.low %v1242, %v1243
    %v1251 = vunpack.c.l.s4 1966171168
    %v1252 = vunpack.c.0.s8 %v1251
    %v1253 = vlaneseq
    %v1254 = vshrl.u32 %v1253, 7
    %v1255 = vsub.s32 %v1252, %v1254
    %v1256 = vrot.slane %v1248, %v1255
    %v1258 = vunpack.c.l.s4 1966171168
    %v1259 = vunpack.c.0.s8 %v1258
    %v1260 = vlaneseq
    %v1261 = vshrl.u32 %v1260, 7
    %v1262 = vsub.s32 %v1259, %v1261
    %v1263 = vrot.slane %v1249, %v1262
    %v1264 = vcombine.low %v1256, %v1263
    %v1266 = vunpack.c.l.s4 1966171168
    %v1267 = vunpack.c.0.s8 %v1266
    %v1268 = vlaneseq
    %v1269 = vshrl.u32 %v1268, 7
    %v1270 = vsub.s32 %v1267, %v1269
    %v1271 = vrot.slane %v1264, %v1270
    %v1273 = vsub.f32 %v1218, %v1271
    %v1274 = vmul.f32 %v1032, %v1223
    %v1275 = vmul.f32 %v1034, %v1227
    %v1276 = vmul.f32 %v1075, %v1231
    %v1277 = vmul.f32 %v1077, %v1235
    %v1278 = vmul.f32 %v1036, %v1223
    %v1279 = vmul.f32 %v1038, %v1227
    %v1280 = vmul.f32 %v1079, %v1231
    %v1281 = vmul.f32 %v1081, %v1235
    %v1283 = vlaneseq
    %v1284 = vshrl.u32 %v1283, 7
    %v1285 = vsub.s32 0, %v1284
    %v1286 = vrot.slane %v1273, %v1285
    %v1287 = vlaneseq
    %v1288 = vshrl.u32 %v1287, 7
    %v1289 = vsub.s32 1, %v1288
    %v1290 = vrot.slane %v1273, %v1289
    %v1291 = vlaneseq
    %v1292 = vshrl.u32 %v1291, 7
    %v1293 = vsub.s32 2, %v1292
    %v1294 = vrot.slane %v1273, %v1293
    %v1295 = vlaneseq
    %v1296 = vshrl.u32 %v1295, 7
    %v1297 = vsub.s32 3, %v1296
    %v1298 = vrot.slane %v1273, %v1297
    %v1303 = vadd.f32 %v1274, %v1286
    %v1304 = vadd.f32 %v1275, %v1290
    %v1305 = vadd.f32 %v1276, %v1294
    %v1306 = vadd.f32 %v1277, %v1298
    %v1307 = vadd.f32 %v1278, %v1286
    %v1308 = vadd.f32 %v1279, %v1290
    %v1309 = vadd.f32 %v1280, %v1294
    %v1310 = vadd.f32 %v1281, %v1298
    %v1311 = vmul.f32 %v1303, 0.2
    %v1312 = vmul.f32 %v1304, 0.2
    %v1313 = vmul.f32 %v1305, 0.2
    %v1314 = vmul.f32 %v1306, 0.2
    %v1315 = vmul.f32 %v1307, 0.2
    %v1316 = vmul.f32 %v1308, 0.2
    %v1317 = vmul.f32 %v1309, 0.2
    %v1318 = vmul.f32 %v1310, 0.2
    %v1319 = vmax.f32 %v1303, %v1311
    %v1320 = vmax.f32 %v1304, %v1312
    %v1321 = vmax.f32 %v1305, %v1313
    %v1322 = vmax.f32 %v1306, %v1314
    %v1323 = vmax.f32 %v1307, %v1315
    %v1324 = vmax.f32 %v1308, %v1316
    %v1325 = vmax.f32 %v1309, %v1317
    %v1326 = vmax.f32 %v1310, %v1318
    %v1327 = vpack.c.bf16 %v1323, %v1319
    %v1328 = vpack.c.bf16 %v1324, %v1320
    %v1329 = vpack.c.bf16 %v1325, %v1321
    %v1330 = vpack.c.bf16 %v1326, %v1322
    %v1331 = vld [vmem:[#allocation19] sm:$0xff]
    %v1332 = vld [vmem:[#allocation19 + $0x8] sm:$0xff]
    %v1333 = vld [vmem:[#allocation19 + $0x10] sm:$0xff]
    %v1334 = vld [vmem:[#allocation19 + $0x18] sm:$0xff]
    %v1335 = vld [vmem:[#allocation19 + $0x20] sm:$0xff]
    %v1336 = vld [vmem:[#allocation19 + $0x28] sm:$0xff]
    %v1337 = vld [vmem:[#allocation19 + $0x30] sm:$0xff]
    %v1338 = vld [vmem:[#allocation19 + $0x38] sm:$0xff]
    %v1339 = vld [vmem:[#allocation19 + $0x40] sm:$0xff]
    %v1340 = vld [vmem:[#allocation19 + $0x48] sm:$0xff]
    %v1341 = vld [vmem:[#allocation19 + $0x50] sm:$0xff]
    %v1342 = vld [vmem:[#allocation19 + $0x58] sm:$0xff]
    %v1343 = vld [vmem:[#allocation19 + $0x60] sm:$0xff]
    %v1344 = vld [vmem:[#allocation19 + $0x68] sm:$0xff]
    %v1345 = vld [vmem:[#allocation19 + $0x70] sm:$0xff]
    %v1346 = vld [vmem:[#allocation19 + $0x78] sm:$0xff]
    %v1347 = vld [vmem:[#allocation19 + $0x80] sm:$0xff]
    %v1348 = vld [vmem:[#allocation19 + $0x88] sm:$0xff]
    %v1349 = vld [vmem:[#allocation19 + $0x90] sm:$0xff]
    %v1350 = vld [vmem:[#allocation19 + $0x98] sm:$0xff]
    %v1351 = vld [vmem:[#allocation19 + $0xa0] sm:$0xff]
    %v1352 = vld [vmem:[#allocation19 + $0xa8] sm:$0xff]
    %v1353 = vld [vmem:[#allocation19 + $0xb0] sm:$0xff]
    %v1354 = vld [vmem:[#allocation19 + $0xb8] sm:$0xff]
    %v1355 = vld [vmem:[#allocation19 + $0xc0] sm:$0xff]
    %v1356 = vld [vmem:[#allocation19 + $0xc8] sm:$0xff]
    %v1357 = vld [vmem:[#allocation19 + $0xd0] sm:$0xff]
    %v1358 = vld [vmem:[#allocation19 + $0xd8] sm:$0xff]
    %v1359 = vld [vmem:[#allocation19 + $0xe0] sm:$0xff]
    %v1360 = vld [vmem:[#allocation19 + $0xe8] sm:$0xff]
    %v1361 = vld [vmem:[#allocation19 + $0xf0] sm:$0xff]
    %v1362 = vld [vmem:[#allocation19 + $0xf8] sm:$0xff]
    %v1363 = vld [vmem:[#allocation19 + $0x100] sm:$0xff]
    %v1364 = vld [vmem:[#allocation19 + $0x108] sm:$0xff]
    %v1365 = vld [vmem:[#allocation19 + $0x110] sm:$0xff]
    %v1366 = vld [vmem:[#allocation19 + $0x118] sm:$0xff]
    %v1367 = vld [vmem:[#allocation19 + $0x120] sm:$0xff]
    %v1368 = vld [vmem:[#allocation19 + $0x128] sm:$0xff]
    %v1369 = vld [vmem:[#allocation19 + $0x130] sm:$0xff]
    %v1370 = vld [vmem:[#allocation19 + $0x138] sm:$0xff]
    %v1371 = vld [vmem:[#allocation19 + $0x140] sm:$0xff]
    %v1372 = vld [vmem:[#allocation19 + $0x148] sm:$0xff]
    %v1373 = vld [vmem:[#allocation19 + $0x150] sm:$0xff]
    %v1374 = vld [vmem:[#allocation19 + $0x158] sm:$0xff]
    %v1375 = vld [vmem:[#allocation19 + $0x160] sm:$0xff]
    %v1376 = vld [vmem:[#allocation19 + $0x168] sm:$0xff]
    %v1377 = vld [vmem:[#allocation19 + $0x170] sm:$0xff]
    %v1378 = vld [vmem:[#allocation19 + $0x178] sm:$0xff]
    %v1379 = vld [vmem:[#allocation19 + $0x180] sm:$0xff]
    %v1380 = vld [vmem:[#allocation19 + $0x188] sm:$0xff]
    %v1381 = vld [vmem:[#allocation19 + $0x190] sm:$0xff]
    %v1382 = vld [vmem:[#allocation19 + $0x198] sm:$0xff]
    %v1383 = vld [vmem:[#allocation19 + $0x1a0] sm:$0xff]
    %v1384 = vld [vmem:[#allocation19 + $0x1a8] sm:$0xff]
    %v1385 = vld [vmem:[#allocation19 + $0x1b0] sm:$0xff]
    %v1386 = vld [vmem:[#allocation19 + $0x1b8] sm:$0xff]
    %v1387 = vld [vmem:[#allocation19 + $0x1c0] sm:$0xff]
    %v1388 = vld [vmem:[#allocation19 + $0x1c8] sm:$0xff]
    %v1389 = vld [vmem:[#allocation19 + $0x1d0] sm:$0xff]
    %v1390 = vld [vmem:[#allocation19 + $0x1d8] sm:$0xff]
    %v1391 = vld [vmem:[#allocation19 + $0x1e0] sm:$0xff]
    %v1392 = vld [vmem:[#allocation19 + $0x1e8] sm:$0xff]
    %v1393 = vld [vmem:[#allocation19 + $0x1f0] sm:$0xff]
    %v1394 = vld [vmem:[#allocation19 + $0x1f8] sm:$0xff]
    %v1395 = vld [vmem:[#allocation19 + $0x200] sm:$0xff]
    %v1396 = vld [vmem:[#allocation19 + $0x208] sm:$0xff]
    %v1397 = vld [vmem:[#allocation19 + $0x210] sm:$0xff]
    %v1398 = vld [vmem:[#allocation19 + $0x218] sm:$0xff]
    %v1399 = vld [vmem:[#allocation19 + $0x220] sm:$0xff]
    %v1400 = vld [vmem:[#allocation19 + $0x228] sm:$0xff]
    %v1401 = vld [vmem:[#allocation19 + $0x230] sm:$0xff]
    %v1402 = vld [vmem:[#allocation19 + $0x238] sm:$0xff]
    %v1403 = vld [vmem:[#allocation19 + $0x240] sm:$0xff]
    %v1404 = vld [vmem:[#allocation19 + $0x248] sm:$0xff]
    %v1405 = vld [vmem:[#allocation19 + $0x250] sm:$0xff]
    %v1406 = vld [vmem:[#allocation19 + $0x258] sm:$0xff]
    %v1407 = vld [vmem:[#allocation19 + $0x260] sm:$0xff]
    %v1408 = vld [vmem:[#allocation19 + $0x268] sm:$0xff]
    %v1409 = vld [vmem:[#allocation19 + $0x270] sm:$0xff]
    %v1410 = vld [vmem:[#allocation19 + $0x278] sm:$0xff]
    %v1411 = vld [vmem:[#allocation19 + $0x280] sm:$0xff]
    %v1412 = vld [vmem:[#allocation19 + $0x288] sm:$0xff]
    %v1413 = vld [vmem:[#allocation19 + $0x290] sm:$0xff]
    %v1414 = vld [vmem:[#allocation19 + $0x298] sm:$0xff]
    %v1415 = vld [vmem:[#allocation19 + $0x2a0] sm:$0xff]
    %v1416 = vld [vmem:[#allocation19 + $0x2a8] sm:$0xff]
    %v1417 = vld [vmem:[#allocation19 + $0x2b0] sm:$0xff]
    %v1418 = vld [vmem:[#allocation19 + $0x2b8] sm:$0xff]
    %v1419 = vld [vmem:[#allocation19 + $0x2c0] sm:$0xff]
    %v1420 = vld [vmem:[#allocation19 + $0x2c8] sm:$0xff]
    %v1421 = vld [vmem:[#allocation19 + $0x2d0] sm:$0xff]
    %v1422 = vld [vmem:[#allocation19 + $0x2d8] sm:$0xff]
    %v1423 = vld [vmem:[#allocation19 + $0x2e0] sm:$0xff]
    %v1424 = vld [vmem:[#allocation19 + $0x2e8] sm:$0xff]
    %v1425 = vld [vmem:[#allocation19 + $0x2f0] sm:$0xff]
    %v1426 = vld [vmem:[#allocation19 + $0x2f8] sm:$0xff]
    %v1427 = vld [vmem:[#allocation19 + $0x300] sm:$0xff]
    %v1428 = vld [vmem:[#allocation19 + $0x308] sm:$0xff]
    %v1429 = vld [vmem:[#allocation19 + $0x310] sm:$0xff]
    %v1430 = vld [vmem:[#allocation19 + $0x318] sm:$0xff]
    %v1431 = vld [vmem:[#allocation19 + $0x320] sm:$0xff]
    %v1432 = vld [vmem:[#allocation19 + $0x328] sm:$0xff]
    %v1433 = vld [vmem:[#allocation19 + $0x330] sm:$0xff]
    %v1434 = vld [vmem:[#allocation19 + $0x338] sm:$0xff]
    %v1435 = vld [vmem:[#allocation19 + $0x340] sm:$0xff]
    %v1436 = vld [vmem:[#allocation19 + $0x348] sm:$0xff]
    %v1437 = vld [vmem:[#allocation19 + $0x350] sm:$0xff]
    %v1438 = vld [vmem:[#allocation19 + $0x358] sm:$0xff]
    %v1439 = vld [vmem:[#allocation19 + $0x360] sm:$0xff]
    %v1440 = vld [vmem:[#allocation19 + $0x368] sm:$0xff]
    %v1441 = vld [vmem:[#allocation19 + $0x370] sm:$0xff]
    %v1442 = vld [vmem:[#allocation19 + $0x378] sm:$0xff]
    %v1443 = vld [vmem:[#allocation19 + $0x380] sm:$0xff]
    %v1444 = vld [vmem:[#allocation19 + $0x388] sm:$0xff]
    %v1445 = vld [vmem:[#allocation19 + $0x390] sm:$0xff]
    %v1446 = vld [vmem:[#allocation19 + $0x398] sm:$0xff]
    %v1447 = vld [vmem:[#allocation19 + $0x3a0] sm:$0xff]
    %v1448 = vld [vmem:[#allocation19 + $0x3a8] sm:$0xff]
    %v1449 = vld [vmem:[#allocation19 + $0x3b0] sm:$0xff]
    %v1450 = vld [vmem:[#allocation19 + $0x3b8] sm:$0xff]
    %v1451 = vld [vmem:[#allocation19 + $0x3c0] sm:$0xff]
    %v1452 = vld [vmem:[#allocation19 + $0x3c8] sm:$0xff]
    %v1453 = vld [vmem:[#allocation19 + $0x3d0] sm:$0xff]
    %v1454 = vld [vmem:[#allocation19 + $0x3d8] sm:$0xff]
    %v1455 = vld [vmem:[#allocation19 + $0x3e0] sm:$0xff]
    %v1456 = vld [vmem:[#allocation19 + $0x3e8] sm:$0xff]
    %v1457 = vld [vmem:[#allocation19 + $0x3f0] sm:$0xff]
    %v1458 = vld [vmem:[#allocation19 + $0x3f8] sm:$0xff]
    %v1459 = vld [vmem:[#allocation19 + $0x400] sm:$0xff]
    %v1460 = vld [vmem:[#allocation19 + $0x408] sm:$0xff]
    %v1461 = vld [vmem:[#allocation19 + $0x410] sm:$0xff]
    %v1462 = vld [vmem:[#allocation19 + $0x418] sm:$0xff]
    %v1463 = vld [vmem:[#allocation19 + $0x420] sm:$0xff]
    %v1464 = vld [vmem:[#allocation19 + $0x428] sm:$0xff]
    %v1465 = vld [vmem:[#allocation19 + $0x430] sm:$0xff]
    %v1466 = vld [vmem:[#allocation19 + $0x438] sm:$0xff]
    %v1467 = vld [vmem:[#allocation19 + $0x440] sm:$0xff]
    %v1468 = vld [vmem:[#allocation19 + $0x448] sm:$0xff]
    %v1469 = vld [vmem:[#allocation19 + $0x450] sm:$0xff]
    %v1470 = vld [vmem:[#allocation19 + $0x458] sm:$0xff]
    %v1471 = vld [vmem:[#allocation19 + $0x460] sm:$0xff]
    %v1472 = vld [vmem:[#allocation19 + $0x468] sm:$0xff]
    %v1473 = vld [vmem:[#allocation19 + $0x470] sm:$0xff]
    %v1474 = vld [vmem:[#allocation19 + $0x478] sm:$0xff]
    %v1475 = vld [vmem:[#allocation19 + $0x480] sm:$0xff]
    %v1476 = vld [vmem:[#allocation19 + $0x488] sm:$0xff]
    %v1477 = vld [vmem:[#allocation19 + $0x490] sm:$0xff]
    %v1478 = vld [vmem:[#allocation19 + $0x498] sm:$0xff]
    %v1479 = vld [vmem:[#allocation19 + $0x4a0] sm:$0xff]
    %v1480 = vld [vmem:[#allocation19 + $0x4a8] sm:$0xff]
    %v1481 = vld [vmem:[#allocation19 + $0x4b0] sm:$0xff]
    %v1482 = vld [vmem:[#allocation19 + $0x4b8] sm:$0xff]
    %v1483 = vld [vmem:[#allocation19 + $0x4c0] sm:$0xff]
    %v1484 = vld [vmem:[#allocation19 + $0x4c8] sm:$0xff]
    %v1485 = vld [vmem:[#allocation19 + $0x4d0] sm:$0xff]
    %v1486 = vld [vmem:[#allocation19 + $0x4d8] sm:$0xff]
    %v1487 = vld [vmem:[#allocation19 + $0x4e0] sm:$0xff]
    %v1488 = vld [vmem:[#allocation19 + $0x4e8] sm:$0xff]
    %v1489 = vld [vmem:[#allocation19 + $0x4f0] sm:$0xff]
    %v1490 = vld [vmem:[#allocation19 + $0x4f8] sm:$0xff]
    %v1491 = vld [vmem:[#allocation19 + $0x500] sm:$0xff]
    %v1492 = vld [vmem:[#allocation19 + $0x508] sm:$0xff]
    %v1493 = vld [vmem:[#allocation19 + $0x510] sm:$0xff]
    %v1494 = vld [vmem:[#allocation19 + $0x518] sm:$0xff]
    %v1495 = vld [vmem:[#allocation19 + $0x520] sm:$0xff]
    %v1496 = vld [vmem:[#allocation19 + $0x528] sm:$0xff]
    %v1497 = vld [vmem:[#allocation19 + $0x530] sm:$0xff]
    %v1498 = vld [vmem:[#allocation19 + $0x538] sm:$0xff]
    %v1499 = vld [vmem:[#allocation19 + $0x540] sm:$0xff]
    %v1500 = vld [vmem:[#allocation19 + $0x548] sm:$0xff]
    %v1501 = vld [vmem:[#allocation19 + $0x550] sm:$0xff]
    %v1502 = vld [vmem:[#allocation19 + $0x558] sm:$0xff]
    %v1503 = vld [vmem:[#allocation19 + $0x560] sm:$0xff]
    %v1504 = vld [vmem:[#allocation19 + $0x568] sm:$0xff]
    %v1505 = vld [vmem:[#allocation19 + $0x570] sm:$0xff]
    %v1506 = vld [vmem:[#allocation19 + $0x578] sm:$0xff]
    %v1507 = vld [vmem:[#allocation19 + $0x580] sm:$0xff]
    %v1508 = vld [vmem:[#allocation19 + $0x588] sm:$0xff]
    %v1509 = vld [vmem:[#allocation19 + $0x590] sm:$0xff]
    %v1510 = vld [vmem:[#allocation19 + $0x598] sm:$0xff]
    %v1511 = vld [vmem:[#allocation19 + $0x5a0] sm:$0xff]
    %v1512 = vld [vmem:[#allocation19 + $0x5a8] sm:$0xff]
    %v1513 = vld [vmem:[#allocation19 + $0x5b0] sm:$0xff]
    %v1514 = vld [vmem:[#allocation19 + $0x5b8] sm:$0xff]
    %v1515 = vld [vmem:[#allocation19 + $0x5c0] sm:$0xff]
    %v1516 = vld [vmem:[#allocation19 + $0x5c8] sm:$0xff]
    %v1517 = vld [vmem:[#allocation19 + $0x5d0] sm:$0xff]
    %v1518 = vld [vmem:[#allocation19 + $0x5d8] sm:$0xff]
    %v1519 = vld [vmem:[#allocation19 + $0x5e0] sm:$0xff]
    %v1520 = vld [vmem:[#allocation19 + $0x5e8] sm:$0xff]
    %v1521 = vld [vmem:[#allocation19 + $0x5f0] sm:$0xff]
    %v1522 = vld [vmem:[#allocation19 + $0x5f8] sm:$0xff]
    %v1523 = vld [vmem:[#allocation19 + $0x600] sm:$0xff]
    %v1524 = vld [vmem:[#allocation19 + $0x608] sm:$0xff]
    %v1525 = vld [vmem:[#allocation19 + $0x610] sm:$0xff]
    %v1526 = vld [vmem:[#allocation19 + $0x618] sm:$0xff]
    %v1527 = vld [vmem:[#allocation19 + $0x620] sm:$0xff]
    %v1528 = vld [vmem:[#allocation19 + $0x628] sm:$0xff]
    %v1529 = vld [vmem:[#allocation19 + $0x630] sm:$0xff]
    %v1530 = vld [vmem:[#allocation19 + $0x638] sm:$0xff]
    %v1531 = vld [vmem:[#allocation19 + $0x640] sm:$0xff]
    %v1532 = vld [vmem:[#allocation19 + $0x648] sm:$0xff]
    %v1533 = vld [vmem:[#allocation19 + $0x650] sm:$0xff]
    %v1534 = vld [vmem:[#allocation19 + $0x658] sm:$0xff]
    %v1535 = vld [vmem:[#allocation19 + $0x660] sm:$0xff]
    %v1536 = vld [vmem:[#allocation19 + $0x668] sm:$0xff]
    %v1537 = vld [vmem:[#allocation19 + $0x670] sm:$0xff]
    %v1538 = vld [vmem:[#allocation19 + $0x678] sm:$0xff]
    %v1539 = vld [vmem:[#allocation19 + $0x680] sm:$0xff]
    %v1540 = vld [vmem:[#allocation19 + $0x688] sm:$0xff]
    %v1541 = vld [vmem:[#allocation19 + $0x690] sm:$0xff]
    %v1542 = vld [vmem:[#allocation19 + $0x698] sm:$0xff]
    %v1543 = vld [vmem:[#allocation19 + $0x6a0] sm:$0xff]
    %v1544 = vld [vmem:[#allocation19 + $0x6a8] sm:$0xff]
    %v1545 = vld [vmem:[#allocation19 + $0x6b0] sm:$0xff]
    %v1546 = vld [vmem:[#allocation19 + $0x6b8] sm:$0xff]
    %v1547 = vld [vmem:[#allocation19 + $0x6c0] sm:$0xff]
    %v1548 = vld [vmem:[#allocation19 + $0x6c8] sm:$0xff]
    %v1549 = vld [vmem:[#allocation19 + $0x6d0] sm:$0xff]
    %v1550 = vld [vmem:[#allocation19 + $0x6d8] sm:$0xff]
    %v1551 = vld [vmem:[#allocation19 + $0x6e0] sm:$0xff]
    %v1552 = vld [vmem:[#allocation19 + $0x6e8] sm:$0xff]
    %v1553 = vld [vmem:[#allocation19 + $0x6f0] sm:$0xff]
    %v1554 = vld [vmem:[#allocation19 + $0x6f8] sm:$0xff]
    %v1555 = vld [vmem:[#allocation19 + $0x700] sm:$0xff]
    %v1556 = vld [vmem:[#allocation19 + $0x708] sm:$0xff]
    %v1557 = vld [vmem:[#allocation19 + $0x710] sm:$0xff]
    %v1558 = vld [vmem:[#allocation19 + $0x718] sm:$0xff]
    %v1559 = vld [vmem:[#allocation19 + $0x720] sm:$0xff]
    %v1560 = vld [vmem:[#allocation19 + $0x728] sm:$0xff]
    %v1561 = vld [vmem:[#allocation19 + $0x730] sm:$0xff]
    %v1562 = vld [vmem:[#allocation19 + $0x738] sm:$0xff]
    %v1563 = vld [vmem:[#allocation19 + $0x740] sm:$0xff]
    %v1564 = vld [vmem:[#allocation19 + $0x748] sm:$0xff]
    %v1565 = vld [vmem:[#allocation19 + $0x750] sm:$0xff]
    %v1566 = vld [vmem:[#allocation19 + $0x758] sm:$0xff]
    %v1567 = vld [vmem:[#allocation19 + $0x760] sm:$0xff]
    %v1568 = vld [vmem:[#allocation19 + $0x768] sm:$0xff]
    %v1569 = vld [vmem:[#allocation19 + $0x770] sm:$0xff]
    %v1570 = vld [vmem:[#allocation19 + $0x778] sm:$0xff]
    %v1571 = vld [vmem:[#allocation19 + $0x780] sm:$0xff]
    %v1572 = vld [vmem:[#allocation19 + $0x788] sm:$0xff]
    %v1573 = vld [vmem:[#allocation19 + $0x790] sm:$0xff]
    %v1574 = vld [vmem:[#allocation19 + $0x798] sm:$0xff]
    %v1575 = vld [vmem:[#allocation19 + $0x7a0] sm:$0xff]
    %v1576 = vld [vmem:[#allocation19 + $0x7a8] sm:$0xff]
    %v1577 = vld [vmem:[#allocation19 + $0x7b0] sm:$0xff]
    %v1578 = vld [vmem:[#allocation19 + $0x7b8] sm:$0xff]
    %v1579 = vld [vmem:[#allocation19 + $0x7c0] sm:$0xff]
    %v1580 = vld [vmem:[#allocation19 + $0x7c8] sm:$0xff]
    %v1581 = vld [vmem:[#allocation19 + $0x7d0] sm:$0xff]
    %v1582 = vld [vmem:[#allocation19 + $0x7d8] sm:$0xff]
    %v1583 = vld [vmem:[#allocation19 + $0x7e0] sm:$0xff]
    %v1584 = vld [vmem:[#allocation19 + $0x7e8] sm:$0xff]
    %v1585 = vld [vmem:[#allocation19 + $0x7f0] sm:$0xff]
    %v1586 = vld [vmem:[#allocation19 + $0x7f8] sm:$0xff]
    %v1843 = vunpack.c.l.b16 %v1331
    %v1844 = vunpack.c.h.b16 %v1331
    %v1845 = vunpack.c.l.b16 %v1332
    %v1846 = vunpack.c.h.b16 %v1332
    %v1847 = vunpack.c.l.b16 %v1333
    %v1848 = vunpack.c.h.b16 %v1333
    %v1849 = vunpack.c.l.b16 %v1334
    %v1850 = vunpack.c.h.b16 %v1334
    %v1851 = vunpack.c.l.b16 %v1335
    %v1852 = vunpack.c.h.b16 %v1335
    %v1853 = vunpack.c.l.b16 %v1336
    %v1854 = vunpack.c.h.b16 %v1336
    %v1855 = vunpack.c.l.b16 %v1337
    %v1856 = vunpack.c.h.b16 %v1337
    %v1857 = vunpack.c.l.b16 %v1338
    %v1858 = vunpack.c.h.b16 %v1338
    %v1859 = vunpack.c.l.b16 %v1339
    %v1860 = vunpack.c.h.b16 %v1339
    %v1861 = vunpack.c.l.b16 %v1340
    %v1862 = vunpack.c.h.b16 %v1340
    %v1863 = vunpack.c.l.b16 %v1341
    %v1864 = vunpack.c.h.b16 %v1341
    %v1865 = vunpack.c.l.b16 %v1342
    %v1866 = vunpack.c.h.b16 %v1342
    %v1867 = vunpack.c.l.b16 %v1343
    %v1868 = vunpack.c.h.b16 %v1343
    %v1869 = vunpack.c.l.b16 %v1344
    %v1870 = vunpack.c.h.b16 %v1344
    %v1871 = vunpack.c.l.b16 %v1345
    %v1872 = vunpack.c.h.b16 %v1345
    %v1873 = vunpack.c.l.b16 %v1346
    %v1874 = vunpack.c.h.b16 %v1346
    %v1875 = vunpack.c.l.b16 %v1347
    %v1876 = vunpack.c.h.b16 %v1347
    %v1877 = vunpack.c.l.b16 %v1348
    %v1878 = vunpack.c.h.b16 %v1348
    %v1879 = vunpack.c.l.b16 %v1349
    %v1880 = vunpack.c.h.b16 %v1349
    %v1881 = vunpack.c.l.b16 %v1350
    %v1882 = vunpack.c.h.b16 %v1350
    %v1883 = vunpack.c.l.b16 %v1351
    %v1884 = vunpack.c.h.b16 %v1351
    %v1885 = vunpack.c.l.b16 %v1352
    %v1886 = vunpack.c.h.b16 %v1352
    %v1887 = vunpack.c.l.b16 %v1353
    %v1888 = vunpack.c.h.b16 %v1353
    %v1889 = vunpack.c.l.b16 %v1354
    %v1890 = vunpack.c.h.b16 %v1354
    %v1891 = vunpack.c.l.b16 %v1355
    %v1892 = vunpack.c.h.b16 %v1355
    %v1893 = vunpack.c.l.b16 %v1356
    %v1894 = vunpack.c.h.b16 %v1356
    %v1895 = vunpack.c.l.b16 %v1357
    %v1896 = vunpack.c.h.b16 %v1357
    %v1897 = vunpack.c.l.b16 %v1358
    %v1898 = vunpack.c.h.b16 %v1358
    %v1899 = vunpack.c.l.b16 %v1359
    %v1900 = vunpack.c.h.b16 %v1359
    %v1901 = vunpack.c.l.b16 %v1360
    %v1902 = vunpack.c.h.b16 %v1360
    %v1903 = vunpack.c.l.b16 %v1361
    %v1904 = vunpack.c.h.b16 %v1361
    %v1905 = vunpack.c.l.b16 %v1362
    %v1906 = vunpack.c.h.b16 %v1362
    %v1907 = vunpack.c.l.b16 %v1363
    %v1908 = vunpack.c.h.b16 %v1363
    %v1909 = vunpack.c.l.b16 %v1364
    %v1910 = vunpack.c.h.b16 %v1364
    %v1911 = vunpack.c.l.b16 %v1365
    %v1912 = vunpack.c.h.b16 %v1365
    %v1913 = vunpack.c.l.b16 %v1366
    %v1914 = vunpack.c.h.b16 %v1366
    %v1915 = vunpack.c.l.b16 %v1367
    %v1916 = vunpack.c.h.b16 %v1367
    %v1917 = vunpack.c.l.b16 %v1368
    %v1918 = vunpack.c.h.b16 %v1368
    %v1919 = vunpack.c.l.b16 %v1369
    %v1920 = vunpack.c.h.b16 %v1369
    %v1921 = vunpack.c.l.b16 %v1370
    %v1922 = vunpack.c.h.b16 %v1370
    %v1923 = vunpack.c.l.b16 %v1371
    %v1924 = vunpack.c.h.b16 %v1371
    %v1925 = vunpack.c.l.b16 %v1372
    %v1926 = vunpack.c.h.b16 %v1372
    %v1927 = vunpack.c.l.b16 %v1373
    %v1928 = vunpack.c.h.b16 %v1373
    %v1929 = vunpack.c.l.b16 %v1374
    %v1930 = vunpack.c.h.b16 %v1374
    %v1931 = vunpack.c.l.b16 %v1375
    %v1932 = vunpack.c.h.b16 %v1375
    %v1933 = vunpack.c.l.b16 %v1376
    %v1934 = vunpack.c.h.b16 %v1376
    %v1935 = vunpack.c.l.b16 %v1377
    %v1936 = vunpack.c.h.b16 %v1377
    %v1937 = vunpack.c.l.b16 %v1378
    %v1938 = vunpack.c.h.b16 %v1378
    %v1939 = vunpack.c.l.b16 %v1379
    %v1940 = vunpack.c.h.b16 %v1379
    %v1941 = vunpack.c.l.b16 %v1380
    %v1942 = vunpack.c.h.b16 %v1380
    %v1943 = vunpack.c.l.b16 %v1381
    %v1944 = vunpack.c.h.b16 %v1381
    %v1945 = vunpack.c.l.b16 %v1382
    %v1946 = vunpack.c.h.b16 %v1382
    %v1947 = vunpack.c.l.b16 %v1383
    %v1948 = vunpack.c.h.b16 %v1383
    %v1949 = vunpack.c.l.b16 %v1384
    %v1950 = vunpack.c.h.b16 %v1384
    %v1951 = vunpack.c.l.b16 %v1385
    %v1952 = vunpack.c.h.b16 %v1385
    %v1953 = vunpack.c.l.b16 %v1386
    %v1954 = vunpack.c.h.b16 %v1386
    %v1955 = vunpack.c.l.b16 %v1387
    %v1956 = vunpack.c.h.b16 %v1387
    %v1957 = vunpack.c.l.b16 %v1388
    %v1958 = vunpack.c.h.b16 %v1388
    %v1959 = vunpack.c.l.b16 %v1389
    %v1960 = vunpack.c.h.b16 %v1389
    %v1961 = vunpack.c.l.b16 %v1390
    %v1962 = vunpack.c.h.b16 %v1390
    %v1963 = vunpack.c.l.b16 %v1391
    %v1964 = vunpack.c.h.b16 %v1391
    %v1965 = vunpack.c.l.b16 %v1392
    %v1966 = vunpack.c.h.b16 %v1392
    %v1967 = vunpack.c.l.b16 %v1393
    %v1968 = vunpack.c.h.b16 %v1393
    %v1969 = vunpack.c.l.b16 %v1394
    %v1970 = vunpack.c.h.b16 %v1394
    %v1971 = vunpack.c.l.b16 %v1395
    %v1972 = vunpack.c.h.b16 %v1395
    %v1973 = vunpack.c.l.b16 %v1396
    %v1974 = vunpack.c.h.b16 %v1396
    %v1975 = vunpack.c.l.b16 %v1397
    %v1976 = vunpack.c.h.b16 %v1397
    %v1977 = vunpack.c.l.b16 %v1398
    %v1978 = vunpack.c.h.b16 %v1398
    %v1979 = vunpack.c.l.b16 %v1399
    %v1980 = vunpack.c.h.b16 %v1399
    %v1981 = vunpack.c.l.b16 %v1400
    %v1982 = vunpack.c.h.b16 %v1400
    %v1983 = vunpack.c.l.b16 %v1401
    %v1984 = vunpack.c.h.b16 %v1401
    %v1985 = vunpack.c.l.b16 %v1402
    %v1986 = vunpack.c.h.b16 %v1402
    %v1987 = vunpack.c.l.b16 %v1403
    %v1988 = vunpack.c.h.b16 %v1403
    %v1989 = vunpack.c.l.b16 %v1404
    %v1990 = vunpack.c.h.b16 %v1404
    %v1991 = vunpack.c.l.b16 %v1405
    %v1992 = vunpack.c.h.b16 %v1405
    %v1993 = vunpack.c.l.b16 %v1406
    %v1994 = vunpack.c.h.b16 %v1406
    %v1995 = vunpack.c.l.b16 %v1407
    %v1996 = vunpack.c.h.b16 %v1407
    %v1997 = vunpack.c.l.b16 %v1408
    %v1998 = vunpack.c.h.b16 %v1408
    %v1999 = vunpack.c.l.b16 %v1409
    %v2000 = vunpack.c.h.b16 %v1409
    %v2001 = vunpack.c.l.b16 %v1410
    %v2002 = vunpack.c.h.b16 %v1410
    %v2003 = vunpack.c.l.b16 %v1411
    %v2004 = vunpack.c.h.b16 %v1411
    %v2005 = vunpack.c.l.b16 %v1412
    %v2006 = vunpack.c.h.b16 %v1412
    %v2007 = vunpack.c.l.b16 %v1413
    %v2008 = vunpack.c.h.b16 %v1413
    %v2009 = vunpack.c.l.b16 %v1414
    %v2010 = vunpack.c.h.b16 %v1414
    %v2011 = vunpack.c.l.b16 %v1415
    %v2012 = vunpack.c.h.b16 %v1415
    %v2013 = vunpack.c.l.b16 %v1416
    %v2014 = vunpack.c.h.b16 %v1416
    %v2015 = vunpack.c.l.b16 %v1417
    %v2016 = vunpack.c.h.b16 %v1417
    %v2017 = vunpack.c.l.b16 %v1418
    %v2018 = vunpack.c.h.b16 %v1418
    %v2019 = vunpack.c.l.b16 %v1419
    %v2020 = vunpack.c.h.b16 %v1419
    %v2021 = vunpack.c.l.b16 %v1420
    %v2022 = vunpack.c.h.b16 %v1420
    %v2023 = vunpack.c.l.b16 %v1421
    %v2024 = vunpack.c.h.b16 %v1421
    %v2025 = vunpack.c.l.b16 %v1422
    %v2026 = vunpack.c.h.b16 %v1422
    %v2027 = vunpack.c.l.b16 %v1423
    %v2028 = vunpack.c.h.b16 %v1423
    %v2029 = vunpack.c.l.b16 %v1424
    %v2030 = vunpack.c.h.b16 %v1424
    %v2031 = vunpack.c.l.b16 %v1425
    %v2032 = vunpack.c.h.b16 %v1425
    %v2033 = vunpack.c.l.b16 %v1426
    %v2034 = vunpack.c.h.b16 %v1426
    %v2035 = vunpack.c.l.b16 %v1427
    %v2036 = vunpack.c.h.b16 %v1427
    %v2037 = vunpack.c.l.b16 %v1428
    %v2038 = vunpack.c.h.b16 %v1428
    %v2039 = vunpack.c.l.b16 %v1429
    %v2040 = vunpack.c.h.b16 %v1429
    %v2041 = vunpack.c.l.b16 %v1430
    %v2042 = vunpack.c.h.b16 %v1430
    %v2043 = vunpack.c.l.b16 %v1431
    %v2044 = vunpack.c.h.b16 %v1431
    %v2045 = vunpack.c.l.b16 %v1432
    %v2046 = vunpack.c.h.b16 %v1432
    %v2047 = vunpack.c.l.b16 %v1433
    %v2048 = vunpack.c.h.b16 %v1433
    %v2049 = vunpack.c.l.b16 %v1434
    %v2050 = vunpack.c.h.b16 %v1434
    %v2051 = vunpack.c.l.b16 %v1435
    %v2052 = vunpack.c.h.b16 %v1435
    %v2053 = vunpack.c.l.b16 %v1436
    %v2054 = vunpack.c.h.b16 %v1436
    %v2055 = vunpack.c.l.b16 %v1437
    %v2056 = vunpack.c.h.b16 %v1437
    %v2057 = vunpack.c.l.b16 %v1438
    %v2058 = vunpack.c.h.b16 %v1438
    %v2059 = vunpack.c.l.b16 %v1439
    %v2060 = vunpack.c.h.b16 %v1439
    %v2061 = vunpack.c.l.b16 %v1440
    %v2062 = vunpack.c.h.b16 %v1440
    %v2063 = vunpack.c.l.b16 %v1441
    %v2064 = vunpack.c.h.b16 %v1441
    %v2065 = vunpack.c.l.b16 %v1442
    %v2066 = vunpack.c.h.b16 %v1442
    %v2067 = vunpack.c.l.b16 %v1443
    %v2068 = vunpack.c.h.b16 %v1443
    %v2069 = vunpack.c.l.b16 %v1444
    %v2070 = vunpack.c.h.b16 %v1444
    %v2071 = vunpack.c.l.b16 %v1445
    %v2072 = vunpack.c.h.b16 %v1445
    %v2073 = vunpack.c.l.b16 %v1446
    %v2074 = vunpack.c.h.b16 %v1446
    %v2075 = vunpack.c.l.b16 %v1447
    %v2076 = vunpack.c.h.b16 %v1447
    %v2077 = vunpack.c.l.b16 %v1448
    %v2078 = vunpack.c.h.b16 %v1448
    %v2079 = vunpack.c.l.b16 %v1449
    %v2080 = vunpack.c.h.b16 %v1449
    %v2081 = vunpack.c.l.b16 %v1450
    %v2082 = vunpack.c.h.b16 %v1450
    %v2083 = vunpack.c.l.b16 %v1451
    %v2084 = vunpack.c.h.b16 %v1451
    %v2085 = vunpack.c.l.b16 %v1452
    %v2086 = vunpack.c.h.b16 %v1452
    %v2087 = vunpack.c.l.b16 %v1453
    %v2088 = vunpack.c.h.b16 %v1453
    %v2089 = vunpack.c.l.b16 %v1454
    %v2090 = vunpack.c.h.b16 %v1454
    %v2091 = vunpack.c.l.b16 %v1455
    %v2092 = vunpack.c.h.b16 %v1455
    %v2093 = vunpack.c.l.b16 %v1456
    %v2094 = vunpack.c.h.b16 %v1456
    %v2095 = vunpack.c.l.b16 %v1457
    %v2096 = vunpack.c.h.b16 %v1457
    %v2097 = vunpack.c.l.b16 %v1458
    %v2098 = vunpack.c.h.b16 %v1458
    %v2099 = vunpack.c.l.b16 %v1459
    %v2100 = vunpack.c.h.b16 %v1459
    %v2101 = vunpack.c.l.b16 %v1460
    %v2102 = vunpack.c.h.b16 %v1460
    %v2103 = vunpack.c.l.b16 %v1461
    %v2104 = vunpack.c.h.b16 %v1461
    %v2105 = vunpack.c.l.b16 %v1462
    %v2106 = vunpack.c.h.b16 %v1462
    %v2107 = vunpack.c.l.b16 %v1463
    %v2108 = vunpack.c.h.b16 %v1463
    %v2109 = vunpack.c.l.b16 %v1464
    %v2110 = vunpack.c.h.b16 %v1464
    %v2111 = vunpack.c.l.b16 %v1465
    %v2112 = vunpack.c.h.b16 %v1465
    %v2113 = vunpack.c.l.b16 %v1466
    %v2114 = vunpack.c.h.b16 %v1466
    %v2115 = vunpack.c.l.b16 %v1467
    %v2116 = vunpack.c.h.b16 %v1467
    %v2117 = vunpack.c.l.b16 %v1468
    %v2118 = vunpack.c.h.b16 %v1468
    %v2119 = vunpack.c.l.b16 %v1469
    %v2120 = vunpack.c.h.b16 %v1469
    %v2121 = vunpack.c.l.b16 %v1470
    %v2122 = vunpack.c.h.b16 %v1470
    %v2123 = vunpack.c.l.b16 %v1471
    %v2124 = vunpack.c.h.b16 %v1471
    %v2125 = vunpack.c.l.b16 %v1472
    %v2126 = vunpack.c.h.b16 %v1472
    %v2127 = vunpack.c.l.b16 %v1473
    %v2128 = vunpack.c.h.b16 %v1473
    %v2129 = vunpack.c.l.b16 %v1474
    %v2130 = vunpack.c.h.b16 %v1474
    %v2131 = vunpack.c.l.b16 %v1475
    %v2132 = vunpack.c.h.b16 %v1475
    %v2133 = vunpack.c.l.b16 %v1476
    %v2134 = vunpack.c.h.b16 %v1476
    %v2135 = vunpack.c.l.b16 %v1477
    %v2136 = vunpack.c.h.b16 %v1477
    %v2137 = vunpack.c.l.b16 %v1478
    %v2138 = vunpack.c.h.b16 %v1478
    %v2139 = vunpack.c.l.b16 %v1479
    %v2140 = vunpack.c.h.b16 %v1479
    %v2141 = vunpack.c.l.b16 %v1480
    %v2142 = vunpack.c.h.b16 %v1480
    %v2143 = vunpack.c.l.b16 %v1481
    %v2144 = vunpack.c.h.b16 %v1481
    %v2145 = vunpack.c.l.b16 %v1482
    %v2146 = vunpack.c.h.b16 %v1482
    %v2147 = vunpack.c.l.b16 %v1483
    %v2148 = vunpack.c.h.b16 %v1483
    %v2149 = vunpack.c.l.b16 %v1484
    %v2150 = vunpack.c.h.b16 %v1484
    %v2151 = vunpack.c.l.b16 %v1485
    %v2152 = vunpack.c.h.b16 %v1485
    %v2153 = vunpack.c.l.b16 %v1486
    %v2154 = vunpack.c.h.b16 %v1486
    %v2155 = vunpack.c.l.b16 %v1487
    %v2156 = vunpack.c.h.b16 %v1487
    %v2157 = vunpack.c.l.b16 %v1488
    %v2158 = vunpack.c.h.b16 %v1488
    %v2159 = vunpack.c.l.b16 %v1489
    %v2160 = vunpack.c.h.b16 %v1489
    %v2161 = vunpack.c.l.b16 %v1490
    %v2162 = vunpack.c.h.b16 %v1490
    %v2163 = vunpack.c.l.b16 %v1491
    %v2164 = vunpack.c.h.b16 %v1491
    %v2165 = vunpack.c.l.b16 %v1492
    %v2166 = vunpack.c.h.b16 %v1492
    %v2167 = vunpack.c.l.b16 %v1493
    %v2168 = vunpack.c.h.b16 %v1493
    %v2169 = vunpack.c.l.b16 %v1494
    %v2170 = vunpack.c.h.b16 %v1494
    %v2171 = vunpack.c.l.b16 %v1495
    %v2172 = vunpack.c.h.b16 %v1495
    %v2173 = vunpack.c.l.b16 %v1496
    %v2174 = vunpack.c.h.b16 %v1496
    %v2175 = vunpack.c.l.b16 %v1497
    %v2176 = vunpack.c.h.b16 %v1497
    %v2177 = vunpack.c.l.b16 %v1498
    %v2178 = vunpack.c.h.b16 %v1498
    %v2179 = vunpack.c.l.b16 %v1499
    %v2180 = vunpack.c.h.b16 %v1499
    %v2181 = vunpack.c.l.b16 %v1500
    %v2182 = vunpack.c.h.b16 %v1500
    %v2183 = vunpack.c.l.b16 %v1501
    %v2184 = vunpack.c.h.b16 %v1501
    %v2185 = vunpack.c.l.b16 %v1502
    %v2186 = vunpack.c.h.b16 %v1502
    %v2187 = vunpack.c.l.b16 %v1503
    %v2188 = vunpack.c.h.b16 %v1503
    %v2189 = vunpack.c.l.b16 %v1504
    %v2190 = vunpack.c.h.b16 %v1504
    %v2191 = vunpack.c.l.b16 %v1505
    %v2192 = vunpack.c.h.b16 %v1505
    %v2193 = vunpack.c.l.b16 %v1506
    %v2194 = vunpack.c.h.b16 %v1506
    %v2195 = vunpack.c.l.b16 %v1507
    %v2196 = vunpack.c.h.b16 %v1507
    %v2197 = vunpack.c.l.b16 %v1508
    %v2198 = vunpack.c.h.b16 %v1508
    %v2199 = vunpack.c.l.b16 %v1509
    %v2200 = vunpack.c.h.b16 %v1509
    %v2201 = vunpack.c.l.b16 %v1510
    %v2202 = vunpack.c.h.b16 %v1510
    %v2203 = vunpack.c.l.b16 %v1511
    %v2204 = vunpack.c.h.b16 %v1511
    %v2205 = vunpack.c.l.b16 %v1512
    %v2206 = vunpack.c.h.b16 %v1512
    %v2207 = vunpack.c.l.b16 %v1513
    %v2208 = vunpack.c.h.b16 %v1513
    %v2209 = vunpack.c.l.b16 %v1514
    %v2210 = vunpack.c.h.b16 %v1514
    %v2211 = vunpack.c.l.b16 %v1515
    %v2212 = vunpack.c.h.b16 %v1515
    %v2213 = vunpack.c.l.b16 %v1516
    %v2214 = vunpack.c.h.b16 %v1516
    %v2215 = vunpack.c.l.b16 %v1517
    %v2216 = vunpack.c.h.b16 %v1517
    %v2217 = vunpack.c.l.b16 %v1518
    %v2218 = vunpack.c.h.b16 %v1518
    %v2219 = vunpack.c.l.b16 %v1519
    %v2220 = vunpack.c.h.b16 %v1519
    %v2221 = vunpack.c.l.b16 %v1520
    %v2222 = vunpack.c.h.b16 %v1520
    %v2223 = vunpack.c.l.b16 %v1521
    %v2224 = vunpack.c.h.b16 %v1521
    %v2225 = vunpack.c.l.b16 %v1522
    %v2226 = vunpack.c.h.b16 %v1522
    %v2227 = vunpack.c.l.b16 %v1523
    %v2228 = vunpack.c.h.b16 %v1523
    %v2229 = vunpack.c.l.b16 %v1524
    %v2230 = vunpack.c.h.b16 %v1524
    %v2231 = vunpack.c.l.b16 %v1525
    %v2232 = vunpack.c.h.b16 %v1525
    %v2233 = vunpack.c.l.b16 %v1526
    %v2234 = vunpack.c.h.b16 %v1526
    %v2235 = vunpack.c.l.b16 %v1527
    %v2236 = vunpack.c.h.b16 %v1527
    %v2237 = vunpack.c.l.b16 %v1528
    %v2238 = vunpack.c.h.b16 %v1528
    %v2239 = vunpack.c.l.b16 %v1529
    %v2240 = vunpack.c.h.b16 %v1529
    %v2241 = vunpack.c.l.b16 %v1530
    %v2242 = vunpack.c.h.b16 %v1530
    %v2243 = vunpack.c.l.b16 %v1531
    %v2244 = vunpack.c.h.b16 %v1531
    %v2245 = vunpack.c.l.b16 %v1532
    %v2246 = vunpack.c.h.b16 %v1532
    %v2247 = vunpack.c.l.b16 %v1533
    %v2248 = vunpack.c.h.b16 %v1533
    %v2249 = vunpack.c.l.b16 %v1534
    %v2250 = vunpack.c.h.b16 %v1534
    %v2251 = vunpack.c.l.b16 %v1535
    %v2252 = vunpack.c.h.b16 %v1535
    %v2253 = vunpack.c.l.b16 %v1536
    %v2254 = vunpack.c.h.b16 %v1536
    %v2255 = vunpack.c.l.b16 %v1537
    %v2256 = vunpack.c.h.b16 %v1537
    %v2257 = vunpack.c.l.b16 %v1538
    %v2258 = vunpack.c.h.b16 %v1538
    %v2259 = vunpack.c.l.b16 %v1539
    %v2260 = vunpack.c.h.b16 %v1539
    %v2261 = vunpack.c.l.b16 %v1540
    %v2262 = vunpack.c.h.b16 %v1540
    %v2263 = vunpack.c.l.b16 %v1541
    %v2264 = vunpack.c.h.b16 %v1541
    %v2265 = vunpack.c.l.b16 %v1542
    %v2266 = vunpack.c.h.b16 %v1542
    %v2267 = vunpack.c.l.b16 %v1543
    %v2268 = vunpack.c.h.b16 %v1543
    %v2269 = vunpack.c.l.b16 %v1544
    %v2270 = vunpack.c.h.b16 %v1544
    %v2271 = vunpack.c.l.b16 %v1545
    %v2272 = vunpack.c.h.b16 %v1545
    %v2273 = vunpack.c.l.b16 %v1546
    %v2274 = vunpack.c.h.b16 %v1546
    %v2275 = vunpack.c.l.b16 %v1547
    %v2276 = vunpack.c.h.b16 %v1547
    %v2277 = vunpack.c.l.b16 %v1548
    %v2278 = vunpack.c.h.b16 %v1548
    %v2279 = vunpack.c.l.b16 %v1549
    %v2280 = vunpack.c.h.b16 %v1549
    %v2281 = vunpack.c.l.b16 %v1550
    %v2282 = vunpack.c.h.b16 %v1550
    %v2283 = vunpack.c.l.b16 %v1551
    %v2284 = vunpack.c.h.b16 %v1551
    %v2285 = vunpack.c.l.b16 %v1552
    %v2286 = vunpack.c.h.b16 %v1552
    %v2287 = vunpack.c.l.b16 %v1553
    %v2288 = vunpack.c.h.b16 %v1553
    %v2289 = vunpack.c.l.b16 %v1554
    %v2290 = vunpack.c.h.b16 %v1554
    %v2291 = vunpack.c.l.b16 %v1555
    %v2292 = vunpack.c.h.b16 %v1555
    %v2293 = vunpack.c.l.b16 %v1556
    %v2294 = vunpack.c.h.b16 %v1556
    %v2295 = vunpack.c.l.b16 %v1557
    %v2296 = vunpack.c.h.b16 %v1557
    %v2297 = vunpack.c.l.b16 %v1558
    %v2298 = vunpack.c.h.b16 %v1558
    %v2299 = vunpack.c.l.b16 %v1559
    %v2300 = vunpack.c.h.b16 %v1559
    %v2301 = vunpack.c.l.b16 %v1560
    %v2302 = vunpack.c.h.b16 %v1560
    %v2303 = vunpack.c.l.b16 %v1561
    %v2304 = vunpack.c.h.b16 %v1561
    %v2305 = vunpack.c.l.b16 %v1562
    %v2306 = vunpack.c.h.b16 %v1562
    %v2307 = vunpack.c.l.b16 %v1563
    %v2308 = vunpack.c.h.b16 %v1563
    %v2309 = vunpack.c.l.b16 %v1564
    %v2310 = vunpack.c.h.b16 %v1564
    %v2311 = vunpack.c.l.b16 %v1565
    %v2312 = vunpack.c.h.b16 %v1565
    %v2313 = vunpack.c.l.b16 %v1566
    %v2314 = vunpack.c.h.b16 %v1566
    %v2315 = vunpack.c.l.b16 %v1567
    %v2316 = vunpack.c.h.b16 %v1567
    %v2317 = vunpack.c.l.b16 %v1568
    %v2318 = vunpack.c.h.b16 %v1568
    %v2319 = vunpack.c.l.b16 %v1569
    %v2320 = vunpack.c.h.b16 %v1569
    %v2321 = vunpack.c.l.b16 %v1570
    %v2322 = vunpack.c.h.b16 %v1570
    %v2323 = vunpack.c.l.b16 %v1571
    %v2324 = vunpack.c.h.b16 %v1571
    %v2325 = vunpack.c.l.b16 %v1572
    %v2326 = vunpack.c.h.b16 %v1572
    %v2327 = vunpack.c.l.b16 %v1573
    %v2328 = vunpack.c.h.b16 %v1573
    %v2329 = vunpack.c.l.b16 %v1574
    %v2330 = vunpack.c.h.b16 %v1574
    %v2331 = vunpack.c.l.b16 %v1575
    %v2332 = vunpack.c.h.b16 %v1575
    %v2333 = vunpack.c.l.b16 %v1576
    %v2334 = vunpack.c.h.b16 %v1576
    %v2335 = vunpack.c.l.b16 %v1577
    %v2336 = vunpack.c.h.b16 %v1577
    %v2337 = vunpack.c.l.b16 %v1578
    %v2338 = vunpack.c.h.b16 %v1578
    %v2339 = vunpack.c.l.b16 %v1579
    %v2340 = vunpack.c.h.b16 %v1579
    %v2341 = vunpack.c.l.b16 %v1580
    %v2342 = vunpack.c.h.b16 %v1580
    %v2343 = vunpack.c.l.b16 %v1581
    %v2344 = vunpack.c.h.b16 %v1581
    %v2345 = vunpack.c.l.b16 %v1582
    %v2346 = vunpack.c.h.b16 %v1582
    %v2347 = vunpack.c.l.b16 %v1583
    %v2348 = vunpack.c.h.b16 %v1583
    %v2349 = vunpack.c.l.b16 %v1584
    %v2350 = vunpack.c.h.b16 %v1584
    %v2351 = vunpack.c.l.b16 %v1585
    %v2352 = vunpack.c.h.b16 %v1585
    %v2353 = vunpack.c.l.b16 %v1586
    %v2354 = vunpack.c.h.b16 %v1586
    %v2355 = vpack.c.b16 %v1851, %v1843
    %v2356 = vpack.c.b16 %v1852, %v1844
    %v2357 = vpack.c.b16 %v1853, %v1845
    %v2358 = vpack.c.b16 %v1854, %v1846
    %v2359 = vpack.c.b16 %v1855, %v1847
    %v2360 = vpack.c.b16 %v1856, %v1848
    %v2361 = vpack.c.b16 %v1857, %v1849
    %v2362 = vpack.c.b16 %v1858, %v1850
    %v2363 = vpack.c.b16 %v1867, %v1859
    %v2364 = vpack.c.b16 %v1868, %v1860
    %v2365 = vpack.c.b16 %v1869, %v1861
    %v2366 = vpack.c.b16 %v1870, %v1862
    %v2367 = vpack.c.b16 %v1871, %v1863
    %v2368 = vpack.c.b16 %v1872, %v1864
    %v2369 = vpack.c.b16 %v1873, %v1865
    %v2370 = vpack.c.b16 %v1874, %v1866
    %v2371 = vpack.c.b16 %v1883, %v1875
    %v2372 = vpack.c.b16 %v1884, %v1876
    %v2373 = vpack.c.b16 %v1885, %v1877
    %v2374 = vpack.c.b16 %v1886, %v1878
    %v2375 = vpack.c.b16 %v1887, %v1879
    %v2376 = vpack.c.b16 %v1888, %v1880
    %v2377 = vpack.c.b16 %v1889, %v1881
    %v2378 = vpack.c.b16 %v1890, %v1882
    %v2379 = vpack.c.b16 %v1899, %v1891
    %v2380 = vpack.c.b16 %v1900, %v1892
    %v2381 = vpack.c.b16 %v1901, %v1893
    %v2382 = vpack.c.b16 %v1902, %v1894
    %v2383 = vpack.c.b16 %v1903, %v1895
    %v2384 = vpack.c.b16 %v1904, %v1896
    %v2385 = vpack.c.b16 %v1905, %v1897
    %v2386 = vpack.c.b16 %v1906, %v1898
    %v2387 = vpack.c.b16 %v1915, %v1907
    %v2388 = vpack.c.b16 %v1916, %v1908
    %v2389 = vpack.c.b16 %v1917, %v1909
    %v2390 = vpack.c.b16 %v1918, %v1910
    %v2391 = vpack.c.b16 %v1919, %v1911
    %v2392 = vpack.c.b16 %v1920, %v1912
    %v2393 = vpack.c.b16 %v1921, %v1913
    %v2394 = vpack.c.b16 %v1922, %v1914
    %v2395 = vpack.c.b16 %v1931, %v1923
    %v2396 = vpack.c.b16 %v1932, %v1924
    %v2397 = vpack.c.b16 %v1933, %v1925
    %v2398 = vpack.c.b16 %v1934, %v1926
    %v2399 = vpack.c.b16 %v1935, %v1927
    %v2400 = vpack.c.b16 %v1936, %v1928
    %v2401 = vpack.c.b16 %v1937, %v1929
    %v2402 = vpack.c.b16 %v1938, %v1930
    %v2403 = vpack.c.b16 %v1947, %v1939
    %v2404 = vpack.c.b16 %v1948, %v1940
    %v2405 = vpack.c.b16 %v1949, %v1941
    %v2406 = vpack.c.b16 %v1950, %v1942
    %v2407 = vpack.c.b16 %v1951, %v1943
    %v2408 = vpack.c.b16 %v1952, %v1944
    %v2409 = vpack.c.b16 %v1953, %v1945
    %v2410 = vpack.c.b16 %v1954, %v1946
    %v2411 = vpack.c.b16 %v1963, %v1955
    %v2412 = vpack.c.b16 %v1964, %v1956
    %v2413 = vpack.c.b16 %v1965, %v1957
    %v2414 = vpack.c.b16 %v1966, %v1958
    %v2415 = vpack.c.b16 %v1967, %v1959
    %v2416 = vpack.c.b16 %v1968, %v1960
    %v2417 = vpack.c.b16 %v1969, %v1961
    %v2418 = vpack.c.b16 %v1970, %v1962
    %v2419 = vpack.c.b16 %v1979, %v1971
    %v2420 = vpack.c.b16 %v1980, %v1972
    %v2421 = vpack.c.b16 %v1981, %v1973
    %v2422 = vpack.c.b16 %v1982, %v1974
    %v2423 = vpack.c.b16 %v1983, %v1975
    %v2424 = vpack.c.b16 %v1984, %v1976
    %v2425 = vpack.c.b16 %v1985, %v1977
    %v2426 = vpack.c.b16 %v1986, %v1978
    %v2427 = vpack.c.b16 %v1995, %v1987
    %v2428 = vpack.c.b16 %v1996, %v1988
    %v2429 = vpack.c.b16 %v1997, %v1989
    %v2430 = vpack.c.b16 %v1998, %v1990
    %v2431 = vpack.c.b16 %v1999, %v1991
    %v2432 = vpack.c.b16 %v2000, %v1992
    %v2433 = vpack.c.b16 %v2001, %v1993
    %v2434 = vpack.c.b16 %v2002, %v1994
    %v2435 = vpack.c.b16 %v2011, %v2003
    %v2436 = vpack.c.b16 %v2012, %v2004
    %v2437 = vpack.c.b16 %v2013, %v2005
    %v2438 = vpack.c.b16 %v2014, %v2006
    %v2439 = vpack.c.b16 %v2015, %v2007
    %v2440 = vpack.c.b16 %v2016, %v2008
    %v2441 = vpack.c.b16 %v2017, %v2009
    %v2442 = vpack.c.b16 %v2018, %v2010
    %v2443 = vpack.c.b16 %v2027, %v2019
    %v2444 = vpack.c.b16 %v2028, %v2020
    %v2445 = vpack.c.b16 %v2029, %v2021
    %v2446 = vpack.c.b16 %v2030, %v2022
    %v2447 = vpack.c.b16 %v2031, %v2023
    %v2448 = vpack.c.b16 %v2032, %v2024
    %v2449 = vpack.c.b16 %v2033, %v2025
    %v2450 = vpack.c.b16 %v2034, %v2026
    %v2451 = vpack.c.b16 %v2043, %v2035
    %v2452 = vpack.c.b16 %v2044, %v2036
    %v2453 = vpack.c.b16 %v2045, %v2037
    %v2454 = vpack.c.b16 %v2046, %v2038
    %v2455 = vpack.c.b16 %v2047, %v2039
    %v2456 = vpack.c.b16 %v2048, %v2040
    %v2457 = vpack.c.b16 %v2049, %v2041
    %v2458 = vpack.c.b16 %v2050, %v2042
    %v2459 = vpack.c.b16 %v2059, %v2051
    %v2460 = vpack.c.b16 %v2060, %v2052
    %v2461 = vpack.c.b16 %v2061, %v2053
    %v2462 = vpack.c.b16 %v2062, %v2054
    %v2463 = vpack.c.b16 %v2063, %v2055
    %v2464 = vpack.c.b16 %v2064, %v2056
    %v2465 = vpack.c.b16 %v2065, %v2057
    %v2466 = vpack.c.b16 %v2066, %v2058
    %v2467 = vpack.c.b16 %v2075, %v2067
    %v2468 = vpack.c.b16 %v2076, %v2068
    %v2469 = vpack.c.b16 %v2077, %v2069
    %v2470 = vpack.c.b16 %v2078, %v2070
    %v2471 = vpack.c.b16 %v2079, %v2071
    %v2472 = vpack.c.b16 %v2080, %v2072
    %v2473 = vpack.c.b16 %v2081, %v2073
    %v2474 = vpack.c.b16 %v2082, %v2074
    %v2475 = vpack.c.b16 %v2091, %v2083
    %v2476 = vpack.c.b16 %v2092, %v2084
    %v2477 = vpack.c.b16 %v2093, %v2085
    %v2478 = vpack.c.b16 %v2094, %v2086
    %v2479 = vpack.c.b16 %v2095, %v2087
    %v2480 = vpack.c.b16 %v2096, %v2088
    %v2481 = vpack.c.b16 %v2097, %v2089
    %v2482 = vpack.c.b16 %v2098, %v2090
    %v2483 = vpack.c.b16 %v2107, %v2099
    %v2484 = vpack.c.b16 %v2108, %v2100
    %v2485 = vpack.c.b16 %v2109, %v2101
    %v2486 = vpack.c.b16 %v2110, %v2102
    %v2487 = vpack.c.b16 %v2111, %v2103
    %v2488 = vpack.c.b16 %v2112, %v2104
    %v2489 = vpack.c.b16 %v2113, %v2105
    %v2490 = vpack.c.b16 %v2114, %v2106
    %v2491 = vpack.c.b16 %v2123, %v2115
    %v2492 = vpack.c.b16 %v2124, %v2116
    %v2493 = vpack.c.b16 %v2125, %v2117
    %v2494 = vpack.c.b16 %v2126, %v2118
    %v2495 = vpack.c.b16 %v2127, %v2119
    %v2496 = vpack.c.b16 %v2128, %v2120
    %v2497 = vpack.c.b16 %v2129, %v2121
    %v2498 = vpack.c.b16 %v2130, %v2122
    %v2499 = vpack.c.b16 %v2139, %v2131
    %v2500 = vpack.c.b16 %v2140, %v2132
    %v2501 = vpack.c.b16 %v2141, %v2133
    %v2502 = vpack.c.b16 %v2142, %v2134
    %v2503 = vpack.c.b16 %v2143, %v2135
    %v2504 = vpack.c.b16 %v2144, %v2136
    %v2505 = vpack.c.b16 %v2145, %v2137
    %v2506 = vpack.c.b16 %v2146, %v2138
    %v2507 = vpack.c.b16 %v2155, %v2147
    %v2508 = vpack.c.b16 %v2156, %v2148
    %v2509 = vpack.c.b16 %v2157, %v2149
    %v2510 = vpack.c.b16 %v2158, %v2150
    %v2511 = vpack.c.b16 %v2159, %v2151
    %v2512 = vpack.c.b16 %v2160, %v2152
    %v2513 = vpack.c.b16 %v2161, %v2153
    %v2514 = vpack.c.b16 %v2162, %v2154
    %v2515 = vpack.c.b16 %v2171, %v2163
    %v2516 = vpack.c.b16 %v2172, %v2164
    %v2517 = vpack.c.b16 %v2173, %v2165
    %v2518 = vpack.c.b16 %v2174, %v2166
    %v2519 = vpack.c.b16 %v2175, %v2167
    %v2520 = vpack.c.b16 %v2176, %v2168
    %v2521 = vpack.c.b16 %v2177, %v2169
    %v2522 = vpack.c.b16 %v2178, %v2170
    %v2523 = vpack.c.b16 %v2187, %v2179
    %v2524 = vpack.c.b16 %v2188, %v2180
    %v2525 = vpack.c.b16 %v2189, %v2181
    %v2526 = vpack.c.b16 %v2190, %v2182
    %v2527 = vpack.c.b16 %v2191, %v2183
    %v2528 = vpack.c.b16 %v2192, %v2184
    %v2529 = vpack.c.b16 %v2193, %v2185
    %v2530 = vpack.c.b16 %v2194, %v2186
    %v2531 = vpack.c.b16 %v2203, %v2195
    %v2532 = vpack.c.b16 %v2204, %v2196
    %v2533 = vpack.c.b16 %v2205, %v2197
    %v2534 = vpack.c.b16 %v2206, %v2198
    %v2535 = vpack.c.b16 %v2207, %v2199
    %v2536 = vpack.c.b16 %v2208, %v2200
    %v2537 = vpack.c.b16 %v2209, %v2201
    %v2538 = vpack.c.b16 %v2210, %v2202
    %v2539 = vpack.c.b16 %v2219, %v2211
    %v2540 = vpack.c.b16 %v2220, %v2212
    %v2541 = vpack.c.b16 %v2221, %v2213
    %v2542 = vpack.c.b16 %v2222, %v2214
    %v2543 = vpack.c.b16 %v2223, %v2215
    %v2544 = vpack.c.b16 %v2224, %v2216
    %v2545 = vpack.c.b16 %v2225, %v2217
    %v2546 = vpack.c.b16 %v2226, %v2218
    %v2547 = vpack.c.b16 %v2235, %v2227
    %v2548 = vpack.c.b16 %v2236, %v2228
    %v2549 = vpack.c.b16 %v2237, %v2229
    %v2550 = vpack.c.b16 %v2238, %v2230
    %v2551 = vpack.c.b16 %v2239, %v2231
    %v2552 = vpack.c.b16 %v2240, %v2232
    %v2553 = vpack.c.b16 %v2241, %v2233
    %v2554 = vpack.c.b16 %v2242, %v2234
    %v2555 = vpack.c.b16 %v2251, %v2243
    %v2556 = vpack.c.b16 %v2252, %v2244
    %v2557 = vpack.c.b16 %v2253, %v2245
    %v2558 = vpack.c.b16 %v2254, %v2246
    %v2559 = vpack.c.b16 %v2255, %v2247
    %v2560 = vpack.c.b16 %v2256, %v2248
    %v2561 = vpack.c.b16 %v2257, %v2249
    %v2562 = vpack.c.b16 %v2258, %v2250
    %v2563 = vpack.c.b16 %v2267, %v2259
    %v2564 = vpack.c.b16 %v2268, %v2260
    %v2565 = vpack.c.b16 %v2269, %v2261
    %v2566 = vpack.c.b16 %v2270, %v2262
    %v2567 = vpack.c.b16 %v2271, %v2263
    %v2568 = vpack.c.b16 %v2272, %v2264
    %v2569 = vpack.c.b16 %v2273, %v2265
    %v2570 = vpack.c.b16 %v2274, %v2266
    %v2571 = vpack.c.b16 %v2283, %v2275
    %v2572 = vpack.c.b16 %v2284, %v2276
    %v2573 = vpack.c.b16 %v2285, %v2277
    %v2574 = vpack.c.b16 %v2286, %v2278
    %v2575 = vpack.c.b16 %v2287, %v2279
    %v2576 = vpack.c.b16 %v2288, %v2280
    %v2577 = vpack.c.b16 %v2289, %v2281
    %v2578 = vpack.c.b16 %v2290, %v2282
    %v2579 = vpack.c.b16 %v2299, %v2291
    %v2580 = vpack.c.b16 %v2300, %v2292
    %v2581 = vpack.c.b16 %v2301, %v2293
    %v2582 = vpack.c.b16 %v2302, %v2294
    %v2583 = vpack.c.b16 %v2303, %v2295
    %v2584 = vpack.c.b16 %v2304, %v2296
    %v2585 = vpack.c.b16 %v2305, %v2297
    %v2586 = vpack.c.b16 %v2306, %v2298
    %v2587 = vpack.c.b16 %v2315, %v2307
    %v2588 = vpack.c.b16 %v2316, %v2308
    %v2589 = vpack.c.b16 %v2317, %v2309
    %v2590 = vpack.c.b16 %v2318, %v2310
    %v2591 = vpack.c.b16 %v2319, %v2311
    %v2592 = vpack.c.b16 %v2320, %v2312
    %v2593 = vpack.c.b16 %v2321, %v2313
    %v2594 = vpack.c.b16 %v2322, %v2314
    %v2595 = vpack.c.b16 %v2331, %v2323
    %v2596 = vpack.c.b16 %v2332, %v2324
    %v2597 = vpack.c.b16 %v2333, %v2325
    %v2598 = vpack.c.b16 %v2334, %v2326
    %v2599 = vpack.c.b16 %v2335, %v2327
    %v2600 = vpack.c.b16 %v2336, %v2328
    %v2601 = vpack.c.b16 %v2337, %v2329
    %v2602 = vpack.c.b16 %v2338, %v2330
    %v2603 = vpack.c.b16 %v2347, %v2339
    %v2604 = vpack.c.b16 %v2348, %v2340
    %v2605 = vpack.c.b16 %v2349, %v2341
    %v2606 = vpack.c.b16 %v2350, %v2342
    %v2607 = vpack.c.b16 %v2351, %v2343
    %v2608 = vpack.c.b16 %v2352, %v2344
    %v2609 = vpack.c.b16 %v2353, %v2345
    %v2610 = vpack.c.b16 %v2354, %v2346
    %2867 = vmatprep.subr.bf16.mxu0 %v2412
    %2868 = vmatpush1.bf16.msra.mxu0 %v2411
    %2869 = vmatprep.subr.bf16.mxu0 %v2404
    %2870 = vmatpush1.bf16.msra.mxu0 %v2403
    %2871 = vmatprep.subr.bf16.mxu0 %v2396
    %2872 = vmatpush1.bf16.msra.mxu0 %v2395
    %2873 = vmatprep.subr.bf16.mxu0 %v2388
    %2874 = vmatpush1.bf16.msra.mxu0 %v2387
    %2875 = vmatprep.subr.bf16.mxu0 %v2380
    %2876 = vmatpush1.bf16.msra.mxu0 %v2379
    %2877 = vmatprep.subr.bf16.mxu0 %v2372
    %2878 = vmatpush1.bf16.msra.mxu0 %v2371
    %2879 = vmatprep.subr.bf16.mxu0 %v2364
    %2880 = vmatpush1.bf16.msra.mxu0 %v2363
    %2881 = vmatprep.subr.bf16.mxu0 %v2356
    %2882 = vmatpush1.bf16.msra.mxu0 %v2355
    %2883 = vmatprep.subr.bf16.mxu0 %v2476
    %2884 = vmatpush2.bf16.msra.mxu0 %v2475
    %2885 = vmatprep.subr.bf16.mxu0 %v2468
    %2886 = vmatpush2.bf16.msra.mxu0 %v2467
    %2887 = vmatprep.subr.bf16.mxu0 %v2460
    %2888 = vmatpush2.bf16.msra.mxu0 %v2459
    %2889 = vmatprep.subr.bf16.mxu0 %v2452
    %2890 = vmatpush2.bf16.msra.mxu0 %v2451
    %2891 = vmatprep.subr.bf16.mxu0 %v2444
    %2892 = vmatpush2.bf16.msra.mxu0 %v2443
    %2893 = vmatprep.subr.bf16.mxu0 %v2436
    %2894 = vmatpush2.bf16.msra.mxu0 %v2435
    %2895 = vmatprep.subr.bf16.mxu0 %v2428
    %2896 = vmatpush2.bf16.msra.mxu0 %v2427
    %2897 = vmatprep.subr.bf16.mxu0 %v2420
    %2898 = vmatpush2.bf16.msra.mxu0 %v2419
    %2899 = vmatprep.mubr.bf16.mxu0 %v1328
    %2900 = vmatmul.mubr.bf16.gmra.mxu0 %v1327
    %v2901 = vpop.f32.mrf.mxu0
    %v2902 = vadd.f32 0.0, %v2901
    %v2903 = vpop.f32.mrf.mxu0
    %v2904 = vadd.f32 0.0, %v2903
    %v2905 = vpop.f32.mrf.mxu0
    %v2906 = vadd.f32 0.0, %v2905
    %v2907 = vpop.f32.mrf.mxu0
    %v2908 = vadd.f32 0.0, %v2907
    %2909 = vdwg.mxu0
    %2910 = vmatprep.subr.bf16.mxu0 %v2540
    %2911 = vmatpush1.bf16.msra.mxu0 %v2539
    %2912 = vmatprep.subr.bf16.mxu0 %v2532
    %2913 = vmatpush1.bf16.msra.mxu0 %v2531
    %2914 = vmatprep.subr.bf16.mxu0 %v2524
    %2915 = vmatpush1.bf16.msra.mxu0 %v2523
    %2916 = vmatprep.subr.bf16.mxu0 %v2516
    %2917 = vmatpush1.bf16.msra.mxu0 %v2515
    %2918 = vmatprep.subr.bf16.mxu0 %v2508
    %2919 = vmatpush1.bf16.msra.mxu0 %v2507
    %2920 = vmatprep.subr.bf16.mxu0 %v2500
    %2921 = vmatpush1.bf16.msra.mxu0 %v2499
    %2922 = vmatprep.subr.bf16.mxu0 %v2492
    %2923 = vmatpush1.bf16.msra.mxu0 %v2491
    %2924 = vmatprep.subr.bf16.mxu0 %v2484
    %2925 = vmatpush1.bf16.msra.mxu0 %v2483
    %2926 = vmatprep.subr.bf16.mxu0 %v2604
    %2927 = vmatpush2.bf16.msra.mxu0 %v2603
    %2928 = vmatprep.subr.bf16.mxu0 %v2596
    %2929 = vmatpush2.bf16.msra.mxu0 %v2595
    %2930 = vmatprep.subr.bf16.mxu0 %v2588
    %2931 = vmatpush2.bf16.msra.mxu0 %v2587
    %2932 = vmatprep.subr.bf16.mxu0 %v2580
    %2933 = vmatpush2.bf16.msra.mxu0 %v2579
    %2934 = vmatprep.subr.bf16.mxu0 %v2572
    %2935 = vmatpush2.bf16.msra.mxu0 %v2571
    %2936 = vmatprep.subr.bf16.mxu0 %v2564
    %2937 = vmatpush2.bf16.msra.mxu0 %v2563
    %2938 = vmatprep.subr.bf16.mxu0 %v2556
    %2939 = vmatpush2.bf16.msra.mxu0 %v2555
    %2940 = vmatprep.subr.bf16.mxu0 %v2548
    %2941 = vmatpush2.bf16.msra.mxu0 %v2547
    %2942 = vmatprep.mubr.bf16.mxu0 %v1330
    %2943 = vmatmul.mubr.bf16.gmra.mxu0 %v1329
    %v2944 = vpop.f32.mrf.mxu0
    %v2945 = vadd.f32 %v2902, %v2944
    %v2946 = vpop.f32.mrf.mxu0
    %v2947 = vadd.f32 %v2904, %v2946
    %v2948 = vpop.f32.mrf.mxu0
    %v2949 = vadd.f32 %v2906, %v2948
    %v2950 = vpop.f32.mrf.mxu0
    %v2951 = vadd.f32 %v2908, %v2950
    %2952 = vdwg.mxu0
    %2953 = vmatprep.subr.bf16.mxu0 %v2414
    %2954 = vmatpush1.bf16.msra.mxu0 %v2413
    %2955 = vmatprep.subr.bf16.mxu0 %v2406
    %2956 = vmatpush1.bf16.msra.mxu0 %v2405
    %2957 = vmatprep.subr.bf16.mxu0 %v2398
    %2958 = vmatpush1.bf16.msra.mxu0 %v2397
    %2959 = vmatprep.subr.bf16.mxu0 %v2390
    %2960 = vmatpush1.bf16.msra.mxu0 %v2389
    %2961 = vmatprep.subr.bf16.mxu0 %v2382
    %2962 = vmatpush1.bf16.msra.mxu0 %v2381
    %2963 = vmatprep.subr.bf16.mxu0 %v2374
    %2964 = vmatpush1.bf16.msra.mxu0 %v2373
    %2965 = vmatprep.subr.bf16.mxu0 %v2366
    %2966 = vmatpush1.bf16.msra.mxu0 %v2365
    %2967 = vmatprep.subr.bf16.mxu0 %v2358
    %2968 = vmatpush1.bf16.msra.mxu0 %v2357
    %2969 = vmatprep.subr.bf16.mxu0 %v2478
    %2970 = vmatpush2.bf16.msra.mxu0 %v2477
    %2971 = vmatprep.subr.bf16.mxu0 %v2470
    %2972 = vmatpush2.bf16.msra.mxu0 %v2469
    %2973 = vmatprep.subr.bf16.mxu0 %v2462
    %2974 = vmatpush2.bf16.msra.mxu0 %v2461
    %2975 = vmatprep.subr.bf16.mxu0 %v2454
    %2976 = vmatpush2.bf16.msra.mxu0 %v2453
    %2977 = vmatprep.subr.bf16.mxu0 %v2446
    %2978 = vmatpush2.bf16.msra.mxu0 %v2445
    %2979 = vmatprep.subr.bf16.mxu0 %v2438
    %2980 = vmatpush2.bf16.msra.mxu0 %v2437
    %2981 = vmatprep.subr.bf16.mxu0 %v2430
    %2982 = vmatpush2.bf16.msra.mxu0 %v2429
    %2983 = vmatprep.subr.bf16.mxu0 %v2422
    %2984 = vmatpush2.bf16.msra.mxu0 %v2421
    %2985 = vmatprep.mubr.bf16.mxu0 %v1328
    %2986 = vmatmul.mubr.bf16.gmra.mxu0 %v1327
    %v2987 = vpop.f32.mrf.mxu0
    %v2988 = vadd.f32 0.0, %v2987
    %v2989 = vpop.f32.mrf.mxu0
    %v2990 = vadd.f32 0.0, %v2989
    %v2991 = vpop.f32.mrf.mxu0
    %v2992 = vadd.f32 0.0, %v2991
    %v2993 = vpop.f32.mrf.mxu0
    %v2994 = vadd.f32 0.0, %v2993
    %2995 = vdwg.mxu0
    %2996 = vmatprep.subr.bf16.mxu0 %v2542
    %2997 = vmatpush1.bf16.msra.mxu0 %v2541
    %2998 = vmatprep.subr.bf16.mxu0 %v2534
    %2999 = vmatpush1.bf16.msra.mxu0 %v2533
    %3000 = vmatprep.subr.bf16.mxu0 %v2526
    %3001 = vmatpush1.bf16.msra.mxu0 %v2525
    %3002 = vmatprep.subr.bf16.mxu0 %v2518
    %3003 = vmatpush1.bf16.msra.mxu0 %v2517
    %3004 = vmatprep.subr.bf16.mxu0 %v2510
    %3005 = vmatpush1.bf16.msra.mxu0 %v2509
    %3006 = vmatprep.subr.bf16.mxu0 %v2502
    %3007 = vmatpush1.bf16.msra.mxu0 %v2501
    %3008 = vmatprep.subr.bf16.mxu0 %v2494
    %3009 = vmatpush1.bf16.msra.mxu0 %v2493
    %3010 = vmatprep.subr.bf16.mxu0 %v2486
    %3011 = vmatpush1.bf16.msra.mxu0 %v2485
    %3012 = vmatprep.subr.bf16.mxu0 %v2606
    %3013 = vmatpush2.bf16.msra.mxu0 %v2605
    %3014 = vmatprep.subr.bf16.mxu0 %v2598
    %3015 = vmatpush2.bf16.msra.mxu0 %v2597
    %3016 = vmatprep.subr.bf16.mxu0 %v2590
    %3017 = vmatpush2.bf16.msra.mxu0 %v2589
    %3018 = vmatprep.subr.bf16.mxu0 %v2582
    %3019 = vmatpush2.bf16.msra.mxu0 %v2581
    %3020 = vmatprep.subr.bf16.mxu0 %v2574
    %3021 = vmatpush2.bf16.msra.mxu0 %v2573
    %3022 = vmatprep.subr.bf16.mxu0 %v2566
    %3023 = vmatpush2.bf16.msra.mxu0 %v2565
    %3024 = vmatprep.subr.bf16.mxu0 %v2558
    %3025 = vmatpush2.bf16.msra.mxu0 %v2557
    %3026 = vmatprep.subr.bf16.mxu0 %v2550
    %3027 = vmatpush2.bf16.msra.mxu0 %v2549
    %3028 = vmatprep.mubr.bf16.mxu0 %v1330
    %3029 = vmatmul.mubr.bf16.gmra.mxu0 %v1329
    %v3030 = vpop.f32.mrf.mxu0
    %v3031 = vadd.f32 %v2988, %v3030
    %v3032 = vpop.f32.mrf.mxu0
    %v3033 = vadd.f32 %v2990, %v3032
    %v3034 = vpop.f32.mrf.mxu0
    %v3035 = vadd.f32 %v2992, %v3034
    %v3036 = vpop.f32.mrf.mxu0
    %v3037 = vadd.f32 %v2994, %v3036
    %3038 = vdwg.mxu0
    %3039 = vmatprep.subr.bf16.mxu0 %v2416
    %3040 = vmatpush1.bf16.msra.mxu0 %v2415
    %3041 = vmatprep.subr.bf16.mxu0 %v2408
    %3042 = vmatpush1.bf16.msra.mxu0 %v2407
    %3043 = vmatprep.subr.bf16.mxu0 %v2400
    %3044 = vmatpush1.bf16.msra.mxu0 %v2399
    %3045 = vmatprep.subr.bf16.mxu0 %v2392
    %3046 = vmatpush1.bf16.msra.mxu0 %v2391
    %3047 = vmatprep.subr.bf16.mxu0 %v2384
    %3048 = vmatpush1.bf16.msra.mxu0 %v2383
    %3049 = vmatprep.subr.bf16.mxu0 %v2376
    %3050 = vmatpush1.bf16.msra.mxu0 %v2375
    %3051 = vmatprep.subr.bf16.mxu0 %v2368
    %3052 = vmatpush1.bf16.msra.mxu0 %v2367
    %3053 = vmatprep.subr.bf16.mxu0 %v2360
    %3054 = vmatpush1.bf16.msra.mxu0 %v2359
    %3055 = vmatprep.subr.bf16.mxu0 %v2480
    %3056 = vmatpush2.bf16.msra.mxu0 %v2479
    %3057 = vmatprep.subr.bf16.mxu0 %v2472
    %3058 = vmatpush2.bf16.msra.mxu0 %v2471
    %3059 = vmatprep.subr.bf16.mxu0 %v2464
    %3060 = vmatpush2.bf16.msra.mxu0 %v2463
    %3061 = vmatprep.subr.bf16.mxu0 %v2456
    %3062 = vmatpush2.bf16.msra.mxu0 %v2455
    %3063 = vmatprep.subr.bf16.mxu0 %v2448
    %3064 = vmatpush2.bf16.msra.mxu0 %v2447
    %3065 = vmatprep.subr.bf16.mxu0 %v2440
    %3066 = vmatpush2.bf16.msra.mxu0 %v2439
    %3067 = vmatprep.subr.bf16.mxu0 %v2432
    %3068 = vmatpush2.bf16.msra.mxu0 %v2431
    %3069 = vmatprep.subr.bf16.mxu0 %v2424
    %3070 = vmatpush2.bf16.msra.mxu0 %v2423
    %3071 = vmatprep.mubr.bf16.mxu0 %v1328
    %3072 = vmatmul.mubr.bf16.gmra.mxu0 %v1327
    %v3073 = vpop.f32.mrf.mxu0
    %v3074 = vadd.f32 0.0, %v3073
    %v3075 = vpop.f32.mrf.mxu0
    %v3076 = vadd.f32 0.0, %v3075
    %v3077 = vpop.f32.mrf.mxu0
    %v3078 = vadd.f32 0.0, %v3077
    %v3079 = vpop.f32.mrf.mxu0
    %v3080 = vadd.f32 0.0, %v3079
    %3081 = vdwg.mxu0
    %3082 = vmatprep.subr.bf16.mxu0 %v2544
    %3083 = vmatpush1.bf16.msra.mxu0 %v2543
    %3084 = vmatprep.subr.bf16.mxu0 %v2536
    %3085 = vmatpush1.bf16.msra.mxu0 %v2535
    %3086 = vmatprep.subr.bf16.mxu0 %v2528
    %3087 = vmatpush1.bf16.msra.mxu0 %v2527
    %3088 = vmatprep.subr.bf16.mxu0 %v2520
    %3089 = vmatpush1.bf16.msra.mxu0 %v2519
    %3090 = vmatprep.subr.bf16.mxu0 %v2512
    %3091 = vmatpush1.bf16.msra.mxu0 %v2511
    %3092 = vmatprep.subr.bf16.mxu0 %v2504
    %3093 = vmatpush1.bf16.msra.mxu0 %v2503
    %3094 = vmatprep.subr.bf16.mxu0 %v2496
    %3095 = vmatpush1.bf16.msra.mxu0 %v2495
    %3096 = vmatprep.subr.bf16.mxu0 %v2488
    %3097 = vmatpush1.bf16.msra.mxu0 %v2487
    %3098 = vmatprep.subr.bf16.mxu0 %v2608
    %3099 = vmatpush2.bf16.msra.mxu0 %v2607
    %3100 = vmatprep.subr.bf16.mxu0 %v2600
    %3101 = vmatpush2.bf16.msra.mxu0 %v2599
    %3102 = vmatprep.subr.bf16.mxu0 %v2592
    %3103 = vmatpush2.bf16.msra.mxu0 %v2591
    %3104 = vmatprep.subr.bf16.mxu0 %v2584
    %3105 = vmatpush2.bf16.msra.mxu0 %v2583
    %3106 = vmatprep.subr.bf16.mxu0 %v2576
    %3107 = vmatpush2.bf16.msra.mxu0 %v2575
    %3108 = vmatprep.subr.bf16.mxu0 %v2568
    %3109 = vmatpush2.bf16.msra.mxu0 %v2567
    %3110 = vmatprep.subr.bf16.mxu0 %v2560
    %3111 = vmatpush2.bf16.msra.mxu0 %v2559
    %3112 = vmatprep.subr.bf16.mxu0 %v2552
    %3113 = vmatpush2.bf16.msra.mxu0 %v2551
    %3114 = vmatprep.mubr.bf16.mxu0 %v1330
    %3115 = vmatmul.mubr.bf16.gmra.mxu0 %v1329
    %v3116 = vpop.f32.mrf.mxu0
    %v3117 = vadd.f32 %v3074, %v3116
    %v3118 = vpop.f32.mrf.mxu0
    %v3119 = vadd.f32 %v3076, %v3118
    %v3120 = vpop.f32.mrf.mxu0
    %v3121 = vadd.f32 %v3078, %v3120
    %v3122 = vpop.f32.mrf.mxu0
    %v3123 = vadd.f32 %v3080, %v3122
    %3124 = vdwg.mxu0
    %3125 = vmatprep.subr.bf16.mxu0 %v2418
    %3126 = vmatpush1.bf16.msra.mxu0 %v2417
    %3127 = vmatprep.subr.bf16.mxu0 %v2410
    %3128 = vmatpush1.bf16.msra.mxu0 %v2409
    %3129 = vmatprep.subr.bf16.mxu0 %v2402
    %3130 = vmatpush1.bf16.msra.mxu0 %v2401
    %3131 = vmatprep.subr.bf16.mxu0 %v2394
    %3132 = vmatpush1.bf16.msra.mxu0 %v2393
    %3133 = vmatprep.subr.bf16.mxu0 %v2386
    %3134 = vmatpush1.bf16.msra.mxu0 %v2385
    %3135 = vmatprep.subr.bf16.mxu0 %v2378
    %3136 = vmatpush1.bf16.msra.mxu0 %v2377
    %3137 = vmatprep.subr.bf16.mxu0 %v2370
    %3138 = vmatpush1.bf16.msra.mxu0 %v2369
    %3139 = vmatprep.subr.bf16.mxu0 %v2362
    %3140 = vmatpush1.bf16.msra.mxu0 %v2361
    %3141 = vmatprep.subr.bf16.mxu0 %v2482
    %3142 = vmatpush2.bf16.msra.mxu0 %v2481
    %3143 = vmatprep.subr.bf16.mxu0 %v2474
    %3144 = vmatpush2.bf16.msra.mxu0 %v2473
    %3145 = vmatprep.subr.bf16.mxu0 %v2466
    %3146 = vmatpush2.bf16.msra.mxu0 %v2465
    %3147 = vmatprep.subr.bf16.mxu0 %v2458
    %3148 = vmatpush2.bf16.msra.mxu0 %v2457
    %3149 = vmatprep.subr.bf16.mxu0 %v2450
    %3150 = vmatpush2.bf16.msra.mxu0 %v2449
    %3151 = vmatprep.subr.bf16.mxu0 %v2442
    %3152 = vmatpush2.bf16.msra.mxu0 %v2441
    %3153 = vmatprep.subr.bf16.mxu0 %v2434
    %3154 = vmatpush2.bf16.msra.mxu0 %v2433
    %3155 = vmatprep.subr.bf16.mxu0 %v2426
    %3156 = vmatpush2.bf16.msra.mxu0 %v2425
    %3157 = vmatprep.mubr.bf16.mxu0 %v1328
    %3158 = vmatmul.mubr.bf16.gmra.mxu0 %v1327
    %v3159 = vpop.f32.mrf.mxu0
    %v3160 = vadd.f32 0.0, %v3159
    %v3161 = vpop.f32.mrf.mxu0
    %v3162 = vadd.f32 0.0, %v3161
    %v3163 = vpop.f32.mrf.mxu0
    %v3164 = vadd.f32 0.0, %v3163
    %v3165 = vpop.f32.mrf.mxu0
    %v3166 = vadd.f32 0.0, %v3165
    %3167 = vdwg.mxu0
    %3168 = vmatprep.subr.bf16.mxu0 %v2546
    %3169 = vmatpush1.bf16.msra.mxu0 %v2545
    %3170 = vmatprep.subr.bf16.mxu0 %v2538
    %3171 = vmatpush1.bf16.msra.mxu0 %v2537
    %3172 = vmatprep.subr.bf16.mxu0 %v2530
    %3173 = vmatpush1.bf16.msra.mxu0 %v2529
    %3174 = vmatprep.subr.bf16.mxu0 %v2522
    %3175 = vmatpush1.bf16.msra.mxu0 %v2521
    %3176 = vmatprep.subr.bf16.mxu0 %v2514
    %3177 = vmatpush1.bf16.msra.mxu0 %v2513
    %3178 = vmatprep.subr.bf16.mxu0 %v2506
    %3179 = vmatpush1.bf16.msra.mxu0 %v2505
    %3180 = vmatprep.subr.bf16.mxu0 %v2498
    %3181 = vmatpush1.bf16.msra.mxu0 %v2497
    %3182 = vmatprep.subr.bf16.mxu0 %v2490
    %3183 = vmatpush1.bf16.msra.mxu0 %v2489
    %3184 = vmatprep.subr.bf16.mxu0 %v2610
    %3185 = vmatpush2.bf16.msra.mxu0 %v2609
    %3186 = vmatprep.subr.bf16.mxu0 %v2602
    %3187 = vmatpush2.bf16.msra.mxu0 %v2601
    %3188 = vmatprep.subr.bf16.mxu0 %v2594
    %3189 = vmatpush2.bf16.msra.mxu0 %v2593
    %3190 = vmatprep.subr.bf16.mxu0 %v2586
    %3191 = vmatpush2.bf16.msra.mxu0 %v2585
    %3192 = vmatprep.subr.bf16.mxu0 %v2578
    %3193 = vmatpush2.bf16.msra.mxu0 %v2577
    %3194 = vmatprep.subr.bf16.mxu0 %v2570
    %3195 = vmatpush2.bf16.msra.mxu0 %v2569
    %3196 = vmatprep.subr.bf16.mxu0 %v2562
    %3197 = vmatpush2.bf16.msra.mxu0 %v2561
    %3198 = vmatprep.subr.bf16.mxu0 %v2554
    %3199 = vmatpush2.bf16.msra.mxu0 %v2553
    %3200 = vmatprep.mubr.bf16.mxu0 %v1330
    %3201 = vmatmul.mubr.bf16.gmra.mxu0 %v1329
    %v3202 = vpop.f32.mrf.mxu0
    %v3203 = vadd.f32 %v3160, %v3202
    %v3204 = vpop.f32.mrf.mxu0
    %v3205 = vadd.f32 %v3162, %v3204
    %v3206 = vpop.f32.mrf.mxu0
    %v3207 = vadd.f32 %v3164, %v3206
    %v3208 = vpop.f32.mrf.mxu0
    %v3209 = vadd.f32 %v3166, %v3208
    %3210 = vdwg.mxu0
    %v3211 = vmul.f32 %v2945, %v327
    %v3212 = vmul.f32 %v2947, %v327
    %v3213 = vmul.f32 %v3031, %v327
    %v3214 = vmul.f32 %v3033, %v327
    %v3215 = vmul.f32 %v3117, %v327
    %v3216 = vmul.f32 %v3119, %v327
    %v3217 = vmul.f32 %v3203, %v327
    %v3218 = vmul.f32 %v3205, %v327
    %v3219 = vmul.f32 %v2949, %v328
    %v3220 = vmul.f32 %v2951, %v328
    %v3221 = vmul.f32 %v3035, %v328
    %v3222 = vmul.f32 %v3037, %v328
    %v3223 = vmul.f32 %v3121, %v328
    %v3224 = vmul.f32 %v3123, %v328
    %v3225 = vmul.f32 %v3207, %v328
    %v3226 = vmul.f32 %v3209, %v328
    %v3227 = vadd.f32 %v3211, %v3219
    %v3228 = vrot.slane %v3227, 4
    %v3229 = vadd.f32 %v3227, %v3228
    %v3230 = vrot.slane %v3229, 2
    %v3231 = vadd.f32 %v3229, %v3230
    %v3232 = vrot.slane %v3231, 1
    %v3233 = vadd.f32 %v3231, %v3232
    %v3234 = vadd.f32 %v3212, %v3220
    %v3235 = vrot.slane %v3234, 4
    %v3236 = vadd.f32 %v3234, %v3235
    %v3237 = vrot.slane %v3236, 2
    %v3238 = vadd.f32 %v3236, %v3237
    %v3239 = vrot.slane %v3238, 1
    %v3240 = vadd.f32 %v3238, %v3239
    %v3241 = vadd.f32 %v3213, %v3221
    %v3242 = vrot.slane %v3241, 4
    %v3243 = vadd.f32 %v3241, %v3242
    %v3244 = vrot.slane %v3243, 2
    %v3245 = vadd.f32 %v3243, %v3244
    %v3246 = vrot.slane %v3245, 1
    %v3247 = vadd.f32 %v3245, %v3246
    %v3248 = vadd.f32 %v3214, %v3222
    %v3249 = vrot.slane %v3248, 4
    %v3250 = vadd.f32 %v3248, %v3249
    %v3251 = vrot.slane %v3250, 2
    %v3252 = vadd.f32 %v3250, %v3251
    %v3253 = vrot.slane %v3252, 1
    %v3254 = vadd.f32 %v3252, %v3253
    %v3255 = vadd.f32 %v3215, %v3223
    %v3256 = vrot.slane %v3255, 4
    %v3257 = vadd.f32 %v3255, %v3256
    %v3258 = vrot.slane %v3257, 2
    %v3259 = vadd.f32 %v3257, %v3258
    %v3260 = vrot.slane %v3259, 1
    %v3261 = vadd.f32 %v3259, %v3260
    %v3262 = vadd.f32 %v3216, %v3224
    %v3263 = vrot.slane %v3262, 4
    %v3264 = vadd.f32 %v3262, %v3263
    %v3265 = vrot.slane %v3264, 2
    %v3266 = vadd.f32 %v3264, %v3265
    %v3267 = vrot.slane %v3266, 1
    %v3268 = vadd.f32 %v3266, %v3267
    %v3269 = vadd.f32 %v3217, %v3225
    %v3270 = vrot.slane %v3269, 4
    %v3271 = vadd.f32 %v3269, %v3270
    %v3272 = vrot.slane %v3271, 2
    %v3273 = vadd.f32 %v3271, %v3272
    %v3274 = vrot.slane %v3273, 1
    %v3275 = vadd.f32 %v3273, %v3274
    %v3276 = vadd.f32 %v3218, %v3226
    %v3277 = vrot.slane %v3276, 4
    %v3278 = vadd.f32 %v3276, %v3277
    %v3279 = vrot.slane %v3278, 2
    %v3280 = vadd.f32 %v3278, %v3279
    %v3281 = vrot.slane %v3280, 1
    %v3282 = vadd.f32 %v3280, %v3281
    %v3283 = vmul.f32 %v3233, %v496
    %v3284 = vmul.f32 %v3240, %v496
    %v3285 = vmul.f32 %v3247, %v496
    %v3286 = vmul.f32 %v3254, %v496
    %v3287 = vmul.f32 %v3261, %v496
    %v3288 = vmul.f32 %v3268, %v496
    %v3289 = vmul.f32 %v3275, %v496
    %v3290 = vmul.f32 %v3282, %v496
    %v3291 = vsub.f32 %v2945, %v3283
    %v3292 = vsub.f32 %v2947, %v3284
    %v3293 = vsub.f32 %v3031, %v3285
    %v3294 = vsub.f32 %v3033, %v3286
    %v3295 = vsub.f32 %v3117, %v3287
    %v3296 = vsub.f32 %v3119, %v3288
    %v3297 = vsub.f32 %v3203, %v3289
    %v3298 = vsub.f32 %v3205, %v3290
    %v3299 = vsub.f32 %v2949, %v3283
    %v3300 = vsub.f32 %v2951, %v3284
    %v3301 = vsub.f32 %v3035, %v3285
    %v3302 = vsub.f32 %v3037, %v3286
    %v3303 = vsub.f32 %v3121, %v3287
    %v3304 = vsub.f32 %v3123, %v3288
    %v3305 = vsub.f32 %v3207, %v3289
    %v3306 = vsub.f32 %v3209, %v3290
    %v3307 = vmul.f32 %v3291, %v327
    %v3308 = vmul.f32 %v3292, %v327
    %v3309 = vmul.f32 %v3293, %v327
    %v3310 = vmul.f32 %v3294, %v327
    %v3311 = vmul.f32 %v3295, %v327
    %v3312 = vmul.f32 %v3296, %v327
    %v3313 = vmul.f32 %v3297, %v327
    %v3314 = vmul.f32 %v3298, %v327
    %v3315 = vmul.f32 %v3299, %v328
    %v3316 = vmul.f32 %v3300, %v328
    %v3317 = vmul.f32 %v3301, %v328
    %v3318 = vmul.f32 %v3302, %v328
    %v3319 = vmul.f32 %v3303, %v328
    %v3320 = vmul.f32 %v3304, %v328
    %v3321 = vmul.f32 %v3305, %v328
    %v3322 = vmul.f32 %v3306, %v328
    %v3323 = vmul.f32 %v3307, %v3307
    %v3324 = vmul.f32 %v3308, %v3308
    %v3325 = vmul.f32 %v3309, %v3309
    %v3326 = vmul.f32 %v3310, %v3310
    %v3327 = vmul.f32 %v3311, %v3311
    %v3328 = vmul.f32 %v3312, %v3312
    %v3329 = vmul.f32 %v3313, %v3313
    %v3330 = vmul.f32 %v3314, %v3314
    %v3331 = vmul.f32 %v3315, %v3315
    %v3332 = vmul.f32 %v3316, %v3316
    %v3333 = vmul.f32 %v3317, %v3317
    %v3334 = vmul.f32 %v3318, %v3318
    %v3335 = vmul.f32 %v3319, %v3319
    %v3336 = vmul.f32 %v3320, %v3320
    %v3337 = vmul.f32 %v3321, %v3321
    %v3338 = vmul.f32 %v3322, %v3322
    %v3339 = vadd.f32 %v3323, %v3331
    %v3340 = vrot.slane %v3339, 4
    %v3341 = vadd.f32 %v3339, %v3340
    %v3342 = vrot.slane %v3341, 2
    %v3343 = vadd.f32 %v3341, %v3342
    %v3344 = vrot.slane %v3343, 1
    %v3345 = vadd.f32 %v3343, %v3344
    %v3346 = vadd.f32 %v3324, %v3332
    %v3347 = vrot.slane %v3346, 4
    %v3348 = vadd.f32 %v3346, %v3347
    %v3349 = vrot.slane %v3348, 2
    %v3350 = vadd.f32 %v3348, %v3349
    %v3351 = vrot.slane %v3350, 1
    %v3352 = vadd.f32 %v3350, %v3351
    %v3353 = vadd.f32 %v3325, %v3333
    %v3354 = vrot.slane %v3353, 4
    %v3355 = vadd.f32 %v3353, %v3354
    %v3356 = vrot.slane %v3355, 2
    %v3357 = vadd.f32 %v3355, %v3356
    %v3358 = vrot.slane %v3357, 1
    %v3359 = vadd.f32 %v3357, %v3358
    %v3360 = vadd.f32 %v3326, %v3334
    %v3361 = vrot.slane %v3360, 4
    %v3362 = vadd.f32 %v3360, %v3361
    %v3363 = vrot.slane %v3362, 2
    %v3364 = vadd.f32 %v3362, %v3363
    %v3365 = vrot.slane %v3364, 1
    %v3366 = vadd.f32 %v3364, %v3365
    %v3367 = vadd.f32 %v3327, %v3335
    %v3368 = vrot.slane %v3367, 4
    %v3369 = vadd.f32 %v3367, %v3368
    %v3370 = vrot.slane %v3369, 2
    %v3371 = vadd.f32 %v3369, %v3370
    %v3372 = vrot.slane %v3371, 1
    %v3373 = vadd.f32 %v3371, %v3372
    %v3374 = vadd.f32 %v3328, %v3336
    %v3375 = vrot.slane %v3374, 4
    %v3376 = vadd.f32 %v3374, %v3375
    %v3377 = vrot.slane %v3376, 2
    %v3378 = vadd.f32 %v3376, %v3377
    %v3379 = vrot.slane %v3378, 1
    %v3380 = vadd.f32 %v3378, %v3379
    %v3381 = vadd.f32 %v3329, %v3337
    %v3382 = vrot.slane %v3381, 4
    %v3383 = vadd.f32 %v3381, %v3382
    %v3384 = vrot.slane %v3383, 2
    %v3385 = vadd.f32 %v3383, %v3384
    %v3386 = vrot.slane %v3385, 1
    %v3387 = vadd.f32 %v3385, %v3386
    %v3388 = vadd.f32 %v3330, %v3338
    %v3389 = vrot.slane %v3388, 4
    %v3390 = vadd.f32 %v3388, %v3389
    %v3391 = vrot.slane %v3390, 2
    %v3392 = vadd.f32 %v3390, %v3391
    %v3393 = vrot.slane %v3392, 1
    %v3394 = vadd.f32 %v3392, %v3393
    %v3395 = vmul.f32 %v3345, %v496
    %v3396 = vmul.f32 %v3352, %v496
    %v3397 = vmul.f32 %v3359, %v496
    %v3398 = vmul.f32 %v3366, %v496
    %v3399 = vmul.f32 %v3373, %v496
    %v3400 = vmul.f32 %v3380, %v496
    %v3401 = vmul.f32 %v3387, %v496
    %v3402 = vmul.f32 %v3394, %v496
    %v3403 = vld [vmem:[%s11] sm:$0xff]
    %v3404 = vadd.f32 %v3395, 0.8
    %v3405 = vadd.f32 %v3396, 0.8
    %v3406 = vadd.f32 %v3397, 0.8
    %v3407 = vadd.f32 %v3398, 0.8
    %v3408 = vadd.f32 %v3399, 0.8
    %v3409 = vadd.f32 %v3400, 0.8
    %v3410 = vadd.f32 %v3401, 0.8
    %v3411 = vadd.f32 %v3402, 0.8
    %v3412 = vrsqrt.pop %v3404
    %v3413 = vrsqrt.pop %v3405
    %v3414 = vrsqrt.pop %v3406
    %v3415 = vrsqrt.pop %v3407
    %v3416 = vrsqrt.pop %v3408
    %v3417 = vrsqrt.pop %v3409
    %v3418 = vrsqrt.pop %v3410
    %v3419 = vrsqrt.pop %v3411
    %v3428 = vcombine.low %v3412, %v3413
    %v3429 = vcombine.low %v3414, %v3415
    %v3430 = vcombine.low %v3416, %v3417
    %v3431 = vcombine.low %v3418, %v3419
    %v3433 = vunpack.c.l.s4 1966171168
    %v3434 = vunpack.c.0.s8 %v3433
    %v3435 = vlaneseq
    %v3436 = vshrl.u32 %v3435, 7
    %v3437 = vsub.s32 %v3434, %v3436
    %v3438 = vrot.slane %v3428, %v3437
    %v3440 = vunpack.c.l.s4 1966171168
    %v3441 = vunpack.c.0.s8 %v3440
    %v3442 = vlaneseq
    %v3443 = vshrl.u32 %v3442, 7
    %v3444 = vsub.s32 %v3441, %v3443
    %v3445 = vrot.slane %v3429, %v3444
    %v3447 = vunpack.c.l.s4 1966171168
    %v3448 = vunpack.c.0.s8 %v3447
    %v3449 = vlaneseq
    %v3450 = vshrl.u32 %v3449, 7
    %v3451 = vsub.s32 %v3448, %v3450
    %v3452 = vrot.slane %v3430, %v3451
    %v3454 = vunpack.c.l.s4 1966171168
    %v3455 = vunpack.c.0.s8 %v3454
    %v3456 = vlaneseq
    %v3457 = vshrl.u32 %v3456, 7
    %v3458 = vsub.s32 %v3455, %v3457
    %v3459 = vrot.slane %v3431, %v3458
    %v3460 = vcombine.low %v3438, %v3445
    %v3461 = vcombine.low %v3452, %v3459
    %v3463 = vunpack.c.l.s4 1966171168
    %v3464 = vunpack.c.0.s8 %v3463
    %v3465 = vlaneseq
    %v3466 = vshrl.u32 %v3465, 7
    %v3467 = vsub.s32 %v3464, %v3466
    %v3468 = vrot.slane %v3460, %v3467
    %v3470 = vunpack.c.l.s4 1966171168
    %v3471 = vunpack.c.0.s8 %v3470
    %v3472 = vlaneseq
    %v3473 = vshrl.u32 %v3472, 7
    %v3474 = vsub.s32 %v3471, %v3473
    %v3475 = vrot.slane %v3461, %v3474
    %v3476 = vcombine.low %v3468, %v3475
    %v3478 = vmul.f32 %v3403, %v3476
    %v3479 = vld [vmem:[%s12] sm:$0xff]
    %v3481 = vlaneseq
    %v3482 = vshrl.u32 %v3481, 7
    %v3483 = vsub.s32 0, %v3482
    %v3484 = vrot.slane %v3478, %v3483
    %v3485 = vlaneseq
    %v3486 = vshrl.u32 %v3485, 7
    %v3487 = vsub.s32 1, %v3486
    %v3488 = vrot.slane %v3478, %v3487
    %v3489 = vlaneseq
    %v3490 = vshrl.u32 %v3489, 7
    %v3491 = vsub.s32 2, %v3490
    %v3492 = vrot.slane %v3478, %v3491
    %v3493 = vlaneseq
    %v3494 = vshrl.u32 %v3493, 7
    %v3495 = vsub.s32 3, %v3494
    %v3496 = vrot.slane %v3478, %v3495
    %v3497 = vlaneseq
    %v3498 = vshrl.u32 %v3497, 7
    %v3499 = vsub.s32 4, %v3498
    %v3500 = vrot.slane %v3478, %v3499
    %v3501 = vlaneseq
    %v3502 = vshrl.u32 %v3501, 7
    %v3503 = vsub.s32 5, %v3502
    %v3504 = vrot.slane %v3478, %v3503
    %v3505 = vlaneseq
    %v3506 = vshrl.u32 %v3505, 7
    %v3507 = vsub.s32 6, %v3506
    %v3508 = vrot.slane %v3478, %v3507
    %v3509 = vlaneseq
    %v3510 = vshrl.u32 %v3509, 7
    %v3511 = vsub.s32 7, %v3510
    %v3512 = vrot.slane %v3478, %v3511
    %v3521 = vmul.f32 %v3283, %v3484
    %v3522 = vmul.f32 %v3284, %v3488
    %v3523 = vmul.f32 %v3285, %v3492
    %v3524 = vmul.f32 %v3286, %v3496
    %v3525 = vmul.f32 %v3287, %v3500
    %v3526 = vmul.f32 %v3288, %v3504
    %v3527 = vmul.f32 %v3289, %v3508
    %v3528 = vmul.f32 %v3290, %v3512
    %v3537 = vcombine.low %v3521, %v3522
    %v3538 = vcombine.low %v3523, %v3524
    %v3539 = vcombine.low %v3525, %v3526
    %v3540 = vcombine.low %v3527, %v3528
    %v3542 = vunpack.c.l.s4 1966171168
    %v3543 = vunpack.c.0.s8 %v3542
    %v3544 = vlaneseq
    %v3545 = vshrl.u32 %v3544, 7
    %v3546 = vsub.s32 %v3543, %v3545
    %v3547 = vrot.slane %v3537, %v3546
    %v3549 = vunpack.c.l.s4 1966171168
    %v3550 = vunpack.c.0.s8 %v3549
    %v3551 = vlaneseq
    %v3552 = vshrl.u32 %v3551, 7
    %v3553 = vsub.s32 %v3550, %v3552
    %v3554 = vrot.slane %v3538, %v3553
    %v3556 = vunpack.c.l.s4 1966171168
    %v3557 = vunpack.c.0.s8 %v3556
    %v3558 = vlaneseq
    %v3559 = vshrl.u32 %v3558, 7
    %v3560 = vsub.s32 %v3557, %v3559
    %v3561 = vrot.slane %v3539, %v3560
    %v3563 = vunpack.c.l.s4 1966171168
    %v3564 = vunpack.c.0.s8 %v3563
    %v3565 = vlaneseq
    %v3566 = vshrl.u32 %v3565, 7
    %v3567 = vsub.s32 %v3564, %v3566
    %v3568 = vrot.slane %v3540, %v3567
    %v3569 = vcombine.low %v3547, %v3554
    %v3570 = vcombine.low %v3561, %v3568
    %v3572 = vunpack.c.l.s4 1966171168
    %v3573 = vunpack.c.0.s8 %v3572
    %v3574 = vlaneseq
    %v3575 = vshrl.u32 %v3574, 7
    %v3576 = vsub.s32 %v3573, %v3575
    %v3577 = vrot.slane %v3569, %v3576
    %v3579 = vunpack.c.l.s4 1966171168
    %v3580 = vunpack.c.0.s8 %v3579
    %v3581 = vlaneseq
    %v3582 = vshrl.u32 %v3581, 7
    %v3583 = vsub.s32 %v3580, %v3582
    %v3584 = vrot.slane %v3570, %v3583
    %v3585 = vcombine.low %v3577, %v3584
    %v3587 = vsub.f32 %v3479, %v3585
    %v3588 = vmul.f32 %v2945, %v3484
    %v3589 = vmul.f32 %v2947, %v3488
    %v3590 = vmul.f32 %v3031, %v3492
    %v3591 = vmul.f32 %v3033, %v3496
    %v3592 = vmul.f32 %v3117, %v3500
    %v3593 = vmul.f32 %v3119, %v3504
    %v3594 = vmul.f32 %v3203, %v3508
    %v3595 = vmul.f32 %v3205, %v3512
    %v3596 = vmul.f32 %v2949, %v3484
    %v3597 = vmul.f32 %v2951, %v3488
    %v3598 = vmul.f32 %v3035, %v3492
    %v3599 = vmul.f32 %v3037, %v3496
    %v3600 = vmul.f32 %v3121, %v3500
    %v3601 = vmul.f32 %v3123, %v3504
    %v3602 = vmul.f32 %v3207, %v3508
    %v3603 = vmul.f32 %v3209, %v3512
    %v3605 = vlaneseq
    %v3606 = vshrl.u32 %v3605, 7
    %v3607 = vsub.s32 0, %v3606
    %v3608 = vrot.slane %v3587, %v3607
    %v3609 = vlaneseq
    %v3610 = vshrl.u32 %v3609, 7
    %v3611 = vsub.s32 1, %v3610
    %v3612 = vrot.slane %v3587, %v3611
    %v3613 = vlaneseq
    %v3614 = vshrl.u32 %v3613, 7
    %v3615 = vsub.s32 2, %v3614
    %v3616 = vrot.slane %v3587, %v3615
    %v3617 = vlaneseq
    %v3618 = vshrl.u32 %v3617, 7
    %v3619 = vsub.s32 3, %v3618
    %v3620 = vrot.slane %v3587, %v3619
    %v3621 = vlaneseq
    %v3622 = vshrl.u32 %v3621, 7
    %v3623 = vsub.s32 4, %v3622
    %v3624 = vrot.slane %v3587, %v3623
    %v3625 = vlaneseq
    %v3626 = vshrl.u32 %v3625, 7
    %v3627 = vsub.s32 5, %v3626
    %v3628 = vrot.slane %v3587, %v3627
    %v3629 = vlaneseq
    %v3630 = vshrl.u32 %v3629, 7
    %v3631 = vsub.s32 6, %v3630
    %v3632 = vrot.slane %v3587, %v3631
    %v3633 = vlaneseq
    %v3634 = vshrl.u32 %v3633, 7
    %v3635 = vsub.s32 7, %v3634
    %v3636 = vrot.slane %v3587, %v3635
    %v3645 = vadd.f32 %v3588, %v3608
    %v3646 = vadd.f32 %v3589, %v3612
    %v3647 = vadd.f32 %v3590, %v3616
    %v3648 = vadd.f32 %v3591, %v3620
    %v3649 = vadd.f32 %v3592, %v3624
    %v3650 = vadd.f32 %v3593, %v3628
    %v3651 = vadd.f32 %v3594, %v3632
    %v3652 = vadd.f32 %v3595, %v3636
    %v3653 = vadd.f32 %v3596, %v3608
    %v3654 = vadd.f32 %v3597, %v3612
    %v3655 = vadd.f32 %v3598, %v3616
    %v3656 = vadd.f32 %v3599, %v3620
    %v3657 = vadd.f32 %v3600, %v3624
    %v3658 = vadd.f32 %v3601, %v3628
    %v3659 = vadd.f32 %v3602, %v3632
    %v3660 = vadd.f32 %v3603, %v3636
    %v3661 = vmul.f32 %v3645, 0.2
    %v3662 = vmul.f32 %v3646, 0.2
    %v3663 = vmul.f32 %v3647, 0.2
    %v3664 = vmul.f32 %v3648, 0.2
    %v3665 = vmul.f32 %v3649, 0.2
    %v3666 = vmul.f32 %v3650, 0.2
    %v3667 = vmul.f32 %v3651, 0.2
    %v3668 = vmul.f32 %v3652, 0.2
    %v3669 = vmul.f32 %v3653, 0.2
    %v3670 = vmul.f32 %v3654, 0.2
    %v3671 = vmul.f32 %v3655, 0.2
    %v3672 = vmul.f32 %v3656, 0.2
    %v3673 = vmul.f32 %v3657, 0.2
    %v3674 = vmul.f32 %v3658, 0.2
    %v3675 = vmul.f32 %v3659, 0.2
    %v3676 = vmul.f32 %v3660, 0.2
    %v3677 = vmax.f32 %v3645, %v3661
    %v3678 = vmax.f32 %v3646, %v3662
    %v3679 = vmax.f32 %v3647, %v3663
    %v3680 = vmax.f32 %v3648, %v3664
    %v3681 = vmax.f32 %v3649, %v3665
    %v3682 = vmax.f32 %v3650, %v3666
    %v3683 = vmax.f32 %v3651, %v3667
    %v3684 = vmax.f32 %v3652, %v3668
    %v3685 = vmax.f32 %v3653, %v3669
    %v3686 = vmax.f32 %v3654, %v3670
    %v3687 = vmax.f32 %v3655, %v3671
    %v3688 = vmax.f32 %v3656, %v3672
    %v3689 = vmax.f32 %v3657, %v3673
    %v3690 = vmax.f32 %v3658, %v3674
    %v3691 = vmax.f32 %v3659, %v3675
    %v3692 = vmax.f32 %v3660, %v3676
    %v3693 = vpack.c.bf16 %v3685, %v3677
    %v3694 = vpack.c.bf16 %v3686, %v3678
    %v3695 = vpack.c.bf16 %v3687, %v3679
    %v3696 = vpack.c.bf16 %v3688, %v3680
    %v3697 = vpack.c.bf16 %v3689, %v3681
    %v3698 = vpack.c.bf16 %v3690, %v3682
    %v3699 = vpack.c.bf16 %v3691, %v3683
    %v3700 = vpack.c.bf16 %v3692, %v3684
    %v3701 = vld [vmem:[#allocation21] sm:$0xf]
    %v3702 = vld [vmem:[#allocation21 + $0x4] sm:$0xf]
    %v3703 = vld [vmem:[#allocation21 + $0x8] sm:$0xf]
    %v3704 = vld [vmem:[#allocation21 + $0xc] sm:$0xf]
    %v3705 = vld [vmem:[#allocation21 + $0x10] sm:$0xf]
    %v3706 = vld [vmem:[#allocation21 + $0x14] sm:$0xf]
    %v3707 = vld [vmem:[#allocation21 + $0x18] sm:$0xf]
    %v3708 = vld [vmem:[#allocation21 + $0x1c] sm:$0xf]
    %v3709 = vld [vmem:[#allocation21 + $0x20] sm:$0xf]
    %v3710 = vld [vmem:[#allocation21 + $0x24] sm:$0xf]
    %v3711 = vld [vmem:[#allocation21 + $0x28] sm:$0xf]
    %v3712 = vld [vmem:[#allocation21 + $0x2c] sm:$0xf]
    %v3713 = vld [vmem:[#allocation21 + $0x30] sm:$0xf]
    %v3714 = vld [vmem:[#allocation21 + $0x34] sm:$0xf]
    %v3715 = vld [vmem:[#allocation21 + $0x38] sm:$0xf]
    %v3716 = vld [vmem:[#allocation21 + $0x3c] sm:$0xf]
    %v3717 = vld [vmem:[#allocation21 + $0x40] sm:$0xf]
    %v3718 = vld [vmem:[#allocation21 + $0x44] sm:$0xf]
    %v3719 = vld [vmem:[#allocation21 + $0x48] sm:$0xf]
    %v3720 = vld [vmem:[#allocation21 + $0x4c] sm:$0xf]
    %v3721 = vld [vmem:[#allocation21 + $0x50] sm:$0xf]
    %v3722 = vld [vmem:[#allocation21 + $0x54] sm:$0xf]
    %v3723 = vld [vmem:[#allocation21 + $0x58] sm:$0xf]
    %v3724 = vld [vmem:[#allocation21 + $0x5c] sm:$0xf]
    %v3725 = vld [vmem:[#allocation21 + $0x60] sm:$0xf]
    %v3726 = vld [vmem:[#allocation21 + $0x64] sm:$0xf]
    %v3727 = vld [vmem:[#allocation21 + $0x68] sm:$0xf]
    %v3728 = vld [vmem:[#allocation21 + $0x6c] sm:$0xf]
    %v3729 = vld [vmem:[#allocation21 + $0x70] sm:$0xf]
    %v3730 = vld [vmem:[#allocation21 + $0x74] sm:$0xf]
    %v3731 = vld [vmem:[#allocation21 + $0x78] sm:$0xf]
    %v3732 = vld [vmem:[#allocation21 + $0x7c] sm:$0xf]
    %v3733 = vld [vmem:[#allocation21 + $0x80] sm:$0xf]
    %v3734 = vld [vmem:[#allocation21 + $0x84] sm:$0xf]
    %v3735 = vld [vmem:[#allocation21 + $0x88] sm:$0xf]
    %v3736 = vld [vmem:[#allocation21 + $0x8c] sm:$0xf]
    %v3737 = vld [vmem:[#allocation21 + $0x90] sm:$0xf]
    %v3738 = vld [vmem:[#allocation21 + $0x94] sm:$0xf]
    %v3739 = vld [vmem:[#allocation21 + $0x98] sm:$0xf]
    %v3740 = vld [vmem:[#allocation21 + $0x9c] sm:$0xf]
    %v3741 = vld [vmem:[#allocation21 + $0xa0] sm:$0xf]
    %v3742 = vld [vmem:[#allocation21 + $0xa4] sm:$0xf]
    %v3743 = vld [vmem:[#allocation21 + $0xa8] sm:$0xf]
    %v3744 = vld [vmem:[#allocation21 + $0xac] sm:$0xf]
    %v3745 = vld [vmem:[#allocation21 + $0xb0] sm:$0xf]
    %v3746 = vld [vmem:[#allocation21 + $0xb4] sm:$0xf]
    %v3747 = vld [vmem:[#allocation21 + $0xb8] sm:$0xf]
    %v3748 = vld [vmem:[#allocation21 + $0xbc] sm:$0xf]
    %v3749 = vld [vmem:[#allocation21 + $0xc0] sm:$0xf]
    %v3750 = vld [vmem:[#allocation21 + $0xc4] sm:$0xf]
    %v3751 = vld [vmem:[#allocation21 + $0xc8] sm:$0xf]
    %v3752 = vld [vmem:[#allocation21 + $0xcc] sm:$0xf]
    %v3753 = vld [vmem:[#allocation21 + $0xd0] sm:$0xf]
    %v3754 = vld [vmem:[#allocation21 + $0xd4] sm:$0xf]
    %v3755 = vld [vmem:[#allocation21 + $0xd8] sm:$0xf]
    %v3756 = vld [vmem:[#allocation21 + $0xdc] sm:$0xf]
    %v3757 = vld [vmem:[#allocation21 + $0xe0] sm:$0xf]
    %v3758 = vld [vmem:[#allocation21 + $0xe4] sm:$0xf]
    %v3759 = vld [vmem:[#allocation21 + $0xe8] sm:$0xf]
    %v3760 = vld [vmem:[#allocation21 + $0xec] sm:$0xf]
    %v3761 = vld [vmem:[#allocation21 + $0xf0] sm:$0xf]
    %v3762 = vld [vmem:[#allocation21 + $0xf4] sm:$0xf]
    %v3763 = vld [vmem:[#allocation21 + $0xf8] sm:$0xf]
    %v3764 = vld [vmem:[#allocation21 + $0xfc] sm:$0xf]
    %v3765 = vld [vmem:[#allocation21 + $0x100] sm:$0xf]
    %v3766 = vld [vmem:[#allocation21 + $0x104] sm:$0xf]
    %v3767 = vld [vmem:[#allocation21 + $0x108] sm:$0xf]
    %v3768 = vld [vmem:[#allocation21 + $0x10c] sm:$0xf]
    %v3769 = vld [vmem:[#allocation21 + $0x110] sm:$0xf]
    %v3770 = vld [vmem:[#allocation21 + $0x114] sm:$0xf]
    %v3771 = vld [vmem:[#allocation21 + $0x118] sm:$0xf]
    %v3772 = vld [vmem:[#allocation21 + $0x11c] sm:$0xf]
    %v3773 = vld [vmem:[#allocation21 + $0x120] sm:$0xf]
    %v3774 = vld [vmem:[#allocation21 + $0x124] sm:$0xf]
    %v3775 = vld [vmem:[#allocation21 + $0x128] sm:$0xf]
    %v3776 = vld [vmem:[#allocation21 + $0x12c] sm:$0xf]
    %v3777 = vld [vmem:[#allocation21 + $0x130] sm:$0xf]
    %v3778 = vld [vmem:[#allocation21 + $0x134] sm:$0xf]
    %v3779 = vld [vmem:[#allocation21 + $0x138] sm:$0xf]
    %v3780 = vld [vmem:[#allocation21 + $0x13c] sm:$0xf]
    %v3781 = vld [vmem:[#allocation21 + $0x140] sm:$0xf]
    %v3782 = vld [vmem:[#allocation21 + $0x144] sm:$0xf]
    %v3783 = vld [vmem:[#allocation21 + $0x148] sm:$0xf]
    %v3784 = vld [vmem:[#allocation21 + $0x14c] sm:$0xf]
    %v3785 = vld [vmem:[#allocation21 + $0x150] sm:$0xf]
    %v3786 = vld [vmem:[#allocation21 + $0x154] sm:$0xf]
    %v3787 = vld [vmem:[#allocation21 + $0x158] sm:$0xf]
    %v3788 = vld [vmem:[#allocation21 + $0x15c] sm:$0xf]
    %v3789 = vld [vmem:[#allocation21 + $0x160] sm:$0xf]
    %v3790 = vld [vmem:[#allocation21 + $0x164] sm:$0xf]
    %v3791 = vld [vmem:[#allocation21 + $0x168] sm:$0xf]
    %v3792 = vld [vmem:[#allocation21 + $0x16c] sm:$0xf]
    %v3793 = vld [vmem:[#allocation21 + $0x170] sm:$0xf]
    %v3794 = vld [vmem:[#allocation21 + $0x174] sm:$0xf]
    %v3795 = vld [vmem:[#allocation21 + $0x178] sm:$0xf]
    %v3796 = vld [vmem:[#allocation21 + $0x17c] sm:$0xf]
    %v3797 = vld [vmem:[#allocation21 + $0x180] sm:$0xf]
    %v3798 = vld [vmem:[#allocation21 + $0x184] sm:$0xf]
    %v3799 = vld [vmem:[#allocation21 + $0x188] sm:$0xf]
    %v3800 = vld [vmem:[#allocation21 + $0x18c] sm:$0xf]
    %v3801 = vld [vmem:[#allocation21 + $0x190] sm:$0xf]
    %v3802 = vld [vmem:[#allocation21 + $0x194] sm:$0xf]
    %v3803 = vld [vmem:[#allocation21 + $0x198] sm:$0xf]
    %v3804 = vld [vmem:[#allocation21 + $0x19c] sm:$0xf]
    %v3805 = vld [vmem:[#allocation21 + $0x1a0] sm:$0xf]
    %v3806 = vld [vmem:[#allocation21 + $0x1a4] sm:$0xf]
    %v3807 = vld [vmem:[#allocation21 + $0x1a8] sm:$0xf]
    %v3808 = vld [vmem:[#allocation21 + $0x1ac] sm:$0xf]
    %v3809 = vld [vmem:[#allocation21 + $0x1b0] sm:$0xf]
    %v3810 = vld [vmem:[#allocation21 + $0x1b4] sm:$0xf]
    %v3811 = vld [vmem:[#allocation21 + $0x1b8] sm:$0xf]
    %v3812 = vld [vmem:[#allocation21 + $0x1bc] sm:$0xf]
    %v3813 = vld [vmem:[#allocation21 + $0x1c0] sm:$0xf]
    %v3814 = vld [vmem:[#allocation21 + $0x1c4] sm:$0xf]
    %v3815 = vld [vmem:[#allocation21 + $0x1c8] sm:$0xf]
    %v3816 = vld [vmem:[#allocation21 + $0x1cc] sm:$0xf]
    %v3817 = vld [vmem:[#allocation21 + $0x1d0] sm:$0xf]
    %v3818 = vld [vmem:[#allocation21 + $0x1d4] sm:$0xf]
    %v3819 = vld [vmem:[#allocation21 + $0x1d8] sm:$0xf]
    %v3820 = vld [vmem:[#allocation21 + $0x1dc] sm:$0xf]
    %v3821 = vld [vmem:[#allocation21 + $0x1e0] sm:$0xf]
    %v3822 = vld [vmem:[#allocation21 + $0x1e4] sm:$0xf]
    %v3823 = vld [vmem:[#allocation21 + $0x1e8] sm:$0xf]
    %v3824 = vld [vmem:[#allocation21 + $0x1ec] sm:$0xf]
    %v3825 = vld [vmem:[#allocation21 + $0x1f0] sm:$0xf]
    %v3826 = vld [vmem:[#allocation21 + $0x1f4] sm:$0xf]
    %v3827 = vld [vmem:[#allocation21 + $0x1f8] sm:$0xf]
    %v3828 = vld [vmem:[#allocation21 + $0x1fc] sm:$0xf]
    %v3829 = vld [vmem:[%s14] sm:$0x1]
    %v3831 = vlaneseq
    %v3832 = vshrl.u32 %v3831, 7
    %v3833 = vsub.s32 0, %v3832
    %v3834 = vrot.slane %v3829, %v3833
    %v3964 = vunpack.c.l.b16 %v3701
    %v3965 = vunpack.c.l.b16 %v3702
    %v3966 = vunpack.c.l.b16 %v3703
    %v3967 = vunpack.c.l.b16 %v3704
    %v3968 = vunpack.c.l.b16 %v3705
    %v3969 = vunpack.c.l.b16 %v3706
    %v3970 = vunpack.c.l.b16 %v3707
    %v3971 = vunpack.c.l.b16 %v3708
    %v3972 = vunpack.c.l.b16 %v3709
    %v3973 = vunpack.c.l.b16 %v3710
    %v3974 = vunpack.c.l.b16 %v3711
    %v3975 = vunpack.c.l.b16 %v3712
    %v3976 = vunpack.c.l.b16 %v3713
    %v3977 = vunpack.c.l.b16 %v3714
    %v3978 = vunpack.c.l.b16 %v3715
    %v3979 = vunpack.c.l.b16 %v3716
    %v3980 = vunpack.c.l.b16 %v3717
    %v3981 = vunpack.c.l.b16 %v3718
    %v3982 = vunpack.c.l.b16 %v3719
    %v3983 = vunpack.c.l.b16 %v3720
    %v3984 = vunpack.c.l.b16 %v3721
    %v3985 = vunpack.c.l.b16 %v3722
    %v3986 = vunpack.c.l.b16 %v3723
    %v3987 = vunpack.c.l.b16 %v3724
    %v3988 = vunpack.c.l.b16 %v3725
    %v3989 = vunpack.c.l.b16 %v3726
    %v3990 = vunpack.c.l.b16 %v3727
    %v3991 = vunpack.c.l.b16 %v3728
    %v3992 = vunpack.c.l.b16 %v3729
    %v3993 = vunpack.c.l.b16 %v3730
    %v3994 = vunpack.c.l.b16 %v3731
    %v3995 = vunpack.c.l.b16 %v3732
    %v3996 = vunpack.c.l.b16 %v3733
    %v3997 = vunpack.c.l.b16 %v3734
    %v3998 = vunpack.c.l.b16 %v3735
    %v3999 = vunpack.c.l.b16 %v3736
    %v4000 = vunpack.c.l.b16 %v3737
    %v4001 = vunpack.c.l.b16 %v3738
    %v4002 = vunpack.c.l.b16 %v3739
    %v4003 = vunpack.c.l.b16 %v3740
    %v4004 = vunpack.c.l.b16 %v3741
    %v4005 = vunpack.c.l.b16 %v3742
    %v4006 = vunpack.c.l.b16 %v3743
    %v4007 = vunpack.c.l.b16 %v3744
    %v4008 = vunpack.c.l.b16 %v3745
    %v4009 = vunpack.c.l.b16 %v3746
    %v4010 = vunpack.c.l.b16 %v3747
    %v4011 = vunpack.c.l.b16 %v3748
    %v4012 = vunpack.c.l.b16 %v3749
    %v4013 = vunpack.c.l.b16 %v3750
    %v4014 = vunpack.c.l.b16 %v3751
    %v4015 = vunpack.c.l.b16 %v3752
    %v4016 = vunpack.c.l.b16 %v3753
    %v4017 = vunpack.c.l.b16 %v3754
    %v4018 = vunpack.c.l.b16 %v3755
    %v4019 = vunpack.c.l.b16 %v3756
    %v4020 = vunpack.c.l.b16 %v3757
    %v4021 = vunpack.c.l.b16 %v3758
    %v4022 = vunpack.c.l.b16 %v3759
    %v4023 = vunpack.c.l.b16 %v3760
    %v4024 = vunpack.c.l.b16 %v3761
    %v4025 = vunpack.c.l.b16 %v3762
    %v4026 = vunpack.c.l.b16 %v3763
    %v4027 = vunpack.c.l.b16 %v3764
    %v4028 = vunpack.c.l.b16 %v3765
    %v4029 = vunpack.c.l.b16 %v3766
    %v4030 = vunpack.c.l.b16 %v3767
    %v4031 = vunpack.c.l.b16 %v3768
    %v4032 = vunpack.c.l.b16 %v3769
    %v4033 = vunpack.c.l.b16 %v3770
    %v4034 = vunpack.c.l.b16 %v3771
    %v4035 = vunpack.c.l.b16 %v3772
    %v4036 = vunpack.c.l.b16 %v3773
    %v4037 = vunpack.c.l.b16 %v3774
    %v4038 = vunpack.c.l.b16 %v3775
    %v4039 = vunpack.c.l.b16 %v3776
    %v4040 = vunpack.c.l.b16 %v3777
    %v4041 = vunpack.c.l.b16 %v3778
    %v4042 = vunpack.c.l.b16 %v3779
    %v4043 = vunpack.c.l.b16 %v3780
    %v4044 = vunpack.c.l.b16 %v3781
    %v4045 = vunpack.c.l.b16 %v3782
    %v4046 = vunpack.c.l.b16 %v3783
    %v4047 = vunpack.c.l.b16 %v3784
    %v4048 = vunpack.c.l.b16 %v3785
    %v4049 = vunpack.c.l.b16 %v3786
    %v4050 = vunpack.c.l.b16 %v3787
    %v4051 = vunpack.c.l.b16 %v3788
    %v4052 = vunpack.c.l.b16 %v3789
    %v4053 = vunpack.c.l.b16 %v3790
    %v4054 = vunpack.c.l.b16 %v3791
    %v4055 = vunpack.c.l.b16 %v3792
    %v4056 = vunpack.c.l.b16 %v3793
    %v4057 = vunpack.c.l.b16 %v3794
    %v4058 = vunpack.c.l.b16 %v3795
    %v4059 = vunpack.c.l.b16 %v3796
    %v4060 = vunpack.c.l.b16 %v3797
    %v4061 = vunpack.c.l.b16 %v3798
    %v4062 = vunpack.c.l.b16 %v3799
    %v4063 = vunpack.c.l.b16 %v3800
    %v4064 = vunpack.c.l.b16 %v3801
    %v4065 = vunpack.c.l.b16 %v3802
    %v4066 = vunpack.c.l.b16 %v3803
    %v4067 = vunpack.c.l.b16 %v3804
    %v4068 = vunpack.c.l.b16 %v3805
    %v4069 = vunpack.c.l.b16 %v3806
    %v4070 = vunpack.c.l.b16 %v3807
    %v4071 = vunpack.c.l.b16 %v3808
    %v4072 = vunpack.c.l.b16 %v3809
    %v4073 = vunpack.c.l.b16 %v3810
    %v4074 = vunpack.c.l.b16 %v3811
    %v4075 = vunpack.c.l.b16 %v3812
    %v4076 = vunpack.c.l.b16 %v3813
    %v4077 = vunpack.c.l.b16 %v3814
    %v4078 = vunpack.c.l.b16 %v3815
    %v4079 = vunpack.c.l.b16 %v3816
    %v4080 = vunpack.c.l.b16 %v3817
    %v4081 = vunpack.c.l.b16 %v3818
    %v4082 = vunpack.c.l.b16 %v3819
    %v4083 = vunpack.c.l.b16 %v3820
    %v4084 = vunpack.c.l.b16 %v3821
    %v4085 = vunpack.c.l.b16 %v3822
    %v4086 = vunpack.c.l.b16 %v3823
    %v4087 = vunpack.c.l.b16 %v3824
    %v4088 = vunpack.c.l.b16 %v3825
    %v4089 = vunpack.c.l.b16 %v3826
    %v4090 = vunpack.c.l.b16 %v3827
    %v4091 = vunpack.c.l.b16 %v3828
    %v4092 = vpack.c.b16 %v3965, %v3964
    %v4093 = vpack.c.b16 %v3967, %v3966
    %v4094 = vpack.c.b16 %v3969, %v3968
    %v4095 = vpack.c.b16 %v3971, %v3970
    %v4096 = vpack.c.b16 %v3973, %v3972
    %v4097 = vpack.c.b16 %v3975, %v3974
    %v4098 = vpack.c.b16 %v3977, %v3976
    %v4099 = vpack.c.b16 %v3979, %v3978
    %v4100 = vpack.c.b16 %v3981, %v3980
    %v4101 = vpack.c.b16 %v3983, %v3982
    %v4102 = vpack.c.b16 %v3985, %v3984
    %v4103 = vpack.c.b16 %v3987, %v3986
    %v4104 = vpack.c.b16 %v3989, %v3988
    %v4105 = vpack.c.b16 %v3991, %v3990
    %v4106 = vpack.c.b16 %v3993, %v3992
    %v4107 = vpack.c.b16 %v3995, %v3994
    %v4108 = vpack.c.b16 %v3997, %v3996
    %v4109 = vpack.c.b16 %v3999, %v3998
    %v4110 = vpack.c.b16 %v4001, %v4000
    %v4111 = vpack.c.b16 %v4003, %v4002
    %v4112 = vpack.c.b16 %v4005, %v4004
    %v4113 = vpack.c.b16 %v4007, %v4006
    %v4114 = vpack.c.b16 %v4009, %v4008
    %v4115 = vpack.c.b16 %v4011, %v4010
    %v4116 = vpack.c.b16 %v4013, %v4012
    %v4117 = vpack.c.b16 %v4015, %v4014
    %v4118 = vpack.c.b16 %v4017, %v4016
    %v4119 = vpack.c.b16 %v4019, %v4018
    %v4120 = vpack.c.b16 %v4021, %v4020
    %v4121 = vpack.c.b16 %v4023, %v4022
    %v4122 = vpack.c.b16 %v4025, %v4024
    %v4123 = vpack.c.b16 %v4027, %v4026
    %v4124 = vpack.c.b16 %v4029, %v4028
    %v4125 = vpack.c.b16 %v4031, %v4030
    %v4126 = vpack.c.b16 %v4033, %v4032
    %v4127 = vpack.c.b16 %v4035, %v4034
    %v4128 = vpack.c.b16 %v4037, %v4036
    %v4129 = vpack.c.b16 %v4039, %v4038
    %v4130 = vpack.c.b16 %v4041, %v4040
    %v4131 = vpack.c.b16 %v4043, %v4042
    %v4132 = vpack.c.b16 %v4045, %v4044
    %v4133 = vpack.c.b16 %v4047, %v4046
    %v4134 = vpack.c.b16 %v4049, %v4048
    %v4135 = vpack.c.b16 %v4051, %v4050
    %v4136 = vpack.c.b16 %v4053, %v4052
    %v4137 = vpack.c.b16 %v4055, %v4054
    %v4138 = vpack.c.b16 %v4057, %v4056
    %v4139 = vpack.c.b16 %v4059, %v4058
    %v4140 = vpack.c.b16 %v4061, %v4060
    %v4141 = vpack.c.b16 %v4063, %v4062
    %v4142 = vpack.c.b16 %v4065, %v4064
    %v4143 = vpack.c.b16 %v4067, %v4066
    %v4144 = vpack.c.b16 %v4069, %v4068
    %v4145 = vpack.c.b16 %v4071, %v4070
    %v4146 = vpack.c.b16 %v4073, %v4072
    %v4147 = vpack.c.b16 %v4075, %v4074
    %v4148 = vpack.c.b16 %v4077, %v4076
    %v4149 = vpack.c.b16 %v4079, %v4078
    %v4150 = vpack.c.b16 %v4081, %v4080
    %v4151 = vpack.c.b16 %v4083, %v4082
    %v4152 = vpack.c.b16 %v4085, %v4084
    %v4153 = vpack.c.b16 %v4087, %v4086
    %v4154 = vpack.c.b16 %v4089, %v4088
    %v4155 = vpack.c.b16 %v4091, %v4090
    %4220 = vmatprep.subr.bf16.mxu0 0
    %4221 = vmatpush1.bf16.msra.mxu0 %v4099
    %4222 = vmatprep.subr.bf16.mxu0 0
    %4223 = vmatpush1.bf16.msra.mxu0 %v4098
    %4224 = vmatprep.subr.bf16.mxu0 0
    %4225 = vmatpush1.bf16.msra.mxu0 %v4097
    %4226 = vmatprep.subr.bf16.mxu0 0
    %4227 = vmatpush1.bf16.msra.mxu0 %v4096
    %4228 = vmatprep.subr.bf16.mxu0 0
    %4229 = vmatpush1.bf16.msra.mxu0 %v4095
    %4230 = vmatprep.subr.bf16.mxu0 0
    %4231 = vmatpush1.bf16.msra.mxu0 %v4094
    %4232 = vmatprep.subr.bf16.mxu0 0
    %4233 = vmatpush1.bf16.msra.mxu0 %v4093
    %4234 = vmatprep.subr.bf16.mxu0 0
    %4235 = vmatpush1.bf16.msra.mxu0 %v4092
    %4236 = vmatprep.subr.bf16.mxu0 0
    %4237 = vmatpush2.bf16.msra.mxu0 %v4107
    %4238 = vmatprep.subr.bf16.mxu0 0
    %4239 = vmatpush2.bf16.msra.mxu0 %v4106
    %4240 = vmatprep.subr.bf16.mxu0 0
    %4241 = vmatpush2.bf16.msra.mxu0 %v4105
    %4242 = vmatprep.subr.bf16.mxu0 0
    %4243 = vmatpush2.bf16.msra.mxu0 %v4104
    %4244 = vmatprep.subr.bf16.mxu0 0
    %4245 = vmatpush2.bf16.msra.mxu0 %v4103
    %4246 = vmatprep.subr.bf16.mxu0 0
    %4247 = vmatpush2.bf16.msra.mxu0 %v4102
    %4248 = vmatprep.subr.bf16.mxu0 0
    %4249 = vmatpush2.bf16.msra.mxu0 %v4101
    %4250 = vmatprep.subr.bf16.mxu0 0
    %4251 = vmatpush2.bf16.msra.mxu0 %v4100
    %4252 = vmatprep.mubr.bf16.mxu0 %v3694
    %4253 = vmatmul.mubr.bf16.gmra.mxu0 %v3693
    %v4254 = vpop.f32.mrf.mxu0
    %v4255 = vadd.f32 %v3834, %v4254
    %v4256 = vpop.f32.mrf.mxu0
    %v4257 = vpop.f32.mrf.mxu0
    %v4258 = vadd.f32 %v3834, %v4257
    %v4259 = vpop.f32.mrf.mxu0
    %4260 = vdwg.mxu0
    %4261 = vmatprep.subr.bf16.mxu0 0
    %4262 = vmatpush1.bf16.msra.mxu0 %v4115
    %4263 = vmatprep.subr.bf16.mxu0 0
    %4264 = vmatpush1.bf16.msra.mxu0 %v4114
    %4265 = vmatprep.subr.bf16.mxu0 0
    %4266 = vmatpush1.bf16.msra.mxu0 %v4113
    %4267 = vmatprep.subr.bf16.mxu0 0
    %4268 = vmatpush1.bf16.msra.mxu0 %v4112
    %4269 = vmatprep.subr.bf16.mxu0 0
    %4270 = vmatpush1.bf16.msra.mxu0 %v4111
    %4271 = vmatprep.subr.bf16.mxu0 0
    %4272 = vmatpush1.bf16.msra.mxu0 %v4110
    %4273 = vmatprep.subr.bf16.mxu0 0
    %4274 = vmatpush1.bf16.msra.mxu0 %v4109
    %4275 = vmatprep.subr.bf16.mxu0 0
    %4276 = vmatpush1.bf16.msra.mxu0 %v4108
    %4277 = vmatprep.subr.bf16.mxu0 0
    %4278 = vmatpush2.bf16.msra.mxu0 %v4123
    %4279 = vmatprep.subr.bf16.mxu0 0
    %4280 = vmatpush2.bf16.msra.mxu0 %v4122
    %4281 = vmatprep.subr.bf16.mxu0 0
    %4282 = vmatpush2.bf16.msra.mxu0 %v4121
    %4283 = vmatprep.subr.bf16.mxu0 0
    %4284 = vmatpush2.bf16.msra.mxu0 %v4120
    %4285 = vmatprep.subr.bf16.mxu0 0
    %4286 = vmatpush2.bf16.msra.mxu0 %v4119
    %4287 = vmatprep.subr.bf16.mxu0 0
    %4288 = vmatpush2.bf16.msra.mxu0 %v4118
    %4289 = vmatprep.subr.bf16.mxu0 0
    %4290 = vmatpush2.bf16.msra.mxu0 %v4117
    %4291 = vmatprep.subr.bf16.mxu0 0
    %4292 = vmatpush2.bf16.msra.mxu0 %v4116
    %4293 = vmatprep.mubr.bf16.mxu0 %v3696
    %4294 = vmatmul.mubr.bf16.gmra.mxu0 %v3695
    %v4295 = vpop.f32.mrf.mxu0
    %v4296 = vadd.f32 %v4255, %v4295
    %v4297 = vpop.f32.mrf.mxu0
    %v4298 = vpop.f32.mrf.mxu0
    %v4299 = vadd.f32 %v4258, %v4298
    %v4300 = vpop.f32.mrf.mxu0
    %4301 = vdwg.mxu0
    %4302 = vmatprep.subr.bf16.mxu0 0
    %4303 = vmatpush1.bf16.msra.mxu0 %v4131
    %4304 = vmatprep.subr.bf16.mxu0 0
    %4305 = vmatpush1.bf16.msra.mxu0 %v4130
    %4306 = vmatprep.subr.bf16.mxu0 0
    %4307 = vmatpush1.bf16.msra.mxu0 %v4129
    %4308 = vmatprep.subr.bf16.mxu0 0
    %4309 = vmatpush1.bf16.msra.mxu0 %v4128
    %4310 = vmatprep.subr.bf16.mxu0 0
    %4311 = vmatpush1.bf16.msra.mxu0 %v4127
    %4312 = vmatprep.subr.bf16.mxu0 0
    %4313 = vmatpush1.bf16.msra.mxu0 %v4126
    %4314 = vmatprep.subr.bf16.mxu0 0
    %4315 = vmatpush1.bf16.msra.mxu0 %v4125
    %4316 = vmatprep.subr.bf16.mxu0 0
    %4317 = vmatpush1.bf16.msra.mxu0 %v4124
    %4318 = vmatprep.subr.bf16.mxu0 0
    %4319 = vmatpush2.bf16.msra.mxu0 %v4139
    %4320 = vmatprep.subr.bf16.mxu0 0
    %4321 = vmatpush2.bf16.msra.mxu0 %v4138
    %4322 = vmatprep.subr.bf16.mxu0 0
    %4323 = vmatpush2.bf16.msra.mxu0 %v4137
    %4324 = vmatprep.subr.bf16.mxu0 0
    %4325 = vmatpush2.bf16.msra.mxu0 %v4136
    %4326 = vmatprep.subr.bf16.mxu0 0
    %4327 = vmatpush2.bf16.msra.mxu0 %v4135
    %4328 = vmatprep.subr.bf16.mxu0 0
    %4329 = vmatpush2.bf16.msra.mxu0 %v4134
    %4330 = vmatprep.subr.bf16.mxu0 0
    %4331 = vmatpush2.bf16.msra.mxu0 %v4133
    %4332 = vmatprep.subr.bf16.mxu0 0
    %4333 = vmatpush2.bf16.msra.mxu0 %v4132
    %4334 = vmatprep.mubr.bf16.mxu0 %v3698
    %4335 = vmatmul.mubr.bf16.gmra.mxu0 %v3697
    %v4336 = vpop.f32.mrf.mxu0
    %v4337 = vadd.f32 %v4296, %v4336
    %v4338 = vpop.f32.mrf.mxu0
    %v4339 = vpop.f32.mrf.mxu0
    %v4340 = vadd.f32 %v4299, %v4339
    %v4341 = vpop.f32.mrf.mxu0
    %4342 = vdwg.mxu0
    %4343 = vmatprep.subr.bf16.mxu0 0
    %4344 = vmatpush1.bf16.msra.mxu0 %v4147
    %4345 = vmatprep.subr.bf16.mxu0 0
    %4346 = vmatpush1.bf16.msra.mxu0 %v4146
    %4347 = vmatprep.subr.bf16.mxu0 0
    %4348 = vmatpush1.bf16.msra.mxu0 %v4145
    %4349 = vmatprep.subr.bf16.mxu0 0
    %4350 = vmatpush1.bf16.msra.mxu0 %v4144
    %4351 = vmatprep.subr.bf16.mxu0 0
    %4352 = vmatpush1.bf16.msra.mxu0 %v4143
    %4353 = vmatprep.subr.bf16.mxu0 0
    %4354 = vmatpush1.bf16.msra.mxu0 %v4142
    %4355 = vmatprep.subr.bf16.mxu0 0
    %4356 = vmatpush1.bf16.msra.mxu0 %v4141
    %4357 = vmatprep.subr.bf16.mxu0 0
    %4358 = vmatpush1.bf16.msra.mxu0 %v4140
    %4359 = vmatprep.subr.bf16.mxu0 0
    %4360 = vmatpush2.bf16.msra.mxu0 %v4155
    %4361 = vmatprep.subr.bf16.mxu0 0
    %4362 = vmatpush2.bf16.msra.mxu0 %v4154
    %4363 = vmatprep.subr.bf16.mxu0 0
    %4364 = vmatpush2.bf16.msra.mxu0 %v4153
    %4365 = vmatprep.subr.bf16.mxu0 0
    %4366 = vmatpush2.bf16.msra.mxu0 %v4152
    %4367 = vmatprep.subr.bf16.mxu0 0
    %4368 = vmatpush2.bf16.msra.mxu0 %v4151
    %4369 = vmatprep.subr.bf16.mxu0 0
    %4370 = vmatpush2.bf16.msra.mxu0 %v4150
    %4371 = vmatprep.subr.bf16.mxu0 0
    %4372 = vmatpush2.bf16.msra.mxu0 %v4149
    %4373 = vmatprep.subr.bf16.mxu0 0
    %4374 = vmatpush2.bf16.msra.mxu0 %v4148
    %4375 = vmatprep.mubr.bf16.mxu0 %v3700
    %4376 = vmatmul.mubr.bf16.gmra.mxu0 %v3699
    %v4377 = vpop.f32.mrf.mxu0
    %v4378 = vadd.f32 %v4337, %v4377
    %v4379 = vpop.f32.mrf.mxu0
    %v4380 = vpop.f32.mrf.mxu0
    %v4381 = vadd.f32 %v4340, %v4380
    %v4382 = vpop.f32.mrf.mxu0
    %4383 = vdwg.mxu0
    %v4384 = vtanh.pop %v4378
    %v4385 = vtanh.pop %v4381
    %4386 = vst [vmem:[#allocation22] sm:$0xff] %v4384
    %4387 = vst [vmem:[#allocation22 + $0x8] sm:$0xff] %v4385
    // Predicated region
    $region102: #{tpu_custom_call.1} parent=1 // pred_check
      _
    $region103: #{tpu_custom_call.1} parent=1 // pred_check_branch
      %4389 = sbr.rel (0) target = $region105
    $region104: #{tpu_custom_call.1} parent=1 // pred_region
      %s4391 = ssub.s32 256, 256
      %4392 = vsyncadd [#allocation6], %s4391
      %s4393 = sshll.u32 [#allocation22], 4
      %s4394 = int_to_ptr.vmem [resolvable:$true] %s4393
      %4399 = dma.vmem_to_hbm [thread:$0]  %s4394, 256, %s15, [#allocation6], 128, 128, 8
    $region105: #{tpu_custom_call.1} parent=1 // pred_fallthru
      _
    // Predicated region
    $region106: #{tpu_custom_call.1} parent=1 // pred_check
      _
    $region107: #{tpu_custom_call.1} parent=1 // pred_check_branch
      %4401 = sbr.rel (0) target = $region109
    $region108: #{tpu_custom_call.1} parent=1 // pred_region
      %4402 = dma.done [#allocation6], 256
    $region109: #{tpu_custom_call.1} parent=1 // pred_fallthru
      _
    %4403 = vsyncpa [#allocation5], 1
    %4404 = vsyncpa [#allocation8], 1
    %4405 = vsyncpa [#allocation11], 1
    %4406 = vsyncpa [#allocation14], 1
    %4407 = vsyncpa [#allocation17], 1
    %4408 = vsyncpa [#allocation20], 1
    %4409 = vsyncpa [#allocation6], 1

</llo_original>
